<compile_context>
chip_gen: v6e
topology: v6e:2x2x1
jax: 0.10.0
libtpu: 0.0.40
codegen_flags: <defaults>
</compile_context>

<pallas_src>
import functools
import math

import jax
import jax.numpy as jnp
from jax.experimental import pallas as pl
from jax.experimental.pallas import tpu as pltpu

# ----------------------------------------------------------------------------
# Small config, structurally identical to CIPSskip(size=16, ...)
# ----------------------------------------------------------------------------
SIZE = 16                              # image size -> log_size = 4
LTNT = 32                              # ltnt_size
VM_DIM = 16                            # vm_dim (style dim == conv1 in-channels)
N_MLP = 2                              # style MLP depth (default 8, shrunk)
N_COAFFIN = 2                          # co-affine depth (default 3, shrunk)
CHANNELS = {0: 32, 1: 32, 2: 16}       # scaled-down channel table
LOG_SIZE = int(math.log2(SIZE))
N_INTERMEDIATE = LOG_SIZE - 1          # = 3
TO_RGB_STRIDE = 2
LRELU_SLOPE = 0.2
LRELU_SCALE = math.sqrt(2.0)           # fused_leaky_relu scale


def _lrelu(v):
    # fused_leaky_relu (bias already added): leaky_relu(v, 0.2) * sqrt(2)
    return jnp.where(v >= 0.0, v, LRELU_SLOPE * v) * LRELU_SCALE


# ----------------------------------------------------------------------------
# The single fused Pallas kernel
# ----------------------------------------------------------------------------
def _fused_cips_kernel(*refs, n_style, n_coaff, conv_meta, batch):
    """Entire CIPSskip forward in one dispatch.

    refs = [feat, mask, v_code, latent,
            style (w,b)*n_style, coaffine (w,b)*n_coaff,
            conv layers (mod_w, mod_b, w, bias) * len(conv_meta),
            x_out, rgb_out, lat_out]
    conv_meta[i] = (scale, demodulate, activation, is_rgb)  -- all static.
    """
    it = iter(refs)
    feat_ref = next(it)        # (B, n_o, VM_DIM, P)  channel-major
    mask_ref = next(it)        # (B, n_o, 1, P)
    vcode_ref = next(it)       # (B, n_o, VM_DIM)
    latent_ref = next(it)      # (B, LTNT)
    style_ws = [(next(it), next(it)) for _ in range(n_style)]
    coaff_ws = [(next(it), next(it)) for _ in range(n_coaff)]
    conv_ws = [(next(it), next(it), next(it), next(it))
               for _ in range(len(conv_meta))]
    x_out_ref = next(it)       # (B, C_last, P)
    rgb_out_ref = next(it)     # (B, 3, P)
    lat_out_ref = next(it)     # (B, VM_DIM)

    # ---- latent path: PixelNorm -> style MLP -> coaffine (all batches) -----
    lat = latent_ref[...]                                        # (B, LTNT)
    lat = lat * jax.lax.rsqrt(jnp.mean(lat * lat, axis=1, keepdims=True) + 1e-8)
    for w_ref, b_ref in style_ws:
        lat = _lrelu(jnp.dot(lat, w_ref[...],
                             preferred_element_type=jnp.float32) + b_ref[...])

    vmean = jnp.mean(vcode_ref[...], axis=1)                     # (B, VM_DIM)
    # first coaffine layer: split the (VM_DIM+LTNT, VM_DIM) matmul (avoids concat)
    w0_ref, b0_ref = coaff_ws[0]
    lat = _lrelu(
        jnp.dot(vmean, w0_ref[:VM_DIM, :], preferred_element_type=jnp.float32)
        + jnp.dot(lat, w0_ref[VM_DIM:, :], preferred_element_type=jnp.float32)
        + b0_ref[...])
    for w_ref, b_ref in coaff_ws[1:]:
        lat = _lrelu(jnp.dot(lat, w_ref[...],
                             preferred_element_type=jnp.float32) + b_ref[...])
    lat_out_ref[...] = lat                                       # (B, VM_DIM)

    # ---- per-layer modulation vectors (EqualLinear folded in, all batches) --
    s_all = []
    for (scale, _, _, _), (mw_ref, mb_ref, _, _) in zip(conv_meta, conv_ws):
        s = (jnp.dot(lat, mw_ref[...], preferred_element_type=jnp.float32)
             + mb_ref[...]) * scale                              # (B, Cin)
        s_all.append(s)

    # ---- trunk: unrolled over batch, everything stays on-chip --------------
    P = feat_ref.shape[-1]
    for b in range(batch):
        # x = (mask_feat * mask).sum(dim=objects)  -> (VM_DIM, P) channel-major
        x = jnp.sum(feat_ref[b] * mask_ref[b], axis=0)
        rgb = jnp.zeros((3, P), jnp.float32)

        for li, ((_, demod, act, is_rgb),
                 (_, _, w_ref, bias_ref)) in enumerate(zip(conv_meta, conv_ws)):
            s_b = s_all[li][b:b + 1, :]                          # (1, Cin)
            wmod = w_ref[...] * s_b                              # (Cout, Cin)
            if demod:
                # demod[o] = rsqrt(sum_i wmod[o,i]^2 + 1e-8)  (VPU/XLU, no 2nd matmul)
                d = jax.lax.rsqrt(
                    jnp.sum(wmod * wmod, axis=1, keepdims=True) + 1e-8)
                wmod = wmod * d
            out = jnp.dot(wmod, x, preferred_element_type=jnp.float32)
            out = out + bias_ref[...]                            # (Cout, 1) bcast
            if act:
                out = _lrelu(out)
            if is_rgb:
                rgb = rgb + out                                  # skip accumulation
            else:
                x = out

        x_out_ref[b] = x
        rgb_out_ref[b] = rgb


# ----------------------------------------------------------------------------
# Deterministic parameter init (mirrors the PyTorch __init__ shapes/scales)
# ----------------------------------------------------------------------------
def init_params(key):
    keys = iter(jax.random.split(key, 64))

    def nk():
        return next(keys)

    def eqlin_params(din, dout, lr_mul, bias_init):
        # EqualLinear: W_param = randn(out,in)/lr_mul, eff W = W_param*(1/sqrt(in))*lr_mul
        #            = randn/sqrt(in); eff bias = bias_param(=bias_init)*lr_mul.
        w = jax.random.normal(nk(), (din, dout), jnp.float32) / math.sqrt(din)
        b = jnp.full((1, dout), bias_init * lr_mul, jnp.float32)
        return w, b

    def modconv_params(cin, cout):
        mod_w, mod_b = eqlin_params(VM_DIM, cin, 1.0, 1.0)        # bias_init=1
        w = jax.random.normal(nk(), (cout, cin), jnp.float32)     # (C_out, C_in)
        return dict(mod_w=mod_w, mod_b=mod_b, w=w,
                    scale=1.0 / math.sqrt(cin))                   # k=1 -> 1/sqrt(C_in)

    params = {}
    params["style"] = [eqlin_params(LTNT, LTNT, 0.01, 0.0) for _ in range(N_MLP)]

    coaffine = [eqlin_params(VM_DIM + LTNT, VM_DIM, 0.01, 0.0)]
    for _ in range(N_COAFFIN - 1):
        coaffine.append(eqlin_params(VM_DIM, VM_DIM, 0.01, 0.0))
    params["coaffine"] = coaffine

    c0 = CHANNELS[0]
    conv1 = modconv_params(VM_DIM, c0)
    conv1["bias"] = jnp.zeros((c0, 1), jnp.float32)               # FusedLeakyReLU bias
    params["conv1"] = conv1

    linears, to_rgbs = [], []
    in_ch = c0
    for i in range(N_INTERMEDIATE):
        out_ch = CHANNELS[i]
        for cin in (in_ch, out_ch):
            lyr = modconv_params(cin, out_ch)
            lyr["bias"] = jnp.zeros((out_ch, 1), jnp.float32)
            linears.append(lyr)
        rgb = modconv_params(out_ch, 3)
        rgb["bias"] = jnp.zeros((3, 1), jnp.float32)              # ToRGB output bias
        to_rgbs.append(rgb)
        in_ch = out_ch
    params["linears"] = linears
    params["to_rgbs"] = to_rgbs
    return params


# ----------------------------------------------------------------------------
# Wrapper: one pallas_call, NCHW <-> (C, P) via plain reshapes (no transposes)
# ----------------------------------------------------------------------------
def _build_conv_sequence(params):
    # execution order: conv1, [lin, lin, to_rgb] * N_INTERMEDIATE
    seq = [(params["conv1"], True, True, False)]
    for i in range(N_INTERMEDIATE):
        for j in range(TO_RGB_STRIDE):
            seq.append((params["linears"][i * TO_RGB_STRIDE + j], True, True, False))
        seq.append((params["to_rgbs"][i], False, False, True))
    return seq


def cips_skip_forward(params, mask, v_code, mask_feat, latent):
    """
    mask:      (B, n_o, 1, H, W)
    v_code:    (B, n_o, vm_dim)
    mask_feat: (B, n_o, vm_dim, H, W)
    latent:    (B, ltnt_size)
    Returns (x, rgb, latent') with x, rgb in NCHW (return_rgb/return_latents=True).
    """
    B, n_o, _, H, W = mask.shape
    P = H * W

    # NCHW is already channel-major; flattening H,W -> P is a plain reshape.
    feat = mask_feat.reshape(B, n_o, VM_DIM, P)
    msk = mask.reshape(B, n_o, 1, P)

    seq = _build_conv_sequence(params)
    conv_meta = tuple((p["scale"], demod, act, is_rgb)
                      for p, demod, act, is_rgb in seq)

    inputs = [feat, msk, v_code, latent]
    for w, b in params["style"]:
        inputs += [w, b]
    for w, b in params["coaffine"]:
        inputs += [w, b]
    for p, _, _, _ in seq:
        inputs += [p["mod_w"], p["mod_b"], p["w"], p["bias"]]

    c_last = CHANNELS[N_INTERMEDIATE - 1]
    kernel = functools.partial(
        _fused_cips_kernel,
        n_style=len(params["style"]),
        n_coaff=len(params["coaffine"]),
        conv_meta=conv_meta,
        batch=B)

    x_out, rgb_out, lat_out = pl.pallas_call(
        kernel,
        out_shape=(
            jax.ShapeDtypeStruct((B, c_last, P), jnp.float32),
            jax.ShapeDtypeStruct((B, 3, P), jnp.float32),
            jax.ShapeDtypeStruct((B, VM_DIM), jnp.float32),
        ),
        in_specs=[pl.BlockSpec(memory_space=pltpu.MemorySpace.VMEM)] * len(inputs),
        out_specs=(
            pl.BlockSpec(memory_space=pltpu.MemorySpace.VMEM),
            pl.BlockSpec(memory_space=pltpu.MemorySpace.VMEM),
            pl.BlockSpec(memory_space=pltpu.MemorySpace.VMEM),
        ),
    )(*inputs)

    x_nchw = x_out.reshape(B, c_last, H, W)
    rgb_nchw = rgb_out.reshape(B, 3, H, W)
    return x_nchw, rgb_nchw, lat_out


# ----------------------------------------------------------------------------
# Pure-JAX reference (NCHW, mirrors the PyTorch forward) for verification
# ----------------------------------------------------------------------------
def _ref_forward(params, mask, v_code, mask_feat, latent):
    hi = jax.lax.Precision.HIGHEST

    def eqlin(x, w, b, act):
        y = jnp.dot(x, w, precision=hi) + b
        if act:
            y = jnp.where(y >= 0.0, y, LRELU_SLOPE * y) * LRELU_SCALE
        return y

    lat = latent * jax.lax.rsqrt(
        jnp.mean(latent * latent, axis=1, keepdims=True) + 1e-8)
    for w, b in params["style"]:
        lat = eqlin(lat, w, b, True)
    lat = jnp.concatenate([v_code.mean(axis=1), lat], axis=-1)
    for w, b in params["coaffine"]:
        lat = eqlin(lat, w, b, True)

    x = (mask_feat * mask).sum(axis=1)                           # (B, C, H, W)

    def mod_conv(x, lat, p, demod, act):
        s = eqlin(lat, p["mod_w"], p["mod_b"], False)            # (B, C_in)
        w = p["w"]                                               # (C_out, C_in)
        wmod = p["scale"] * w[None] * s[:, None, :]              # (B, C_out, C_in)
        if demod:
            d = jax.lax.rsqrt(jnp.sum(wmod * wmod, axis=2) + 1e-8)
            wmod = wmod * d[:, :, None]
        out = jnp.einsum("boi,bihw->bohw", wmod, x, precision=hi)
        out = out + p["bias"].reshape(1, -1, 1, 1)
        if act:
            out = jnp.where(out >= 0.0, out, LRELU_SLOPE * out) * LRELU_SCALE
        return out

    x = mod_conv(x, lat, params["conv1"], True, True)
    rgb = 0.0
    for i in range(N_INTERMEDIATE):
        for j in range(TO_RGB_STRIDE):
            x = mod_conv(x, lat, params["linears"][i * TO_RGB_STRIDE + j], True, True)
        rgb = rgb + mod_conv(x, lat, params["to_rgbs"][i], False, False)
    return x, rgb, lat


# ----------------------------------------------------------------------------
if __name__ == "__main__":
    root = jax.random.PRNGKey(0)
    k_par, k_mask, k_v, k_feat, k_lat = jax.random.split(root, 5)

    params = init_params(k_par)

    B, n_o, H, W = 2, 3, SIZE, SIZE
    mask = jax.random.uniform(k_mask, (B, n_o, 1, H, W), jnp.float32)
    v_code = jax.random.normal(k_v, (B, n_o, VM_DIM), jnp.float32)
    mask_feat = jax.random.normal(k_feat, (B, n_o, VM_DIM, H, W), jnp.float32)
    latent = jax.random.normal(k_lat, (B, LTNT), jnp.float32)

    x_out, rgb_out, lat_out = cips_skip_forward(params, mask, v_code, mask_feat, latent)
    jax.block_until_ready((x_out, rgb_out, lat_out))

    # sanity check against pure-JAX reference
    x_ref, rgb_ref, lat_ref = _ref_forward(params, mask, v_code, mask_feat, latent)
    assert x_out.shape == (B, CHANNELS[N_INTERMEDIATE - 1], H, W)
    assert rgb_out.shape == (B, 3, H, W)
    assert lat_out.shape == (B, VM_DIM)
    assert jnp.allclose(lat_out, lat_ref, atol=2e-3, rtol=2e-3)
    assert jnp.allclose(x_out, x_ref, atol=2e-3, rtol=2e-3)
    assert jnp.allclose(rgb_out, rgb_ref, atol=2e-3, rtol=2e-3)

    print("KERNEL_OK")
</pallas_src>

<mosaic_0001>
module attributes {stable_mosaic.version = 11 : i64} {
  func.func @_fused_cips_kernel(%arg0: memref<2x3x16x256xf32, #tpu.memory_space<vmem>>, %arg1: memref<2x3x1x256xf32, #tpu.memory_space<vmem>>, %arg2: memref<2x3x16xf32, #tpu.memory_space<vmem>>, %arg3: memref<2x32xf32, #tpu.memory_space<vmem>>, %arg4: memref<32x32xf32, #tpu.memory_space<vmem>>, %arg5: memref<1x32xf32, #tpu.memory_space<vmem>>, %arg6: memref<32x32xf32, #tpu.memory_space<vmem>>, %arg7: memref<1x32xf32, #tpu.memory_space<vmem>>, %arg8: memref<48x16xf32, #tpu.memory_space<vmem>>, %arg9: memref<1x16xf32, #tpu.memory_space<vmem>>, %arg10: memref<16x16xf32, #tpu.memory_space<vmem>>, %arg11: memref<1x16xf32, #tpu.memory_space<vmem>>, %arg12: memref<16x16xf32, #tpu.memory_space<vmem>>, %arg13: memref<1x16xf32, #tpu.memory_space<vmem>>, %arg14: memref<32x16xf32, #tpu.memory_space<vmem>>, %arg15: memref<32x1xf32, #tpu.memory_space<vmem>>, %arg16: memref<16x32xf32, #tpu.memory_space<vmem>>, %arg17: memref<1x32xf32, #tpu.memory_space<vmem>>, %arg18: memref<32x32xf32, #tpu.memory_space<vmem>>, %arg19: memref<32x1xf32, #tpu.memory_space<vmem>>, %arg20: memref<16x32xf32, #tpu.memory_space<vmem>>, %arg21: memref<1x32xf32, #tpu.memory_space<vmem>>, %arg22: memref<32x32xf32, #tpu.memory_space<vmem>>, %arg23: memref<32x1xf32, #tpu.memory_space<vmem>>, %arg24: memref<16x32xf32, #tpu.memory_space<vmem>>, %arg25: memref<1x32xf32, #tpu.memory_space<vmem>>, %arg26: memref<3x32xf32, #tpu.memory_space<vmem>>, %arg27: memref<3x1xf32, #tpu.memory_space<vmem>>, %arg28: memref<16x32xf32, #tpu.memory_space<vmem>>, %arg29: memref<1x32xf32, #tpu.memory_space<vmem>>, %arg30: memref<32x32xf32, #tpu.memory_space<vmem>>, %arg31: memref<32x1xf32, #tpu.memory_space<vmem>>, %arg32: memref<16x32xf32, #tpu.memory_space<vmem>>, %arg33: memref<1x32xf32, #tpu.memory_space<vmem>>, %arg34: memref<32x32xf32, #tpu.memory_space<vmem>>, %arg35: memref<32x1xf32, #tpu.memory_space<vmem>>, %arg36: memref<16x32xf32, #tpu.memory_space<vmem>>, %arg37: memref<1x32xf32, #tpu.memory_space<vmem>>, %arg38: memref<3x32xf32, #tpu.memory_space<vmem>>, %arg39: memref<3x1xf32, #tpu.memory_space<vmem>>, %arg40: memref<16x32xf32, #tpu.memory_space<vmem>>, %arg41: memref<1x32xf32, #tpu.memory_space<vmem>>, %arg42: memref<16x32xf32, #tpu.memory_space<vmem>>, %arg43: memref<16x1xf32, #tpu.memory_space<vmem>>, %arg44: memref<16x16xf32, #tpu.memory_space<vmem>>, %arg45: memref<1x16xf32, #tpu.memory_space<vmem>>, %arg46: memref<16x16xf32, #tpu.memory_space<vmem>>, %arg47: memref<16x1xf32, #tpu.memory_space<vmem>>, %arg48: memref<16x16xf32, #tpu.memory_space<vmem>>, %arg49: memref<1x16xf32, #tpu.memory_space<vmem>>, %arg50: memref<3x16xf32, #tpu.memory_space<vmem>>, %arg51: memref<3x1xf32, #tpu.memory_space<vmem>>, %arg52: memref<2x16x256xf32, #tpu.memory_space<vmem>>, %arg53: memref<2x3x256xf32, #tpu.memory_space<vmem>>, %arg54: memref<2x16xf32, #tpu.memory_space<vmem>>) attributes {dimension_semantics = [], scalar_prefetch = 0 : i64, scratch_operands = 0 : i64, tpu.core_type = #tpu.core_type<tc>} {
    %c0 = arith.constant 0 : index
    %c0_0 = arith.constant 0 : index
    %0 = vector.load %arg3[%c0, %c0_0] : memref<2x32xf32, #tpu.memory_space<vmem>>, vector<2x32xf32>
    %1 = arith.mulf %0, %0 : vector<2x32xf32>
    %cst = arith.constant dense<0.000000e+00> : vector<2xf32>
    %2 = vector.multi_reduction <add>, %1, %cst [1] : vector<2x32xf32> to vector<2xf32>
    %3 = vector.shape_cast %2 : vector<2xf32> to vector<2x1xf32>
    %cst_1 = arith.constant 3.200000e+01 : f32
    %4 = vector.broadcast %cst_1 : f32 to vector<2x1xf32>
    %5 = arith.divf %3, %4 : vector<2x1xf32>
    %cst_2 = arith.constant 9.99999993E-9 : f32
    %6 = vector.broadcast %cst_2 : f32 to vector<2x1xf32>
    %7 = arith.addf %5, %6 : vector<2x1xf32>
    %8 = math.rsqrt %7 : vector<2x1xf32>
    %9 = vector.broadcast %8 : vector<2x1xf32> to vector<2x32xf32>
    %10 = arith.mulf %0, %9 : vector<2x32xf32>
    %c0_3 = arith.constant 0 : index
    %c0_4 = arith.constant 0 : index
    %11 = vector.load %arg4[%c0_3, %c0_4] : memref<32x32xf32, #tpu.memory_space<vmem>>, vector<32x32xf32>
    %cst_5 = arith.constant dense<0.000000e+00> : vector<2x32xf32>
    %12 = tpu.matmul %10, %11, %cst_5 {dimension_numbers = #tpu.dot_dimension_numbers<[1], [0], [0], [1], [0, 0, 1, 1], [], []>} : vector<2x32xf32>, vector<32x32xf32>, vector<2x32xf32> -> vector<2x32xf32>
    %c0_6 = arith.constant 0 : index
    %c0_7 = arith.constant 0 : index
    %13 = vector.load %arg5[%c0_6, %c0_7] : memref<1x32xf32, #tpu.memory_space<vmem>>, vector<1x32xf32>
    %14 = vector.broadcast %13 : vector<1x32xf32> to vector<2x32xf32>
    %15 = arith.addf %12, %14 : vector<2x32xf32>
    %cst_8 = arith.constant 0.000000e+00 : f32
    %16 = vector.broadcast %cst_8 : f32 to vector<2x32xf32>
    %17 = arith.cmpf oge, %15, %16 : vector<2x32xf32>
    %cst_9 = arith.constant 2.000000e-01 : f32
    %18 = vector.broadcast %cst_9 : f32 to vector<2x32xf32>
    %19 = arith.mulf %18, %15 : vector<2x32xf32>
    %20 = arith.select %17, %15, %19 : vector<2x32xi1>, vector<2x32xf32>
    %cst_10 = arith.constant 1.41421354 : f32
    %21 = vector.broadcast %cst_10 : f32 to vector<2x32xf32>
    %22 = arith.mulf %20, %21 : vector<2x32xf32>
    %c0_11 = arith.constant 0 : index
    %c0_12 = arith.constant 0 : index
    %23 = vector.load %arg6[%c0_11, %c0_12] : memref<32x32xf32, #tpu.memory_space<vmem>>, vector<32x32xf32>
    %cst_13 = arith.constant dense<0.000000e+00> : vector<2x32xf32>
    %24 = tpu.matmul %22, %23, %cst_13 {dimension_numbers = #tpu.dot_dimension_numbers<[1], [0], [0], [1], [0, 0, 1, 1], [], []>} : vector<2x32xf32>, vector<32x32xf32>, vector<2x32xf32> -> vector<2x32xf32>
    %c0_14 = arith.constant 0 : index
    %c0_15 = arith.constant 0 : index
    %25 = vector.load %arg7[%c0_14, %c0_15] : memref<1x32xf32, #tpu.memory_space<vmem>>, vector<1x32xf32>
    %26 = vector.broadcast %25 : vector<1x32xf32> to vector<2x32xf32>
    %27 = arith.addf %24, %26 : vector<2x32xf32>
    %cst_16 = arith.constant 0.000000e+00 : f32
    %28 = vector.broadcast %cst_16 : f32 to vector<2x32xf32>
    %29 = arith.cmpf oge, %27, %28 : vector<2x32xf32>
    %cst_17 = arith.constant 2.000000e-01 : f32
    %30 = vector.broadcast %cst_17 : f32 to vector<2x32xf32>
    %31 = arith.mulf %30, %27 : vector<2x32xf32>
    %32 = arith.select %29, %27, %31 : vector<2x32xi1>, vector<2x32xf32>
    %cst_18 = arith.constant 1.41421354 : f32
    %33 = vector.broadcast %cst_18 : f32 to vector<2x32xf32>
    %34 = arith.mulf %32, %33 : vector<2x32xf32>
    %c0_19 = arith.constant 0 : index
    %c0_20 = arith.constant 0 : index
    %c0_21 = arith.constant 0 : index
    %35 = vector.load %arg2[%c0_19, %c0_20, %c0_21] : memref<2x3x16xf32, #tpu.memory_space<vmem>>, vector<2x3x16xf32>
    %cst_22 = arith.constant dense<0.000000e+00> : vector<2x16xf32>
    %36 = vector.multi_reduction <add>, %35, %cst_22 [1] : vector<2x3x16xf32> to vector<2x16xf32>
    %cst_23 = arith.constant 3.000000e+00 : f32
    %37 = vector.broadcast %cst_23 : f32 to vector<2x16xf32>
    %38 = arith.divf %36, %37 : vector<2x16xf32>
    %c0_24 = arith.constant 0 : index
    %c0_25 = arith.constant 0 : index
    %39 = vector.load %arg8[%c0_24, %c0_25] : memref<48x16xf32, #tpu.memory_space<vmem>>, vector<16x16xf32>
    %cst_26 = arith.constant dense<0.000000e+00> : vector<2x16xf32>
    %40 = tpu.matmul %38, %39, %cst_26 {dimension_numbers = #tpu.dot_dimension_numbers<[1], [0], [0], [1], [0, 0, 1, 1], [], []>} : vector<2x16xf32>, vector<16x16xf32>, vector<2x16xf32> -> vector<2x16xf32>
    %c16 = arith.constant 16 : index
    %c0_27 = arith.constant 0 : index
    %41 = vector.load %arg8[%c16, %c0_27] : memref<48x16xf32, #tpu.memory_space<vmem>>, vector<32x16xf32>
    %cst_28 = arith.constant dense<0.000000e+00> : vector<2x16xf32>
    %42 = tpu.matmul %34, %41, %cst_28 {dimension_numbers = #tpu.dot_dimension_numbers<[1], [0], [0], [1], [0, 0, 1, 1], [], []>} : vector<2x32xf32>, vector<32x16xf32>, vector<2x16xf32> -> vector<2x16xf32>
    %43 = arith.addf %40, %42 : vector<2x16xf32>
    %c0_29 = arith.constant 0 : index
    %c0_30 = arith.constant 0 : index
    %44 = vector.load %arg9[%c0_29, %c0_30] : memref<1x16xf32, #tpu.memory_space<vmem>>, vector<1x16xf32>
    %45 = vector.broadcast %44 : vector<1x16xf32> to vector<2x16xf32>
    %46 = arith.addf %43, %45 : vector<2x16xf32>
    %cst_31 = arith.constant 0.000000e+00 : f32
    %47 = vector.broadcast %cst_31 : f32 to vector<2x16xf32>
    %48 = arith.cmpf oge, %46, %47 : vector<2x16xf32>
    %cst_32 = arith.constant 2.000000e-01 : f32
    %49 = vector.broadcast %cst_32 : f32 to vector<2x16xf32>
    %50 = arith.mulf %49, %46 : vector<2x16xf32>
    %51 = arith.select %48, %46, %50 : vector<2x16xi1>, vector<2x16xf32>
    %cst_33 = arith.constant 1.41421354 : f32
    %52 = vector.broadcast %cst_33 : f32 to vector<2x16xf32>
    %53 = arith.mulf %51, %52 : vector<2x16xf32>
    %c0_34 = arith.constant 0 : index
    %c0_35 = arith.constant 0 : index
    %54 = vector.load %arg10[%c0_34, %c0_35] : memref<16x16xf32, #tpu.memory_space<vmem>>, vector<16x16xf32>
    %cst_36 = arith.constant dense<0.000000e+00> : vector<2x16xf32>
    %55 = tpu.matmul %53, %54, %cst_36 {dimension_numbers = #tpu.dot_dimension_numbers<[1], [0], [0], [1], [0, 0, 1, 1], [], []>} : vector<2x16xf32>, vector<16x16xf32>, vector<2x16xf32> -> vector<2x16xf32>
    %c0_37 = arith.constant 0 : index
    %c0_38 = arith.constant 0 : index
    %56 = vector.load %arg11[%c0_37, %c0_38] : memref<1x16xf32, #tpu.memory_space<vmem>>, vector<1x16xf32>
    %57 = vector.broadcast %56 : vector<1x16xf32> to vector<2x16xf32>
    %58 = arith.addf %55, %57 : vector<2x16xf32>
    %cst_39 = arith.constant 0.000000e+00 : f32
    %59 = vector.broadcast %cst_39 : f32 to vector<2x16xf32>
    %60 = arith.cmpf oge, %58, %59 : vector<2x16xf32>
    %cst_40 = arith.constant 2.000000e-01 : f32
    %61 = vector.broadcast %cst_40 : f32 to vector<2x16xf32>
    %62 = arith.mulf %61, %58 : vector<2x16xf32>
    %63 = arith.select %60, %58, %62 : vector<2x16xi1>, vector<2x16xf32>
    %cst_41 = arith.constant 1.41421354 : f32
    %64 = vector.broadcast %cst_41 : f32 to vector<2x16xf32>
    %65 = arith.mulf %63, %64 : vector<2x16xf32>
    %c0_42 = arith.constant 0 : index
    %c0_43 = arith.constant 0 : index
    %66 = vector.load %arg54[%c0_42, %c0_43] : memref<2x16xf32, #tpu.memory_space<vmem>>, vector<2x16xf32>
    tpu.vector_store %arg54[%c0_42, %c0_43], %65 {strides = array<i32>} : memref<2x16xf32, #tpu.memory_space<vmem>>, vector<2x16xf32>,
    %c0_44 = arith.constant 0 : index
    %c0_45 = arith.constant 0 : index
    %67 = vector.load %arg12[%c0_44, %c0_45] : memref<16x16xf32, #tpu.memory_space<vmem>>, vector<16x16xf32>
    %cst_46 = arith.constant dense<0.000000e+00> : vector<2x16xf32>
    %68 = tpu.matmul %65, %67, %cst_46 {dimension_numbers = #tpu.dot_dimension_numbers<[1], [0], [0], [1], [0, 0, 1, 1], [], []>} : vector<2x16xf32>, vector<16x16xf32>, vector<2x16xf32> -> vector<2x16xf32>
    %c0_47 = arith.constant 0 : index
    %c0_48 = arith.constant 0 : index
    %69 = vector.load %arg13[%c0_47, %c0_48] : memref<1x16xf32, #tpu.memory_space<vmem>>, vector<1x16xf32>
    %70 = vector.broadcast %69 : vector<1x16xf32> to vector<2x16xf32>
    %71 = arith.addf %68, %70 : vector<2x16xf32>
    %cst_49 = arith.constant 2.500000e-01 : f32
    %72 = vector.broadcast %cst_49 : f32 to vector<2x16xf32>
    %73 = arith.mulf %71, %72 : vector<2x16xf32>
    %c0_50 = arith.constant 0 : index
    %c0_51 = arith.constant 0 : index
    %74 = vector.load %arg16[%c0_50, %c0_51] : memref<16x32xf32, #tpu.memory_space<vmem>>, vector<16x32xf32>
    %cst_52 = arith.constant dense<0.000000e+00> : vector<2x32xf32>
    %75 = tpu.matmul %65, %74, %cst_52 {dimension_numbers = #tpu.dot_dimension_numbers<[1], [0], [0], [1], [0, 0, 1, 1], [], []>} : vector<2x16xf32>, vector<16x32xf32>, vector<2x32xf32> -> vector<2x32xf32>
    %c0_53 = arith.constant 0 : index
    %c0_54 = arith.constant 0 : index
    %76 = vector.load %arg17[%c0_53, %c0_54] : memref<1x32xf32, #tpu.memory_space<vmem>>, vector<1x32xf32>
    %77 = vector.broadcast %76 : vector<1x32xf32> to vector<2x32xf32>
    %78 = arith.addf %75, %77 : vector<2x32xf32>
    %cst_55 = arith.constant 0.176776692 : f32
    %79 = vector.broadcast %cst_55 : f32 to vector<2x32xf32>
    %80 = arith.mulf %78, %79 : vector<2x32xf32>
    %c0_56 = arith.constant 0 : index
    %c0_57 = arith.constant 0 : index
    %81 = vector.load %arg20[%c0_56, %c0_57] : memref<16x32xf32, #tpu.memory_space<vmem>>, vector<16x32xf32>
    %cst_58 = arith.constant dense<0.000000e+00> : vector<2x32xf32>
    %82 = tpu.matmul %65, %81, %cst_58 {dimension_numbers = #tpu.dot_dimension_numbers<[1], [0], [0], [1], [0, 0, 1, 1], [], []>} : vector<2x16xf32>, vector<16x32xf32>, vector<2x32xf32> -> vector<2x32xf32>
    %c0_59 = arith.constant 0 : index
    %c0_60 = arith.constant 0 : index
    %83 = vector.load %arg21[%c0_59, %c0_60] : memref<1x32xf32, #tpu.memory_space<vmem>>, vector<1x32xf32>
    %84 = vector.broadcast %83 : vector<1x32xf32> to vector<2x32xf32>
    %85 = arith.addf %82, %84 : vector<2x32xf32>
    %cst_61 = arith.constant 0.176776692 : f32
    %86 = vector.broadcast %cst_61 : f32 to vector<2x32xf32>
    %87 = arith.mulf %85, %86 : vector<2x32xf32>
    %c0_62 = arith.constant 0 : index
    %c0_63 = arith.constant 0 : index
    %88 = vector.load %arg24[%c0_62, %c0_63] : memref<16x32xf32, #tpu.memory_space<vmem>>, vector<16x32xf32>
    %cst_64 = arith.constant dense<0.000000e+00> : vector<2x32xf32>
    %89 = tpu.matmul %65, %88, %cst_64 {dimension_numbers = #tpu.dot_dimension_numbers<[1], [0], [0], [1], [0, 0, 1, 1], [], []>} : vector<2x16xf32>, vector<16x32xf32>, vector<2x32xf32> -> vector<2x32xf32>
    %c0_65 = arith.constant 0 : index
    %c0_66 = arith.constant 0 : index
    %90 = vector.load %arg25[%c0_65, %c0_66] : memref<1x32xf32, #tpu.memory_space<vmem>>, vector<1x32xf32>
    %91 = vector.broadcast %90 : vector<1x32xf32> to vector<2x32xf32>
    %92 = arith.addf %89, %91 : vector<2x32xf32>
    %cst_67 = arith.constant 0.176776692 : f32
    %93 = vector.broadcast %cst_67 : f32 to vector<2x32xf32>
    %94 = arith.mulf %92, %93 : vector<2x32xf32>
    %c0_68 = arith.constant 0 : index
    %c0_69 = arith.constant 0 : index
    %95 = vector.load %arg28[%c0_68, %c0_69] : memref<16x32xf32, #tpu.memory_space<vmem>>, vector<16x32xf32>
    %cst_70 = arith.constant dense<0.000000e+00> : vector<2x32xf32>
    %96 = tpu.matmul %65, %95, %cst_70 {dimension_numbers = #tpu.dot_dimension_numbers<[1], [0], [0], [1], [0, 0, 1, 1], [], []>} : vector<2x16xf32>, vector<16x32xf32>, vector<2x32xf32> -> vector<2x32xf32>
    %c0_71 = arith.constant 0 : index
    %c0_72 = arith.constant 0 : index
    %97 = vector.load %arg29[%c0_71, %c0_72] : memref<1x32xf32, #tpu.memory_space<vmem>>, vector<1x32xf32>
    %98 = vector.broadcast %97 : vector<1x32xf32> to vector<2x32xf32>
    %99 = arith.addf %96, %98 : vector<2x32xf32>
    %cst_73 = arith.constant 0.176776692 : f32
    %100 = vector.broadcast %cst_73 : f32 to vector<2x32xf32>
    %101 = arith.mulf %99, %100 : vector<2x32xf32>
    %c0_74 = arith.constant 0 : index
    %c0_75 = arith.constant 0 : index
    %102 = vector.load %arg32[%c0_74, %c0_75] : memref<16x32xf32, #tpu.memory_space<vmem>>, vector<16x32xf32>
    %cst_76 = arith.constant dense<0.000000e+00> : vector<2x32xf32>
    %103 = tpu.matmul %65, %102, %cst_76 {dimension_numbers = #tpu.dot_dimension_numbers<[1], [0], [0], [1], [0, 0, 1, 1], [], []>} : vector<2x16xf32>, vector<16x32xf32>, vector<2x32xf32> -> vector<2x32xf32>
    %c0_77 = arith.constant 0 : index
    %c0_78 = arith.constant 0 : index
    %104 = vector.load %arg33[%c0_77, %c0_78] : memref<1x32xf32, #tpu.memory_space<vmem>>, vector<1x32xf32>
    %105 = vector.broadcast %104 : vector<1x32xf32> to vector<2x32xf32>
    %106 = arith.addf %103, %105 : vector<2x32xf32>
    %cst_79 = arith.constant 0.176776692 : f32
    %107 = vector.broadcast %cst_79 : f32 to vector<2x32xf32>
    %108 = arith.mulf %106, %107 : vector<2x32xf32>
    %c0_80 = arith.constant 0 : index
    %c0_81 = arith.constant 0 : index
    %109 = vector.load %arg36[%c0_80, %c0_81] : memref<16x32xf32, #tpu.memory_space<vmem>>, vector<16x32xf32>
    %cst_82 = arith.constant dense<0.000000e+00> : vector<2x32xf32>
    %110 = tpu.matmul %65, %109, %cst_82 {dimension_numbers = #tpu.dot_dimension_numbers<[1], [0], [0], [1], [0, 0, 1, 1], [], []>} : vector<2x16xf32>, vector<16x32xf32>, vector<2x32xf32> -> vector<2x32xf32>
    %c0_83 = arith.constant 0 : index
    %c0_84 = arith.constant 0 : index
    %111 = vector.load %arg37[%c0_83, %c0_84] : memref<1x32xf32, #tpu.memory_space<vmem>>, vector<1x32xf32>
    %112 = vector.broadcast %111 : vector<1x32xf32> to vector<2x32xf32>
    %113 = arith.addf %110, %112 : vector<2x32xf32>
    %cst_85 = arith.constant 0.176776692 : f32
    %114 = vector.broadcast %cst_85 : f32 to vector<2x32xf32>
    %115 = arith.mulf %113, %114 : vector<2x32xf32>
    %c0_86 = arith.constant 0 : index
    %c0_87 = arith.constant 0 : index
    %116 = vector.load %arg40[%c0_86, %c0_87] : memref<16x32xf32, #tpu.memory_space<vmem>>, vector<16x32xf32>
    %cst_88 = arith.constant dense<0.000000e+00> : vector<2x32xf32>
    %117 = tpu.matmul %65, %116, %cst_88 {dimension_numbers = #tpu.dot_dimension_numbers<[1], [0], [0], [1], [0, 0, 1, 1], [], []>} : vector<2x16xf32>, vector<16x32xf32>, vector<2x32xf32> -> vector<2x32xf32>
    %c0_89 = arith.constant 0 : index
    %c0_90 = arith.constant 0 : index
    %118 = vector.load %arg41[%c0_89, %c0_90] : memref<1x32xf32, #tpu.memory_space<vmem>>, vector<1x32xf32>
    %119 = vector.broadcast %118 : vector<1x32xf32> to vector<2x32xf32>
    %120 = arith.addf %117, %119 : vector<2x32xf32>
    %cst_91 = arith.constant 0.176776692 : f32
    %121 = vector.broadcast %cst_91 : f32 to vector<2x32xf32>
    %122 = arith.mulf %120, %121 : vector<2x32xf32>
    %c0_92 = arith.constant 0 : index
    %c0_93 = arith.constant 0 : index
    %123 = vector.load %arg44[%c0_92, %c0_93] : memref<16x16xf32, #tpu.memory_space<vmem>>, vector<16x16xf32>
    %cst_94 = arith.constant dense<0.000000e+00> : vector<2x16xf32>
    %124 = tpu.matmul %65, %123, %cst_94 {dimension_numbers = #tpu.dot_dimension_numbers<[1], [0], [0], [1], [0, 0, 1, 1], [], []>} : vector<2x16xf32>, vector<16x16xf32>, vector<2x16xf32> -> vector<2x16xf32>
    %c0_95 = arith.constant 0 : index
    %c0_96 = arith.constant 0 : index
    %125 = vector.load %arg45[%c0_95, %c0_96] : memref<1x16xf32, #tpu.memory_space<vmem>>, vector<1x16xf32>
    %126 = vector.broadcast %125 : vector<1x16xf32> to vector<2x16xf32>
    %127 = arith.addf %124, %126 : vector<2x16xf32>
    %cst_97 = arith.constant 2.500000e-01 : f32
    %128 = vector.broadcast %cst_97 : f32 to vector<2x16xf32>
    %129 = arith.mulf %127, %128 : vector<2x16xf32>
    %c0_98 = arith.constant 0 : index
    %c0_99 = arith.constant 0 : index
    %130 = vector.load %arg48[%c0_98, %c0_99] : memref<16x16xf32, #tpu.memory_space<vmem>>, vector<16x16xf32>
    %cst_100 = arith.constant dense<0.000000e+00> : vector<2x16xf32>
    %131 = tpu.matmul %65, %130, %cst_100 {dimension_numbers = #tpu.dot_dimension_numbers<[1], [0], [0], [1], [0, 0, 1, 1], [], []>} : vector<2x16xf32>, vector<16x16xf32>, vector<2x16xf32> -> vector<2x16xf32>
    %c0_101 = arith.constant 0 : index
    %c0_102 = arith.constant 0 : index
    %132 = vector.load %arg49[%c0_101, %c0_102] : memref<1x16xf32, #tpu.memory_space<vmem>>, vector<1x16xf32>
    %133 = vector.broadcast %132 : vector<1x16xf32> to vector<2x16xf32>
    %134 = arith.addf %131, %133 : vector<2x16xf32>
    %cst_103 = arith.constant 2.500000e-01 : f32
    %135 = vector.broadcast %cst_103 : f32 to vector<2x16xf32>
    %136 = arith.mulf %134, %135 : vector<2x16xf32>
    %c0_104 = arith.constant 0 : index
    %c0_105 = arith.constant 0 : index
    %c0_106 = arith.constant 0 : index
    %c0_107 = arith.constant 0 : index
    %137 = vector.load %arg0[%c0_104, %c0_105, %c0_106, %c0_107] : memref<2x3x16x256xf32, #tpu.memory_space<vmem>>, vector<1x3x16x256xf32>
    %138 = vector.shape_cast %137 : vector<1x3x16x256xf32> to vector<3x16x256xf32>
    %c0_108 = arith.constant 0 : index
    %c0_109 = arith.constant 0 : index
    %c0_110 = arith.constant 0 : index
    %c0_111 = arith.constant 0 : index
    %139 = vector.load %arg1[%c0_108, %c0_109, %c0_110, %c0_111] : memref<2x3x1x256xf32, #tpu.memory_space<vmem>>, vector<1x3x1x256xf32>
    %140 = vector.shape_cast %139 : vector<1x3x1x256xf32> to vector<3x1x256xf32>
    %141 = vector.broadcast %140 : vector<3x1x256xf32> to vector<3x16x256xf32>
    %142 = arith.mulf %138, %141 : vector<3x16x256xf32>
    %cst_112 = arith.constant dense<0.000000e+00> : vector<16x256xf32>
    %143 = vector.multi_reduction <add>, %142, %cst_112 [0] : vector<3x16x256xf32> to vector<16x256xf32>
    %cst_113 = arith.constant 0.000000e+00 : f32
    %144 = vector.broadcast %cst_113 : f32 to vector<3x256xf32>
    %145 = vector.extract_strided_slice %73 {offsets = [0, 0], sizes = [1, 16], strides = [1, 1]} : vector<2x16xf32> to vector<1x16xf32>
    %c0_114 = arith.constant 0 : index
    %c0_115 = arith.constant 0 : index
    %146 = vector.load %arg14[%c0_114, %c0_115] : memref<32x16xf32, #tpu.memory_space<vmem>>, vector<32x16xf32>
    %147 = vector.broadcast %145 : vector<1x16xf32> to vector<32x16xf32>
    %148 = arith.mulf %146, %147 : vector<32x16xf32>
    %149 = arith.mulf %148, %148 : vector<32x16xf32>
    %cst_116 = arith.constant dense<0.000000e+00> : vector<32xf32>
    %150 = vector.multi_reduction <add>, %149, %cst_116 [1] : vector<32x16xf32> to vector<32xf32>
    %151 = vector.shape_cast %150 : vector<32xf32> to vector<32x1xf32>
    %cst_117 = arith.constant 9.99999993E-9 : f32
    %152 = vector.broadcast %cst_117 : f32 to vector<32x1xf32>
    %153 = arith.addf %151, %152 : vector<32x1xf32>
    %154 = math.rsqrt %153 : vector<32x1xf32>
    %155 = vector.broadcast %154 : vector<32x1xf32> to vector<32x16xf32>
    %156 = arith.mulf %148, %155 : vector<32x16xf32>
    %cst_118 = arith.constant dense<0.000000e+00> : vector<32x256xf32>
    %157 = tpu.matmul %156, %143, %cst_118 {dimension_numbers = #tpu.dot_dimension_numbers<[1], [0], [0], [1], [0, 0, 1, 1], [], []>} : vector<32x16xf32>, vector<16x256xf32>, vector<32x256xf32> -> vector<32x256xf32>
    %c0_119 = arith.constant 0 : index
    %c0_120 = arith.constant 0 : index
    %158 = vector.load %arg15[%c0_119, %c0_120] : memref<32x1xf32, #tpu.memory_space<vmem>>, vector<32x1xf32>
    %159 = vector.broadcast %158 : vector<32x1xf32> to vector<32x256xf32>
    %160 = arith.addf %157, %159 : vector<32x256xf32>
    %cst_121 = arith.constant 0.000000e+00 : f32
    %161 = vector.broadcast %cst_121 : f32 to vector<32x256xf32>
    %162 = arith.cmpf oge, %160, %161 : vector<32x256xf32>
    %cst_122 = arith.constant 2.000000e-01 : f32
    %163 = vector.broadcast %cst_122 : f32 to vector<32x256xf32>
    %164 = arith.mulf %163, %160 : vector<32x256xf32>
    %165 = arith.select %162, %160, %164 : vector<32x256xi1>, vector<32x256xf32>
    %cst_123 = arith.constant 1.41421354 : f32
    %166 = vector.broadcast %cst_123 : f32 to vector<32x256xf32>
    %167 = arith.mulf %165, %166 : vector<32x256xf32>
    %168 = vector.extract_strided_slice %80 {offsets = [0, 0], sizes = [1, 32], strides = [1, 1]} : vector<2x32xf32> to vector<1x32xf32>
    %c0_124 = arith.constant 0 : index
    %c0_125 = arith.constant 0 : index
    %169 = vector.load %arg18[%c0_124, %c0_125] : memref<32x32xf32, #tpu.memory_space<vmem>>, vector<32x32xf32>
    %170 = vector.broadcast %168 : vector<1x32xf32> to vector<32x32xf32>
    %171 = arith.mulf %169, %170 : vector<32x32xf32>
    %172 = arith.mulf %171, %171 : vector<32x32xf32>
    %cst_126 = arith.constant dense<0.000000e+00> : vector<32xf32>
    %173 = vector.multi_reduction <add>, %172, %cst_126 [1] : vector<32x32xf32> to vector<32xf32>
    %174 = vector.shape_cast %173 : vector<32xf32> to vector<32x1xf32>
    %cst_127 = arith.constant 9.99999993E-9 : f32
    %175 = vector.broadcast %cst_127 : f32 to vector<32x1xf32>
    %176 = arith.addf %174, %175 : vector<32x1xf32>
    %177 = math.rsqrt %176 : vector<32x1xf32>
    %178 = vector.broadcast %177 : vector<32x1xf32> to vector<32x32xf32>
    %179 = arith.mulf %171, %178 : vector<32x32xf32>
    %cst_128 = arith.constant dense<0.000000e+00> : vector<32x256xf32>
    %180 = tpu.matmul %179, %167, %cst_128 {dimension_numbers = #tpu.dot_dimension_numbers<[1], [0], [0], [1], [0, 0, 1, 1], [], []>} : vector<32x32xf32>, vector<32x256xf32>, vector<32x256xf32> -> vector<32x256xf32>
    %c0_129 = arith.constant 0 : index
    %c0_130 = arith.constant 0 : index
    %181 = vector.load %arg19[%c0_129, %c0_130] : memref<32x1xf32, #tpu.memory_space<vmem>>, vector<32x1xf32>
    %182 = vector.broadcast %181 : vector<32x1xf32> to vector<32x256xf32>
    %183 = arith.addf %180, %182 : vector<32x256xf32>
    %cst_131 = arith.constant 0.000000e+00 : f32
    %184 = vector.broadcast %cst_131 : f32 to vector<32x256xf32>
    %185 = arith.cmpf oge, %183, %184 : vector<32x256xf32>
    %cst_132 = arith.constant 2.000000e-01 : f32
    %186 = vector.broadcast %cst_132 : f32 to vector<32x256xf32>
    %187 = arith.mulf %186, %183 : vector<32x256xf32>
    %188 = arith.select %185, %183, %187 : vector<32x256xi1>, vector<32x256xf32>
    %cst_133 = arith.constant 1.41421354 : f32
    %189 = vector.broadcast %cst_133 : f32 to vector<32x256xf32>
    %190 = arith.mulf %188, %189 : vector<32x256xf32>
    %191 = vector.extract_strided_slice %87 {offsets = [0, 0], sizes = [1, 32], strides = [1, 1]} : vector<2x32xf32> to vector<1x32xf32>
    %c0_134 = arith.constant 0 : index
    %c0_135 = arith.constant 0 : index
    %192 = vector.load %arg22[%c0_134, %c0_135] : memref<32x32xf32, #tpu.memory_space<vmem>>, vector<32x32xf32>
    %193 = vector.broadcast %191 : vector<1x32xf32> to vector<32x32xf32>
    %194 = arith.mulf %192, %193 : vector<32x32xf32>
    %195 = arith.mulf %194, %194 : vector<32x32xf32>
    %cst_136 = arith.constant dense<0.000000e+00> : vector<32xf32>
    %196 = vector.multi_reduction <add>, %195, %cst_136 [1] : vector<32x32xf32> to vector<32xf32>
    %197 = vector.shape_cast %196 : vector<32xf32> to vector<32x1xf32>
    %cst_137 = arith.constant 9.99999993E-9 : f32
    %198 = vector.broadcast %cst_137 : f32 to vector<32x1xf32>
    %199 = arith.addf %197, %198 : vector<32x1xf32>
    %200 = math.rsqrt %199 : vector<32x1xf32>
    %201 = vector.broadcast %200 : vector<32x1xf32> to vector<32x32xf32>
    %202 = arith.mulf %194, %201 : vector<32x32xf32>
    %cst_138 = arith.constant dense<0.000000e+00> : vector<32x256xf32>
    %203 = tpu.matmul %202, %190, %cst_138 {dimension_numbers = #tpu.dot_dimension_numbers<[1], [0], [0], [1], [0, 0, 1, 1], [], []>} : vector<32x32xf32>, vector<32x256xf32>, vector<32x256xf32> -> vector<32x256xf32>
    %c0_139 = arith.constant 0 : index
    %c0_140 = arith.constant 0 : index
    %204 = vector.load %arg23[%c0_139, %c0_140] : memref<32x1xf32, #tpu.memory_space<vmem>>, vector<32x1xf32>
    %205 = vector.broadcast %204 : vector<32x1xf32> to vector<32x256xf32>
    %206 = arith.addf %203, %205 : vector<32x256xf32>
    %cst_141 = arith.constant 0.000000e+00 : f32
    %207 = vector.broadcast %cst_141 : f32 to vector<32x256xf32>
    %208 = arith.cmpf oge, %206, %207 : vector<32x256xf32>
    %cst_142 = arith.constant 2.000000e-01 : f32
    %209 = vector.broadcast %cst_142 : f32 to vector<32x256xf32>
    %210 = arith.mulf %209, %206 : vector<32x256xf32>
    %211 = arith.select %208, %206, %210 : vector<32x256xi1>, vector<32x256xf32>
    %cst_143 = arith.constant 1.41421354 : f32
    %212 = vector.broadcast %cst_143 : f32 to vector<32x256xf32>
    %213 = arith.mulf %211, %212 : vector<32x256xf32>
    %214 = vector.extract_strided_slice %94 {offsets = [0, 0], sizes = [1, 32], strides = [1, 1]} : vector<2x32xf32> to vector<1x32xf32>
    %c0_144 = arith.constant 0 : index
    %c0_145 = arith.constant 0 : index
    %215 = vector.load %arg26[%c0_144, %c0_145] : memref<3x32xf32, #tpu.memory_space<vmem>>, vector<3x32xf32>
    %216 = vector.broadcast %214 : vector<1x32xf32> to vector<3x32xf32>
    %217 = arith.mulf %215, %216 : vector<3x32xf32>
    %cst_146 = arith.constant dense<0.000000e+00> : vector<3x256xf32>
    %218 = tpu.matmul %217, %213, %cst_146 {dimension_numbers = #tpu.dot_dimension_numbers<[1], [0], [0], [1], [0, 0, 1, 1], [], []>} : vector<3x32xf32>, vector<32x256xf32>, vector<3x256xf32> -> vector<3x256xf32>
    %c0_147 = arith.constant 0 : index
    %c0_148 = arith.constant 0 : index
    %219 = vector.load %arg27[%c0_147, %c0_148] : memref<3x1xf32, #tpu.memory_space<vmem>>, vector<3x1xf32>
    %220 = vector.broadcast %219 : vector<3x1xf32> to vector<3x256xf32>
    %221 = arith.addf %218, %220 : vector<3x256xf32>
    %222 = arith.addf %144, %221 : vector<3x256xf32>
    %223 = vector.extract_strided_slice %101 {offsets = [0, 0], sizes = [1, 32], strides = [1, 1]} : vector<2x32xf32> to vector<1x32xf32>
    %c0_149 = arith.constant 0 : index
    %c0_150 = arith.constant 0 : index
    %224 = vector.load %arg30[%c0_149, %c0_150] : memref<32x32xf32, #tpu.memory_space<vmem>>, vector<32x32xf32>
    %225 = vector.broadcast %223 : vector<1x32xf32> to vector<32x32xf32>
    %226 = arith.mulf %224, %225 : vector<32x32xf32>
    %227 = arith.mulf %226, %226 : vector<32x32xf32>
    %cst_151 = arith.constant dense<0.000000e+00> : vector<32xf32>
    %228 = vector.multi_reduction <add>, %227, %cst_151 [1] : vector<32x32xf32> to vector<32xf32>
    %229 = vector.shape_cast %228 : vector<32xf32> to vector<32x1xf32>
    %cst_152 = arith.constant 9.99999993E-9 : f32
    %230 = vector.broadcast %cst_152 : f32 to vector<32x1xf32>
    %231 = arith.addf %229, %230 : vector<32x1xf32>
    %232 = math.rsqrt %231 : vector<32x1xf32>
    %233 = vector.broadcast %232 : vector<32x1xf32> to vector<32x32xf32>
    %234 = arith.mulf %226, %233 : vector<32x32xf32>
    %cst_153 = arith.constant dense<0.000000e+00> : vector<32x256xf32>
    %235 = tpu.matmul %234, %213, %cst_153 {dimension_numbers = #tpu.dot_dimension_numbers<[1], [0], [0], [1], [0, 0, 1, 1], [], []>} : vector<32x32xf32>, vector<32x256xf32>, vector<32x256xf32> -> vector<32x256xf32>
    %c0_154 = arith.constant 0 : index
    %c0_155 = arith.constant 0 : index
    %236 = vector.load %arg31[%c0_154, %c0_155] : memref<32x1xf32, #tpu.memory_space<vmem>>, vector<32x1xf32>
    %237 = vector.broadcast %236 : vector<32x1xf32> to vector<32x256xf32>
    %238 = arith.addf %235, %237 : vector<32x256xf32>
    %cst_156 = arith.constant 0.000000e+00 : f32
    %239 = vector.broadcast %cst_156 : f32 to vector<32x256xf32>
    %240 = arith.cmpf oge, %238, %239 : vector<32x256xf32>
    %cst_157 = arith.constant 2.000000e-01 : f32
    %241 = vector.broadcast %cst_157 : f32 to vector<32x256xf32>
    %242 = arith.mulf %241, %238 : vector<32x256xf32>
    %243 = arith.select %240, %238, %242 : vector<32x256xi1>, vector<32x256xf32>
    %cst_158 = arith.constant 1.41421354 : f32
    %244 = vector.broadcast %cst_158 : f32 to vector<32x256xf32>
    %245 = arith.mulf %243, %244 : vector<32x256xf32>
    %246 = vector.extract_strided_slice %108 {offsets = [0, 0], sizes = [1, 32], strides = [1, 1]} : vector<2x32xf32> to vector<1x32xf32>
    %c0_159 = arith.constant 0 : index
    %c0_160 = arith.constant 0 : index
    %247 = vector.load %arg34[%c0_159, %c0_160] : memref<32x32xf32, #tpu.memory_space<vmem>>, vector<32x32xf32>
    %248 = vector.broadcast %246 : vector<1x32xf32> to vector<32x32xf32>
    %249 = arith.mulf %247, %248 : vector<32x32xf32>
    %250 = arith.mulf %249, %249 : vector<32x32xf32>
    %cst_161 = arith.constant dense<0.000000e+00> : vector<32xf32>
    %251 = vector.multi_reduction <add>, %250, %cst_161 [1] : vector<32x32xf32> to vector<32xf32>
    %252 = vector.shape_cast %251 : vector<32xf32> to vector<32x1xf32>
    %cst_162 = arith.constant 9.99999993E-9 : f32
    %253 = vector.broadcast %cst_162 : f32 to vector<32x1xf32>
    %254 = arith.addf %252, %253 : vector<32x1xf32>
    %255 = math.rsqrt %254 : vector<32x1xf32>
    %256 = vector.broadcast %255 : vector<32x1xf32> to vector<32x32xf32>
    %257 = arith.mulf %249, %256 : vector<32x32xf32>
    %cst_163 = arith.constant dense<0.000000e+00> : vector<32x256xf32>
    %258 = tpu.matmul %257, %245, %cst_163 {dimension_numbers = #tpu.dot_dimension_numbers<[1], [0], [0], [1], [0, 0, 1, 1], [], []>} : vector<32x32xf32>, vector<32x256xf32>, vector<32x256xf32> -> vector<32x256xf32>
    %c0_164 = arith.constant 0 : index
    %c0_165 = arith.constant 0 : index
    %259 = vector.load %arg35[%c0_164, %c0_165] : memref<32x1xf32, #tpu.memory_space<vmem>>, vector<32x1xf32>
    %260 = vector.broadcast %259 : vector<32x1xf32> to vector<32x256xf32>
    %261 = arith.addf %258, %260 : vector<32x256xf32>
    %cst_166 = arith.constant 0.000000e+00 : f32
    %262 = vector.broadcast %cst_166 : f32 to vector<32x256xf32>
    %263 = arith.cmpf oge, %261, %262 : vector<32x256xf32>
    %cst_167 = arith.constant 2.000000e-01 : f32
    %264 = vector.broadcast %cst_167 : f32 to vector<32x256xf32>
    %265 = arith.mulf %264, %261 : vector<32x256xf32>
    %266 = arith.select %263, %261, %265 : vector<32x256xi1>, vector<32x256xf32>
    %cst_168 = arith.constant 1.41421354 : f32
    %267 = vector.broadcast %cst_168 : f32 to vector<32x256xf32>
    %268 = arith.mulf %266, %267 : vector<32x256xf32>
    %269 = vector.extract_strided_slice %115 {offsets = [0, 0], sizes = [1, 32], strides = [1, 1]} : vector<2x32xf32> to vector<1x32xf32>
    %c0_169 = arith.constant 0 : index
    %c0_170 = arith.constant 0 : index
    %270 = vector.load %arg38[%c0_169, %c0_170] : memref<3x32xf32, #tpu.memory_space<vmem>>, vector<3x32xf32>
    %271 = vector.broadcast %269 : vector<1x32xf32> to vector<3x32xf32>
    %272 = arith.mulf %270, %271 : vector<3x32xf32>
    %cst_171 = arith.constant dense<0.000000e+00> : vector<3x256xf32>
    %273 = tpu.matmul %272, %268, %cst_171 {dimension_numbers = #tpu.dot_dimension_numbers<[1], [0], [0], [1], [0, 0, 1, 1], [], []>} : vector<3x32xf32>, vector<32x256xf32>, vector<3x256xf32> -> vector<3x256xf32>
    %c0_172 = arith.constant 0 : index
    %c0_173 = arith.constant 0 : index
    %274 = vector.load %arg39[%c0_172, %c0_173] : memref<3x1xf32, #tpu.memory_space<vmem>>, vector<3x1xf32>
    %275 = vector.broadcast %274 : vector<3x1xf32> to vector<3x256xf32>
    %276 = arith.addf %273, %275 : vector<3x256xf32>
    %277 = arith.addf %222, %276 : vector<3x256xf32>
    %278 = vector.extract_strided_slice %122 {offsets = [0, 0], sizes = [1, 32], strides = [1, 1]} : vector<2x32xf32> to vector<1x32xf32>
    %c0_174 = arith.constant 0 : index
    %c0_175 = arith.constant 0 : index
    %279 = vector.load %arg42[%c0_174, %c0_175] : memref<16x32xf32, #tpu.memory_space<vmem>>, vector<16x32xf32>
    %280 = vector.broadcast %278 : vector<1x32xf32> to vector<16x32xf32>
    %281 = arith.mulf %279, %280 : vector<16x32xf32>
    %282 = arith.mulf %281, %281 : vector<16x32xf32>
    %cst_176 = arith.constant dense<0.000000e+00> : vector<16xf32>
    %283 = vector.multi_reduction <add>, %282, %cst_176 [1] : vector<16x32xf32> to vector<16xf32>
    %284 = vector.shape_cast %283 : vector<16xf32> to vector<16x1xf32>
    %cst_177 = arith.constant 9.99999993E-9 : f32
    %285 = vector.broadcast %cst_177 : f32 to vector<16x1xf32>
    %286 = arith.addf %284, %285 : vector<16x1xf32>
    %287 = math.rsqrt %286 : vector<16x1xf32>
    %288 = vector.broadcast %287 : vector<16x1xf32> to vector<16x32xf32>
    %289 = arith.mulf %281, %288 : vector<16x32xf32>
    %cst_178 = arith.constant dense<0.000000e+00> : vector<16x256xf32>
    %290 = tpu.matmul %289, %268, %cst_178 {dimension_numbers = #tpu.dot_dimension_numbers<[1], [0], [0], [1], [0, 0, 1, 1], [], []>} : vector<16x32xf32>, vector<32x256xf32>, vector<16x256xf32> -> vector<16x256xf32>
    %c0_179 = arith.constant 0 : index
    %c0_180 = arith.constant 0 : index
    %291 = vector.load %arg43[%c0_179, %c0_180] : memref<16x1xf32, #tpu.memory_space<vmem>>, vector<16x1xf32>
    %292 = vector.broadcast %291 : vector<16x1xf32> to vector<16x256xf32>
    %293 = arith.addf %290, %292 : vector<16x256xf32>
    %cst_181 = arith.constant 0.000000e+00 : f32
    %294 = vector.broadcast %cst_181 : f32 to vector<16x256xf32>
    %295 = arith.cmpf oge, %293, %294 : vector<16x256xf32>
    %cst_182 = arith.constant 2.000000e-01 : f32
    %296 = vector.broadcast %cst_182 : f32 to vector<16x256xf32>
    %297 = arith.mulf %296, %293 : vector<16x256xf32>
    %298 = arith.select %295, %293, %297 : vector<16x256xi1>, vector<16x256xf32>
    %cst_183 = arith.constant 1.41421354 : f32
    %299 = vector.broadcast %cst_183 : f32 to vector<16x256xf32>
    %300 = arith.mulf %298, %299 : vector<16x256xf32>
    %301 = vector.extract_strided_slice %129 {offsets = [0, 0], sizes = [1, 16], strides = [1, 1]} : vector<2x16xf32> to vector<1x16xf32>
    %c0_184 = arith.constant 0 : index
    %c0_185 = arith.constant 0 : index
    %302 = vector.load %arg46[%c0_184, %c0_185] : memref<16x16xf32, #tpu.memory_space<vmem>>, vector<16x16xf32>
    %303 = vector.broadcast %301 : vector<1x16xf32> to vector<16x16xf32>
    %304 = arith.mulf %302, %303 : vector<16x16xf32>
    %305 = arith.mulf %304, %304 : vector<16x16xf32>
    %cst_186 = arith.constant dense<0.000000e+00> : vector<16xf32>
    %306 = vector.multi_reduction <add>, %305, %cst_186 [1] : vector<16x16xf32> to vector<16xf32>
    %307 = vector.shape_cast %306 : vector<16xf32> to vector<16x1xf32>
    %cst_187 = arith.constant 9.99999993E-9 : f32
    %308 = vector.broadcast %cst_187 : f32 to vector<16x1xf32>
    %309 = arith.addf %307, %308 : vector<16x1xf32>
    %310 = math.rsqrt %309 : vector<16x1xf32>
    %311 = vector.broadcast %310 : vector<16x1xf32> to vector<16x16xf32>
    %312 = arith.mulf %304, %311 : vector<16x16xf32>
    %cst_188 = arith.constant dense<0.000000e+00> : vector<16x256xf32>
    %313 = tpu.matmul %312, %300, %cst_188 {dimension_numbers = #tpu.dot_dimension_numbers<[1], [0], [0], [1], [0, 0, 1, 1], [], []>} : vector<16x16xf32>, vector<16x256xf32>, vector<16x256xf32> -> vector<16x256xf32>
    %c0_189 = arith.constant 0 : index
    %c0_190 = arith.constant 0 : index
    %314 = vector.load %arg47[%c0_189, %c0_190] : memref<16x1xf32, #tpu.memory_space<vmem>>, vector<16x1xf32>
    %315 = vector.broadcast %314 : vector<16x1xf32> to vector<16x256xf32>
    %316 = arith.addf %313, %315 : vector<16x256xf32>
    %cst_191 = arith.constant 0.000000e+00 : f32
    %317 = vector.broadcast %cst_191 : f32 to vector<16x256xf32>
    %318 = arith.cmpf oge, %316, %317 : vector<16x256xf32>
    %cst_192 = arith.constant 2.000000e-01 : f32
    %319 = vector.broadcast %cst_192 : f32 to vector<16x256xf32>
    %320 = arith.mulf %319, %316 : vector<16x256xf32>
    %321 = arith.select %318, %316, %320 : vector<16x256xi1>, vector<16x256xf32>
    %cst_193 = arith.constant 1.41421354 : f32
    %322 = vector.broadcast %cst_193 : f32 to vector<16x256xf32>
    %323 = arith.mulf %321, %322 : vector<16x256xf32>
    %324 = vector.extract_strided_slice %136 {offsets = [0, 0], sizes = [1, 16], strides = [1, 1]} : vector<2x16xf32> to vector<1x16xf32>
    %c0_194 = arith.constant 0 : index
    %c0_195 = arith.constant 0 : index
    %325 = vector.load %arg50[%c0_194, %c0_195] : memref<3x16xf32, #tpu.memory_space<vmem>>, vector<3x16xf32>
    %326 = vector.broadcast %324 : vector<1x16xf32> to vector<3x16xf32>
    %327 = arith.mulf %325, %326 : vector<3x16xf32>
    %cst_196 = arith.constant dense<0.000000e+00> : vector<3x256xf32>
    %328 = tpu.matmul %327, %323, %cst_196 {dimension_numbers = #tpu.dot_dimension_numbers<[1], [0], [0], [1], [0, 0, 1, 1], [], []>} : vector<3x16xf32>, vector<16x256xf32>, vector<3x256xf32> -> vector<3x256xf32>
    %c0_197 = arith.constant 0 : index
    %c0_198 = arith.constant 0 : index
    %329 = vector.load %arg51[%c0_197, %c0_198] : memref<3x1xf32, #tpu.memory_space<vmem>>, vector<3x1xf32>
    %330 = vector.broadcast %329 : vector<3x1xf32> to vector<3x256xf32>
    %331 = arith.addf %328, %330 : vector<3x256xf32>
    %332 = arith.addf %277, %331 : vector<3x256xf32>
    %c0_199 = arith.constant 0 : index
    %c0_200 = arith.constant 0 : index
    %c0_201 = arith.constant 0 : index
    %333 = vector.load %arg52[%c0_199, %c0_200, %c0_201] : memref<2x16x256xf32, #tpu.memory_space<vmem>>, vector<1x16x256xf32>
    %334 = vector.shape_cast %333 : vector<1x16x256xf32> to vector<16x256xf32>
    %335 = vector.shape_cast %323 : vector<16x256xf32> to vector<1x16x256xf32>
    tpu.vector_store %arg52[%c0_199, %c0_200, %c0_201], %335 {strides = array<i32>} : memref<2x16x256xf32, #tpu.memory_space<vmem>>, vector<1x16x256xf32>,
    %c0_202 = arith.constant 0 : index
    %c0_203 = arith.constant 0 : index
    %c0_204 = arith.constant 0 : index
    %336 = vector.load %arg53[%c0_202, %c0_203, %c0_204] : memref<2x3x256xf32, #tpu.memory_space<vmem>>, vector<1x3x256xf32>
    %337 = vector.shape_cast %336 : vector<1x3x256xf32> to vector<3x256xf32>
    %338 = vector.shape_cast %332 : vector<3x256xf32> to vector<1x3x256xf32>
    tpu.vector_store %arg53[%c0_202, %c0_203, %c0_204], %338 {strides = array<i32>} : memref<2x3x256xf32, #tpu.memory_space<vmem>>, vector<1x3x256xf32>,
    %c1 = arith.constant 1 : index
    %c0_205 = arith.constant 0 : index
    %c0_206 = arith.constant 0 : index
    %c0_207 = arith.constant 0 : index
    %339 = vector.load %arg0[%c1, %c0_205, %c0_206, %c0_207] : memref<2x3x16x256xf32, #tpu.memory_space<vmem>>, vector<1x3x16x256xf32>
    %340 = vector.shape_cast %339 : vector<1x3x16x256xf32> to vector<3x16x256xf32>
    %c1_208 = arith.constant 1 : index
    %c0_209 = arith.constant 0 : index
    %c0_210 = arith.constant 0 : index
    %c0_211 = arith.constant 0 : index
    %341 = vector.load %arg1[%c1_208, %c0_209, %c0_210, %c0_211] : memref<2x3x1x256xf32, #tpu.memory_space<vmem>>, vector<1x3x1x256xf32>
    %342 = vector.shape_cast %341 : vector<1x3x1x256xf32> to vector<3x1x256xf32>
    %343 = vector.broadcast %342 : vector<3x1x256xf32> to vector<3x16x256xf32>
    %344 = arith.mulf %340, %343 : vector<3x16x256xf32>
    %cst_212 = arith.constant dense<0.000000e+00> : vector<16x256xf32>
    %345 = vector.multi_reduction <add>, %344, %cst_212 [0] : vector<3x16x256xf32> to vector<16x256xf32>
    %cst_213 = arith.constant 0.000000e+00 : f32
    %346 = vector.broadcast %cst_213 : f32 to vector<3x256xf32>
    %347 = vector.extract_strided_slice %73 {offsets = [1, 0], sizes = [1, 16], strides = [1, 1]} : vector<2x16xf32> to vector<1x16xf32>
    %c0_214 = arith.constant 0 : index
    %c0_215 = arith.constant 0 : index
    %348 = vector.load %arg14[%c0_214, %c0_215] : memref<32x16xf32, #tpu.memory_space<vmem>>, vector<32x16xf32>
    %349 = vector.broadcast %347 : vector<1x16xf32> to vector<32x16xf32>
    %350 = arith.mulf %348, %349 : vector<32x16xf32>
    %351 = arith.mulf %350, %350 : vector<32x16xf32>
    %cst_216 = arith.constant dense<0.000000e+00> : vector<32xf32>
    %352 = vector.multi_reduction <add>, %351, %cst_216 [1] : vector<32x16xf32> to vector<32xf32>
    %353 = vector.shape_cast %352 : vector<32xf32> to vector<32x1xf32>
    %cst_217 = arith.constant 9.99999993E-9 : f32
    %354 = vector.broadcast %cst_217 : f32 to vector<32x1xf32>
    %355 = arith.addf %353, %354 : vector<32x1xf32>
    %356 = math.rsqrt %355 : vector<32x1xf32>
    %357 = vector.broadcast %356 : vector<32x1xf32> to vector<32x16xf32>
    %358 = arith.mulf %350, %357 : vector<32x16xf32>
    %cst_218 = arith.constant dense<0.000000e+00> : vector<32x256xf32>
    %359 = tpu.matmul %358, %345, %cst_218 {dimension_numbers = #tpu.dot_dimension_numbers<[1], [0], [0], [1], [0, 0, 1, 1], [], []>} : vector<32x16xf32>, vector<16x256xf32>, vector<32x256xf32> -> vector<32x256xf32>
    %c0_219 = arith.constant 0 : index
    %c0_220 = arith.constant 0 : index
    %360 = vector.load %arg15[%c0_219, %c0_220] : memref<32x1xf32, #tpu.memory_space<vmem>>, vector<32x1xf32>
    %361 = vector.broadcast %360 : vector<32x1xf32> to vector<32x256xf32>
    %362 = arith.addf %359, %361 : vector<32x256xf32>
    %cst_221 = arith.constant 0.000000e+00 : f32
    %363 = vector.broadcast %cst_221 : f32 to vector<32x256xf32>
    %364 = arith.cmpf oge, %362, %363 : vector<32x256xf32>
    %cst_222 = arith.constant 2.000000e-01 : f32
    %365 = vector.broadcast %cst_222 : f32 to vector<32x256xf32>
    %366 = arith.mulf %365, %362 : vector<32x256xf32>
    %367 = arith.select %364, %362, %366 : vector<32x256xi1>, vector<32x256xf32>
    %cst_223 = arith.constant 1.41421354 : f32
    %368 = vector.broadcast %cst_223 : f32 to vector<32x256xf32>
    %369 = arith.mulf %367, %368 : vector<32x256xf32>
    %370 = vector.extract_strided_slice %80 {offsets = [1, 0], sizes = [1, 32], strides = [1, 1]} : vector<2x32xf32> to vector<1x32xf32>
    %c0_224 = arith.constant 0 : index
    %c0_225 = arith.constant 0 : index
    %371 = vector.load %arg18[%c0_224, %c0_225] : memref<32x32xf32, #tpu.memory_space<vmem>>, vector<32x32xf32>
    %372 = vector.broadcast %370 : vector<1x32xf32> to vector<32x32xf32>
    %373 = arith.mulf %371, %372 : vector<32x32xf32>
    %374 = arith.mulf %373, %373 : vector<32x32xf32>
    %cst_226 = arith.constant dense<0.000000e+00> : vector<32xf32>
    %375 = vector.multi_reduction <add>, %374, %cst_226 [1] : vector<32x32xf32> to vector<32xf32>
    %376 = vector.shape_cast %375 : vector<32xf32> to vector<32x1xf32>
    %cst_227 = arith.constant 9.99999993E-9 : f32
    %377 = vector.broadcast %cst_227 : f32 to vector<32x1xf32>
    %378 = arith.addf %376, %377 : vector<32x1xf32>
    %379 = math.rsqrt %378 : vector<32x1xf32>
    %380 = vector.broadcast %379 : vector<32x1xf32> to vector<32x32xf32>
    %381 = arith.mulf %373, %380 : vector<32x32xf32>
    %cst_228 = arith.constant dense<0.000000e+00> : vector<32x256xf32>
    %382 = tpu.matmul %381, %369, %cst_228 {dimension_numbers = #tpu.dot_dimension_numbers<[1], [0], [0], [1], [0, 0, 1, 1], [], []>} : vector<32x32xf32>, vector<32x256xf32>, vector<32x256xf32> -> vector<32x256xf32>
    %c0_229 = arith.constant 0 : index
    %c0_230 = arith.constant 0 : index
    %383 = vector.load %arg19[%c0_229, %c0_230] : memref<32x1xf32, #tpu.memory_space<vmem>>, vector<32x1xf32>
    %384 = vector.broadcast %383 : vector<32x1xf32> to vector<32x256xf32>
    %385 = arith.addf %382, %384 : vector<32x256xf32>
    %cst_231 = arith.constant 0.000000e+00 : f32
    %386 = vector.broadcast %cst_231 : f32 to vector<32x256xf32>
    %387 = arith.cmpf oge, %385, %386 : vector<32x256xf32>
    %cst_232 = arith.constant 2.000000e-01 : f32
    %388 = vector.broadcast %cst_232 : f32 to vector<32x256xf32>
    %389 = arith.mulf %388, %385 : vector<32x256xf32>
    %390 = arith.select %387, %385, %389 : vector<32x256xi1>, vector<32x256xf32>
    %cst_233 = arith.constant 1.41421354 : f32
    %391 = vector.broadcast %cst_233 : f32 to vector<32x256xf32>
    %392 = arith.mulf %390, %391 : vector<32x256xf32>
    %393 = vector.extract_strided_slice %87 {offsets = [1, 0], sizes = [1, 32], strides = [1, 1]} : vector<2x32xf32> to vector<1x32xf32>
    %c0_234 = arith.constant 0 : index
    %c0_235 = arith.constant 0 : index
    %394 = vector.load %arg22[%c0_234, %c0_235] : memref<32x32xf32, #tpu.memory_space<vmem>>, vector<32x32xf32>
    %395 = vector.broadcast %393 : vector<1x32xf32> to vector<32x32xf32>
    %396 = arith.mulf %394, %395 : vector<32x32xf32>
    %397 = arith.mulf %396, %396 : vector<32x32xf32>
    %cst_236 = arith.constant dense<0.000000e+00> : vector<32xf32>
    %398 = vector.multi_reduction <add>, %397, %cst_236 [1] : vector<32x32xf32> to vector<32xf32>
    %399 = vector.shape_cast %398 : vector<32xf32> to vector<32x1xf32>
    %cst_237 = arith.constant 9.99999993E-9 : f32
    %400 = vector.broadcast %cst_237 : f32 to vector<32x1xf32>
    %401 = arith.addf %399, %400 : vector<32x1xf32>
    %402 = math.rsqrt %401 : vector<32x1xf32>
    %403 = vector.broadcast %402 : vector<32x1xf32> to vector<32x32xf32>
    %404 = arith.mulf %396, %403 : vector<32x32xf32>
    %cst_238 = arith.constant dense<0.000000e+00> : vector<32x256xf32>
    %405 = tpu.matmul %404, %392, %cst_238 {dimension_numbers = #tpu.dot_dimension_numbers<[1], [0], [0], [1], [0, 0, 1, 1], [], []>} : vector<32x32xf32>, vector<32x256xf32>, vector<32x256xf32> -> vector<32x256xf32>
    %c0_239 = arith.constant 0 : index
    %c0_240 = arith.constant 0 : index
    %406 = vector.load %arg23[%c0_239, %c0_240] : memref<32x1xf32, #tpu.memory_space<vmem>>, vector<32x1xf32>
    %407 = vector.broadcast %406 : vector<32x1xf32> to vector<32x256xf32>
    %408 = arith.addf %405, %407 : vector<32x256xf32>
    %cst_241 = arith.constant 0.000000e+00 : f32
    %409 = vector.broadcast %cst_241 : f32 to vector<32x256xf32>
    %410 = arith.cmpf oge, %408, %409 : vector<32x256xf32>
    %cst_242 = arith.constant 2.000000e-01 : f32
    %411 = vector.broadcast %cst_242 : f32 to vector<32x256xf32>
    %412 = arith.mulf %411, %408 : vector<32x256xf32>
    %413 = arith.select %410, %408, %412 : vector<32x256xi1>, vector<32x256xf32>
    %cst_243 = arith.constant 1.41421354 : f32
    %414 = vector.broadcast %cst_243 : f32 to vector<32x256xf32>
    %415 = arith.mulf %413, %414 : vector<32x256xf32>
    %416 = vector.extract_strided_slice %94 {offsets = [1, 0], sizes = [1, 32], strides = [1, 1]} : vector<2x32xf32> to vector<1x32xf32>
    %c0_244 = arith.constant 0 : index
    %c0_245 = arith.constant 0 : index
    %417 = vector.load %arg26[%c0_244, %c0_245] : memref<3x32xf32, #tpu.memory_space<vmem>>, vector<3x32xf32>
    %418 = vector.broadcast %416 : vector<1x32xf32> to vector<3x32xf32>
    %419 = arith.mulf %417, %418 : vector<3x32xf32>
    %cst_246 = arith.constant dense<0.000000e+00> : vector<3x256xf32>
    %420 = tpu.matmul %419, %415, %cst_246 {dimension_numbers = #tpu.dot_dimension_numbers<[1], [0], [0], [1], [0, 0, 1, 1], [], []>} : vector<3x32xf32>, vector<32x256xf32>, vector<3x256xf32> -> vector<3x256xf32>
    %c0_247 = arith.constant 0 : index
    %c0_248 = arith.constant 0 : index
    %421 = vector.load %arg27[%c0_247, %c0_248] : memref<3x1xf32, #tpu.memory_space<vmem>>, vector<3x1xf32>
    %422 = vector.broadcast %421 : vector<3x1xf32> to vector<3x256xf32>
    %423 = arith.addf %420, %422 : vector<3x256xf32>
    %424 = arith.addf %346, %423 : vector<3x256xf32>
    %425 = vector.extract_strided_slice %101 {offsets = [1, 0], sizes = [1, 32], strides = [1, 1]} : vector<2x32xf32> to vector<1x32xf32>
    %c0_249 = arith.constant 0 : index
    %c0_250 = arith.constant 0 : index
    %426 = vector.load %arg30[%c0_249, %c0_250] : memref<32x32xf32, #tpu.memory_space<vmem>>, vector<32x32xf32>
    %427 = vector.broadcast %425 : vector<1x32xf32> to vector<32x32xf32>
    %428 = arith.mulf %426, %427 : vector<32x32xf32>
    %429 = arith.mulf %428, %428 : vector<32x32xf32>
    %cst_251 = arith.constant dense<0.000000e+00> : vector<32xf32>
    %430 = vector.multi_reduction <add>, %429, %cst_251 [1] : vector<32x32xf32> to vector<32xf32>
    %431 = vector.shape_cast %430 : vector<32xf32> to vector<32x1xf32>
    %cst_252 = arith.constant 9.99999993E-9 : f32
    %432 = vector.broadcast %cst_252 : f32 to vector<32x1xf32>
    %433 = arith.addf %431, %432 : vector<32x1xf32>
    %434 = math.rsqrt %433 : vector<32x1xf32>
    %435 = vector.broadcast %434 : vector<32x1xf32> to vector<32x32xf32>
    %436 = arith.mulf %428, %435 : vector<32x32xf32>
    %cst_253 = arith.constant dense<0.000000e+00> : vector<32x256xf32>
    %437 = tpu.matmul %436, %415, %cst_253 {dimension_numbers = #tpu.dot_dimension_numbers<[1], [0], [0], [1], [0, 0, 1, 1], [], []>} : vector<32x32xf32>, vector<32x256xf32>, vector<32x256xf32> -> vector<32x256xf32>
    %c0_254 = arith.constant 0 : index
    %c0_255 = arith.constant 0 : index
    %438 = vector.load %arg31[%c0_254, %c0_255] : memref<32x1xf32, #tpu.memory_space<vmem>>, vector<32x1xf32>
    %439 = vector.broadcast %438 : vector<32x1xf32> to vector<32x256xf32>
    %440 = arith.addf %437, %439 : vector<32x256xf32>
    %cst_256 = arith.constant 0.000000e+00 : f32
    %441 = vector.broadcast %cst_256 : f32 to vector<32x256xf32>
    %442 = arith.cmpf oge, %440, %441 : vector<32x256xf32>
    %cst_257 = arith.constant 2.000000e-01 : f32
    %443 = vector.broadcast %cst_257 : f32 to vector<32x256xf32>
    %444 = arith.mulf %443, %440 : vector<32x256xf32>
    %445 = arith.select %442, %440, %444 : vector<32x256xi1>, vector<32x256xf32>
    %cst_258 = arith.constant 1.41421354 : f32
    %446 = vector.broadcast %cst_258 : f32 to vector<32x256xf32>
    %447 = arith.mulf %445, %446 : vector<32x256xf32>
    %448 = vector.extract_strided_slice %108 {offsets = [1, 0], sizes = [1, 32], strides = [1, 1]} : vector<2x32xf32> to vector<1x32xf32>
    %c0_259 = arith.constant 0 : index
    %c0_260 = arith.constant 0 : index
    %449 = vector.load %arg34[%c0_259, %c0_260] : memref<32x32xf32, #tpu.memory_space<vmem>>, vector<32x32xf32>
    %450 = vector.broadcast %448 : vector<1x32xf32> to vector<32x32xf32>
    %451 = arith.mulf %449, %450 : vector<32x32xf32>
    %452 = arith.mulf %451, %451 : vector<32x32xf32>
    %cst_261 = arith.constant dense<0.000000e+00> : vector<32xf32>
    %453 = vector.multi_reduction <add>, %452, %cst_261 [1] : vector<32x32xf32> to vector<32xf32>
    %454 = vector.shape_cast %453 : vector<32xf32> to vector<32x1xf32>
    %cst_262 = arith.constant 9.99999993E-9 : f32
    %455 = vector.broadcast %cst_262 : f32 to vector<32x1xf32>
    %456 = arith.addf %454, %455 : vector<32x1xf32>
    %457 = math.rsqrt %456 : vector<32x1xf32>
    %458 = vector.broadcast %457 : vector<32x1xf32> to vector<32x32xf32>
    %459 = arith.mulf %451, %458 : vector<32x32xf32>
    %cst_263 = arith.constant dense<0.000000e+00> : vector<32x256xf32>
    %460 = tpu.matmul %459, %447, %cst_263 {dimension_numbers = #tpu.dot_dimension_numbers<[1], [0], [0], [1], [0, 0, 1, 1], [], []>} : vector<32x32xf32>, vector<32x256xf32>, vector<32x256xf32> -> vector<32x256xf32>
    %c0_264 = arith.constant 0 : index
    %c0_265 = arith.constant 0 : index
    %461 = vector.load %arg35[%c0_264, %c0_265] : memref<32x1xf32, #tpu.memory_space<vmem>>, vector<32x1xf32>
    %462 = vector.broadcast %461 : vector<32x1xf32> to vector<32x256xf32>
    %463 = arith.addf %460, %462 : vector<32x256xf32>
    %cst_266 = arith.constant 0.000000e+00 : f32
    %464 = vector.broadcast %cst_266 : f32 to vector<32x256xf32>
    %465 = arith.cmpf oge, %463, %464 : vector<32x256xf32>
    %cst_267 = arith.constant 2.000000e-01 : f32
    %466 = vector.broadcast %cst_267 : f32 to vector<32x256xf32>
    %467 = arith.mulf %466, %463 : vector<32x256xf32>
    %468 = arith.select %465, %463, %467 : vector<32x256xi1>, vector<32x256xf32>
    %cst_268 = arith.constant 1.41421354 : f32
    %469 = vector.broadcast %cst_268 : f32 to vector<32x256xf32>
    %470 = arith.mulf %468, %469 : vector<32x256xf32>
    %471 = vector.extract_strided_slice %115 {offsets = [1, 0], sizes = [1, 32], strides = [1, 1]} : vector<2x32xf32> to vector<1x32xf32>
    %c0_269 = arith.constant 0 : index
    %c0_270 = arith.constant 0 : index
    %472 = vector.load %arg38[%c0_269, %c0_270] : memref<3x32xf32, #tpu.memory_space<vmem>>, vector<3x32xf32>
    %473 = vector.broadcast %471 : vector<1x32xf32> to vector<3x32xf32>
    %474 = arith.mulf %472, %473 : vector<3x32xf32>
    %cst_271 = arith.constant dense<0.000000e+00> : vector<3x256xf32>
    %475 = tpu.matmul %474, %470, %cst_271 {dimension_numbers = #tpu.dot_dimension_numbers<[1], [0], [0], [1], [0, 0, 1, 1], [], []>} : vector<3x32xf32>, vector<32x256xf32>, vector<3x256xf32> -> vector<3x256xf32>
    %c0_272 = arith.constant 0 : index
    %c0_273 = arith.constant 0 : index
    %476 = vector.load %arg39[%c0_272, %c0_273] : memref<3x1xf32, #tpu.memory_space<vmem>>, vector<3x1xf32>
    %477 = vector.broadcast %476 : vector<3x1xf32> to vector<3x256xf32>
    %478 = arith.addf %475, %477 : vector<3x256xf32>
    %479 = arith.addf %424, %478 : vector<3x256xf32>
    %480 = vector.extract_strided_slice %122 {offsets = [1, 0], sizes = [1, 32], strides = [1, 1]} : vector<2x32xf32> to vector<1x32xf32>
    %c0_274 = arith.constant 0 : index
    %c0_275 = arith.constant 0 : index
    %481 = vector.load %arg42[%c0_274, %c0_275] : memref<16x32xf32, #tpu.memory_space<vmem>>, vector<16x32xf32>
    %482 = vector.broadcast %480 : vector<1x32xf32> to vector<16x32xf32>
    %483 = arith.mulf %481, %482 : vector<16x32xf32>
    %484 = arith.mulf %483, %483 : vector<16x32xf32>
    %cst_276 = arith.constant dense<0.000000e+00> : vector<16xf32>
    %485 = vector.multi_reduction <add>, %484, %cst_276 [1] : vector<16x32xf32> to vector<16xf32>
    %486 = vector.shape_cast %485 : vector<16xf32> to vector<16x1xf32>
    %cst_277 = arith.constant 9.99999993E-9 : f32
    %487 = vector.broadcast %cst_277 : f32 to vector<16x1xf32>
    %488 = arith.addf %486, %487 : vector<16x1xf32>
    %489 = math.rsqrt %488 : vector<16x1xf32>
    %490 = vector.broadcast %489 : vector<16x1xf32> to vector<16x32xf32>
    %491 = arith.mulf %483, %490 : vector<16x32xf32>
    %cst_278 = arith.constant dense<0.000000e+00> : vector<16x256xf32>
    %492 = tpu.matmul %491, %470, %cst_278 {dimension_numbers = #tpu.dot_dimension_numbers<[1], [0], [0], [1], [0, 0, 1, 1], [], []>} : vector<16x32xf32>, vector<32x256xf32>, vector<16x256xf32> -> vector<16x256xf32>
    %c0_279 = arith.constant 0 : index
    %c0_280 = arith.constant 0 : index
    %493 = vector.load %arg43[%c0_279, %c0_280] : memref<16x1xf32, #tpu.memory_space<vmem>>, vector<16x1xf32>
    %494 = vector.broadcast %493 : vector<16x1xf32> to vector<16x256xf32>
    %495 = arith.addf %492, %494 : vector<16x256xf32>
    %cst_281 = arith.constant 0.000000e+00 : f32
    %496 = vector.broadcast %cst_281 : f32 to vector<16x256xf32>
    %497 = arith.cmpf oge, %495, %496 : vector<16x256xf32>
    %cst_282 = arith.constant 2.000000e-01 : f32
    %498 = vector.broadcast %cst_282 : f32 to vector<16x256xf32>
    %499 = arith.mulf %498, %495 : vector<16x256xf32>
    %500 = arith.select %497, %495, %499 : vector<16x256xi1>, vector<16x256xf32>
    %cst_283 = arith.constant 1.41421354 : f32
    %501 = vector.broadcast %cst_283 : f32 to vector<16x256xf32>
    %502 = arith.mulf %500, %501 : vector<16x256xf32>
    %503 = vector.extract_strided_slice %129 {offsets = [1, 0], sizes = [1, 16], strides = [1, 1]} : vector<2x16xf32> to vector<1x16xf32>
    %c0_284 = arith.constant 0 : index
    %c0_285 = arith.constant 0 : index
    %504 = vector.load %arg46[%c0_284, %c0_285] : memref<16x16xf32, #tpu.memory_space<vmem>>, vector<16x16xf32>
    %505 = vector.broadcast %503 : vector<1x16xf32> to vector<16x16xf32>
    %506 = arith.mulf %504, %505 : vector<16x16xf32>
    %507 = arith.mulf %506, %506 : vector<16x16xf32>
    %cst_286 = arith.constant dense<0.000000e+00> : vector<16xf32>
    %508 = vector.multi_reduction <add>, %507, %cst_286 [1] : vector<16x16xf32> to vector<16xf32>
    %509 = vector.shape_cast %508 : vector<16xf32> to vector<16x1xf32>
    %cst_287 = arith.constant 9.99999993E-9 : f32
    %510 = vector.broadcast %cst_287 : f32 to vector<16x1xf32>
    %511 = arith.addf %509, %510 : vector<16x1xf32>
    %512 = math.rsqrt %511 : vector<16x1xf32>
    %513 = vector.broadcast %512 : vector<16x1xf32> to vector<16x16xf32>
    %514 = arith.mulf %506, %513 : vector<16x16xf32>
    %cst_288 = arith.constant dense<0.000000e+00> : vector<16x256xf32>
    %515 = tpu.matmul %514, %502, %cst_288 {dimension_numbers = #tpu.dot_dimension_numbers<[1], [0], [0], [1], [0, 0, 1, 1], [], []>} : vector<16x16xf32>, vector<16x256xf32>, vector<16x256xf32> -> vector<16x256xf32>
    %c0_289 = arith.constant 0 : index
    %c0_290 = arith.constant 0 : index
    %516 = vector.load %arg47[%c0_289, %c0_290] : memref<16x1xf32, #tpu.memory_space<vmem>>, vector<16x1xf32>
    %517 = vector.broadcast %516 : vector<16x1xf32> to vector<16x256xf32>
    %518 = arith.addf %515, %517 : vector<16x256xf32>
    %cst_291 = arith.constant 0.000000e+00 : f32
    %519 = vector.broadcast %cst_291 : f32 to vector<16x256xf32>
    %520 = arith.cmpf oge, %518, %519 : vector<16x256xf32>
    %cst_292 = arith.constant 2.000000e-01 : f32
    %521 = vector.broadcast %cst_292 : f32 to vector<16x256xf32>
    %522 = arith.mulf %521, %518 : vector<16x256xf32>
    %523 = arith.select %520, %518, %522 : vector<16x256xi1>, vector<16x256xf32>
    %cst_293 = arith.constant 1.41421354 : f32
    %524 = vector.broadcast %cst_293 : f32 to vector<16x256xf32>
    %525 = arith.mulf %523, %524 : vector<16x256xf32>
    %526 = vector.extract_strided_slice %136 {offsets = [1, 0], sizes = [1, 16], strides = [1, 1]} : vector<2x16xf32> to vector<1x16xf32>
    %c0_294 = arith.constant 0 : index
    %c0_295 = arith.constant 0 : index
    %527 = vector.load %arg50[%c0_294, %c0_295] : memref<3x16xf32, #tpu.memory_space<vmem>>, vector<3x16xf32>
    %528 = vector.broadcast %526 : vector<1x16xf32> to vector<3x16xf32>
    %529 = arith.mulf %527, %528 : vector<3x16xf32>
    %cst_296 = arith.constant dense<0.000000e+00> : vector<3x256xf32>
    %530 = tpu.matmul %529, %525, %cst_296 {dimension_numbers = #tpu.dot_dimension_numbers<[1], [0], [0], [1], [0, 0, 1, 1], [], []>} : vector<3x16xf32>, vector<16x256xf32>, vector<3x256xf32> -> vector<3x256xf32>
    %c0_297 = arith.constant 0 : index
    %c0_298 = arith.constant 0 : index
    %531 = vector.load %arg51[%c0_297, %c0_298] : memref<3x1xf32, #tpu.memory_space<vmem>>, vector<3x1xf32>
    %532 = vector.broadcast %531 : vector<3x1xf32> to vector<3x256xf32>
    %533 = arith.addf %530, %532 : vector<3x256xf32>
    %534 = arith.addf %479, %533 : vector<3x256xf32>
    %c1_299 = arith.constant 1 : index
    %c0_300 = arith.constant 0 : index
    %c0_301 = arith.constant 0 : index
    %535 = vector.load %arg52[%c1_299, %c0_300, %c0_301] : memref<2x16x256xf32, #tpu.memory_space<vmem>>, vector<1x16x256xf32>
    %536 = vector.shape_cast %535 : vector<1x16x256xf32> to vector<16x256xf32>
    %537 = vector.shape_cast %525 : vector<16x256xf32> to vector<1x16x256xf32>
    tpu.vector_store %arg52[%c1_299, %c0_300, %c0_301], %537 {strides = array<i32>} : memref<2x16x256xf32, #tpu.memory_space<vmem>>, vector<1x16x256xf32>,
    %c1_302 = arith.constant 1 : index
    %c0_303 = arith.constant 0 : index
    %c0_304 = arith.constant 0 : index
    %538 = vector.load %arg53[%c1_302, %c0_303, %c0_304] : memref<2x3x256xf32, #tpu.memory_space<vmem>>, vector<1x3x256xf32>
    %539 = vector.shape_cast %538 : vector<1x3x256xf32> to vector<3x256xf32>
    %540 = vector.shape_cast %534 : vector<3x256xf32> to vector<1x3x256xf32>
    tpu.vector_store %arg53[%c1_302, %c0_303, %c0_304], %540 {strides = array<i32>} : memref<2x3x256xf32, #tpu.memory_space<vmem>>, vector<1x3x256xf32>,
    return
  }
}

</mosaic_0001>

<llo_original>
// kernel: tpu_custom_call.1
$region0: #{tpu_custom_call.1}
  #allocation0 [shape = 'u32[]', space=smem, size = 0x4, offset = 0x4, fixed_abs, tag = 'smem constant byte address 0x4 - core index']
  #allocation1 [shape = 'u32[144,128]{1,0:T(1,128)}', space=vmem, size = 0x12000, scoped, tag = 'internal scratch']
  %s0 = inlined_call_operand.smem [shape: u32[55], index: -1, kind: input, shape index: {}]
  %s1 = sld [smem:[%s0]]
  %s2 = scalar_lea.smem %s0, 1
  %s3 = sld [smem:[%s2]]
  %s4 = scalar_lea.smem %s0, 2
  %s5 = sld [smem:[%s4]]
  %s6 = scalar_lea.smem %s0, 3
  %s7 = sld [smem:[%s6]]
  %s8 = scalar_lea.smem %s0, 4
  %s9 = sld [smem:[%s8]]
  %s10 = scalar_lea.smem %s0, 5
  %s11 = sld [smem:[%s10]]
  %s12 = scalar_lea.smem %s0, 6
  %s13 = sld [smem:[%s12]]
  %s14 = scalar_lea.smem %s0, 7
  %s15 = sld [smem:[%s14]]
  %s16 = scalar_lea.smem %s0, 8
  %s17 = sld [smem:[%s16]]
  %s18 = scalar_lea.smem %s0, 9
  %s19 = sld [smem:[%s18]]
  %s20 = scalar_lea.smem %s0, 10
  %s21 = sld [smem:[%s20]]
  %s22 = scalar_lea.smem %s0, 11
  %s23 = sld [smem:[%s22]]
  %s24 = scalar_lea.smem %s0, 12
  %s25 = sld [smem:[%s24]]
  %s26 = scalar_lea.smem %s0, 13
  %s27 = sld [smem:[%s26]]
  %s28 = scalar_lea.smem %s0, 14
  %s29 = sld [smem:[%s28]]
  %s30 = scalar_lea.smem %s0, 15
  %s31 = sld [smem:[%s30]]
  %s32 = scalar_lea.smem %s0, 16
  %s33 = sld [smem:[%s32]]
  %s34 = scalar_lea.smem %s0, 17
  %s35 = sld [smem:[%s34]]
  %s36 = scalar_lea.smem %s0, 18
  %s37 = sld [smem:[%s36]]
  %s38 = scalar_lea.smem %s0, 19
  %s39 = sld [smem:[%s38]]
  %s40 = scalar_lea.smem %s0, 20
  %s41 = sld [smem:[%s40]]
  %s42 = scalar_lea.smem %s0, 21
  %s43 = sld [smem:[%s42]]
  %s44 = scalar_lea.smem %s0, 22
  %s45 = sld [smem:[%s44]]
  %s46 = scalar_lea.smem %s0, 23
  %s47 = sld [smem:[%s46]]
  %s48 = scalar_lea.smem %s0, 24
  %s49 = sld [smem:[%s48]]
  %s50 = scalar_lea.smem %s0, 25
  %s51 = sld [smem:[%s50]]
  %s52 = scalar_lea.smem %s0, 26
  %s53 = sld [smem:[%s52]]
  %s54 = scalar_lea.smem %s0, 27
  %s55 = sld [smem:[%s54]]
  %s56 = scalar_lea.smem %s0, 28
  %s57 = sld [smem:[%s56]]
  %s58 = scalar_lea.smem %s0, 29
  %s59 = sld [smem:[%s58]]
  %s60 = scalar_lea.smem %s0, 30
  %s61 = sld [smem:[%s60]]
  %s62 = scalar_lea.smem %s0, 31
  %s63 = sld [smem:[%s62]]
  %s64 = scalar_lea.smem %s0, 32
  %s65 = sld [smem:[%s64]]
  %s66 = scalar_lea.smem %s0, 33
  %s67 = sld [smem:[%s66]]
  %s68 = scalar_lea.smem %s0, 34
  %s69 = sld [smem:[%s68]]
  %s70 = scalar_lea.smem %s0, 35
  %s71 = sld [smem:[%s70]]
  %s72 = scalar_lea.smem %s0, 36
  %s73 = sld [smem:[%s72]]
  %s74 = scalar_lea.smem %s0, 37
  %s75 = sld [smem:[%s74]]
  %s76 = scalar_lea.smem %s0, 38
  %s77 = sld [smem:[%s76]]
  %s78 = scalar_lea.smem %s0, 39
  %s79 = sld [smem:[%s78]]
  %s80 = scalar_lea.smem %s0, 40
  %s81 = sld [smem:[%s80]]
  %s82 = scalar_lea.smem %s0, 41
  %s83 = sld [smem:[%s82]]
  %s84 = scalar_lea.smem %s0, 42
  %s85 = sld [smem:[%s84]]
  %s86 = scalar_lea.smem %s0, 43
  %s87 = sld [smem:[%s86]]
  %s88 = scalar_lea.smem %s0, 44
  %s89 = sld [smem:[%s88]]
  %s90 = scalar_lea.smem %s0, 45
  %s91 = sld [smem:[%s90]]
  %s92 = scalar_lea.smem %s0, 46
  %s93 = sld [smem:[%s92]]
  %s94 = scalar_lea.smem %s0, 47
  %s95 = sld [smem:[%s94]]
  %s96 = scalar_lea.smem %s0, 48
  %s97 = sld [smem:[%s96]]
  %s98 = scalar_lea.smem %s0, 49
  %s99 = sld [smem:[%s98]]
  %s100 = scalar_lea.smem %s0, 50
  %s101 = sld [smem:[%s100]]
  %s102 = scalar_lea.smem %s0, 51
  %s103 = sld [smem:[%s102]]
  %s104 = scalar_lea.smem %s0, 52
  %s105 = sld [smem:[%s104]]
  %s106 = scalar_lea.smem %s0, 53
  %s107 = sld [smem:[%s106]]
  %s108 = scalar_lea.smem %s0, 54
  %s109 = sld [smem:[%s108]]
  %110 = xla_tuple %s105, %s107, %s109
  %s111 = sld [smem:[#allocation0]]
  $region346: #{tpu_custom_call.1} parent=0
    _
  %s113 = ssub.s32 1, %s111
  %s114 = scalar_select 0, %s113, %s111
  $region1: #{tpu_custom_call.1} parent=0
    #allocation2 [shape = 'u8[6144]{0}', space=vmem, size = 0x1800, scoped, tag = 'input window, operand 1, single buffered']
    #allocation3 [shape = 's32[1]{0}', space=sflag, size = 0x4, scoped, tag = 'scoped memory for tpu_custom_call.1']
    #allocation4 [shape = 's32[1]{0}', space=sflag, size = 0x4, scoped, tag = 'scoped memory for tpu_custom_call.1']
    #allocation5 [shape = 'u8[1024]{0}', space=vmem, size = 0x400, scoped, tag = 'input window, operand 3, single buffered']
    #allocation6 [shape = 's32[1]{0}', space=sflag, size = 0x4, scoped, tag = 'scoped memory for tpu_custom_call.1']
    #allocation7 [shape = 'u8[512]{0}', space=vmem, size = 0x400, scoped, tag = 'input window, operand 5, single buffered']
    #allocation8 [shape = 'u8[512]{0}', space=vmem, size = 0x400, scoped, tag = 'input window, operand 7, single buffered']
    #allocation9 [shape = 's32[1]{0}', space=sflag, size = 0x4, scoped, tag = 'scoped memory for tpu_custom_call.1']
    #allocation10 [shape = 'u8[512]{0}', space=vmem, size = 0x400, scoped, tag = 'input window, operand 9, single buffered']
    #allocation11 [shape = 'u8[8192]{0}', space=vmem, size = 0x2000, scoped, tag = 'input window, operand 10, single buffered']
    #allocation12 [shape = 's32[1]{0}', space=sflag, size = 0x4, scoped, tag = 'scoped memory for tpu_custom_call.1']
    #allocation13 [shape = 'u8[512]{0}', space=vmem, size = 0x400, scoped, tag = 'input window, operand 11, single buffered']
    #allocation14 [shape = 'u8[8192]{0}', space=vmem, size = 0x2000, scoped, tag = 'input window, operand 12, single buffered']
    #allocation15 [shape = 's32[1]{0}', space=sflag, size = 0x4, scoped, tag = 'scoped memory for tpu_custom_call.1']
    #allocation16 [shape = 'u8[512]{0}', space=vmem, size = 0x400, scoped, tag = 'input window, operand 13, single buffered']
    #allocation17 [shape = 'u8[8192]{0}', space=vmem, size = 0x2000, scoped, tag = 'input window, operand 16, single buffered']
    #allocation18 [shape = 's32[1]{0}', space=sflag, size = 0x4, scoped, tag = 'scoped memory for tpu_custom_call.1']
    #allocation19 [shape = 'u8[512]{0}', space=vmem, size = 0x400, scoped, tag = 'input window, operand 17, single buffered']
    #allocation20 [shape = 'u8[8192]{0}', space=vmem, size = 0x2000, scoped, tag = 'input window, operand 20, single buffered']
    #allocation21 [shape = 's32[1]{0}', space=sflag, size = 0x4, scoped, tag = 'scoped memory for tpu_custom_call.1']
    #allocation22 [shape = 'u8[512]{0}', space=vmem, size = 0x400, scoped, tag = 'input window, operand 21, single buffered']
    #allocation23 [shape = 'u8[8192]{0}', space=vmem, size = 0x2000, scoped, tag = 'input window, operand 24, single buffered']
    #allocation24 [shape = 's32[1]{0}', space=sflag, size = 0x4, scoped, tag = 'scoped memory for tpu_custom_call.1']
    #allocation25 [shape = 'u8[512]{0}', space=vmem, size = 0x400, scoped, tag = 'input window, operand 25, single buffered']
    #allocation26 [shape = 'u8[2048]{0}', space=vmem, size = 0x800, scoped, tag = 'input window, operand 26, single buffered']
    #allocation27 [shape = 's32[1]{0}', space=sflag, size = 0x4, scoped, tag = 'scoped memory for tpu_custom_call.1']
    #allocation28 [shape = 'u8[8192]{0}', space=vmem, size = 0x2000, scoped, tag = 'input window, operand 28, single buffered']
    #allocation29 [shape = 'u8[512]{0}', space=vmem, size = 0x400, scoped, tag = 'input window, operand 29, single buffered']
    #allocation30 [shape = 's32[1]{0}', space=sflag, size = 0x4, scoped, tag = 'scoped memory for tpu_custom_call.1']
    #allocation31 [shape = 'u8[8192]{0}', space=vmem, size = 0x2000, scoped, tag = 'input window, operand 32, single buffered']
    #allocation32 [shape = 'u8[512]{0}', space=vmem, size = 0x400, scoped, tag = 'input window, operand 33, single buffered']
    #allocation33 [shape = 's32[1]{0}', space=sflag, size = 0x4, scoped, tag = 'scoped memory for tpu_custom_call.1']
    #allocation34 [shape = 'u8[512]{0}', space=vmem, size = 0x400, scoped, tag = 'input window, operand 37, single buffered']
    #allocation35 [shape = 'u8[2048]{0}', space=vmem, size = 0x800, scoped, tag = 'input window, operand 38, single buffered']
    #allocation36 [shape = 's32[1]{0}', space=sflag, size = 0x4, scoped, tag = 'scoped memory for tpu_custom_call.1']
    #allocation37 [shape = 'u8[8192]{0}', space=vmem, size = 0x2000, scoped, tag = 'input window, operand 40, single buffered']
    #allocation38 [shape = 'u8[512]{0}', space=vmem, size = 0x400, scoped, tag = 'input window, operand 41, single buffered']
    #allocation39 [shape = 's32[1]{0}', space=sflag, size = 0x4, scoped, tag = 'scoped memory for tpu_custom_call.1']
    #allocation40 [shape = 'u8[8192]{0}', space=vmem, size = 0x2000, scoped, tag = 'input window, operand 44, single buffered']
    #allocation41 [shape = 'u8[512]{0}', space=vmem, size = 0x400, scoped, tag = 'input window, operand 45, single buffered']
    #allocation42 [shape = 's32[1]{0}', space=sflag, size = 0x4, scoped, tag = 'scoped memory for tpu_custom_call.1']
    #allocation43 [shape = 'u8[8192]{0}', space=vmem, size = 0x2000, scoped, tag = 'input window, operand 46, single buffered']
    #allocation44 [shape = 'u8[8192]{0}', space=vmem, size = 0x2000, scoped, tag = 'input window, operand 48, single buffered']
    #allocation45 [shape = 's32[1]{0}', space=sflag, size = 0x4, scoped, tag = 'scoped memory for tpu_custom_call.1']
    #allocation46 [shape = 'u8[32768]{0}', space=vmem, size = 0x8000, scoped, tag = 'output window, operand 0, single buffered']
    #allocation47 [shape = 'u8[1024]{0}', space=vmem, size = 0x400, scoped, tag = 'output window, operand 2, single buffered']
    #allocation48 [shape = 's32[1]{0}', space=sflag, size = 0x4, scoped, tag = 'scoped memory for tpu_custom_call.1']
    %115 = vsyncpa [#allocation3], 0
    %116 = vsyncpa [#allocation6], 0
    %117 = vsyncpa [#allocation9], 0
    %118 = vsyncpa [#allocation12], 0
    %119 = vsyncpa [#allocation15], 0
    %120 = vsyncpa [#allocation18], 0
    %121 = vsyncpa [#allocation21], 0
    %122 = vsyncpa [#allocation24], 0
    %123 = vsyncpa [#allocation27], 0
    %124 = vsyncpa [#allocation30], 0
    %125 = vsyncpa [#allocation33], 0
    %126 = vsyncpa [#allocation36], 0
    %127 = vsyncpa [#allocation39], 0
    %128 = vsyncpa [#allocation42], 0
    %129 = vsyncpa [#allocation45], 0
    %130 = vsyncpa [#allocation4], 0
    %131 = vsyncpa [#allocation48], 0
    // Predicated region
    $region2: #{tpu_custom_call.1} parent=1 // pred_check
      _
    $region3: #{tpu_custom_call.1} parent=1 // pred_check_branch
      %133 = sbr.rel (0) target = $region5
    $region4: #{tpu_custom_call.1} parent=1 // pred_region
      _
    $region5: #{tpu_custom_call.1} parent=1 // pred_fallthru
      _
    // Predicated region
    $region6: #{tpu_custom_call.1} parent=1 // pred_check
      _
    $region7: #{tpu_custom_call.1} parent=1 // pred_check_branch
      %135 = sbr.rel (0) target = $region9
    $region8: #{tpu_custom_call.1} parent=1 // pred_region
      %s137 = ssub.s32 192, 192
      %138 = vsyncadd [#allocation3], %s137
      %s139 = sshll.u32 [#allocation2], 4
      %s140 = int_to_ptr.vmem [resolvable:$true] %s139
      %145 = dma.hbm_to_vmem [thread:$0]  %s3, 192, %s140, [#allocation3], 32, 32, 2
    $region9: #{tpu_custom_call.1} parent=1 // pred_fallthru
      _
    // Predicated region
    $region10: #{tpu_custom_call.1} parent=1 // pred_check
      _
    $region11: #{tpu_custom_call.1} parent=1 // pred_check_branch
      %147 = sbr.rel (0) target = $region13
    $region12: #{tpu_custom_call.1} parent=1 // pred_region
      _
    $region13: #{tpu_custom_call.1} parent=1 // pred_fallthru
      _
    // Predicated region
    $region14: #{tpu_custom_call.1} parent=1 // pred_check
      _
    $region15: #{tpu_custom_call.1} parent=1 // pred_check_branch
      %149 = sbr.rel (0) target = $region17
    $region16: #{tpu_custom_call.1} parent=1 // pred_region
      %s151 = ssub.s32 32, 32
      %152 = vsyncadd [#allocation6], %s151
      %s154 = sshll.u32 [#allocation5], 4
      %s155 = int_to_ptr.vmem [resolvable:$true] %s154
      %157 = dma.hbm_to_vmem [thread:$0]  %s7, 32, %s155, [#allocation6]
    $region17: #{tpu_custom_call.1} parent=1 // pred_fallthru
      _
    // Predicated region
    $region18: #{tpu_custom_call.1} parent=1 // pred_check
      _
    $region19: #{tpu_custom_call.1} parent=1 // pred_check_branch
      %159 = sbr.rel (0) target = $region21
    $region20: #{tpu_custom_call.1} parent=1 // pred_region
      _
    $region21: #{tpu_custom_call.1} parent=1 // pred_fallthru
      _
    // Predicated region
    $region22: #{tpu_custom_call.1} parent=1 // pred_check
      _
    $region23: #{tpu_custom_call.1} parent=1 // pred_check_branch
      %161 = sbr.rel (0) target = $region25
    $region24: #{tpu_custom_call.1} parent=1 // pred_region
      %s163 = ssub.s32 16, 16
      %164 = vsyncadd [#allocation6], %s163
      %s166 = sshll.u32 [#allocation7], 4
      %s167 = int_to_ptr.vmem [resolvable:$true] %s166
      %169 = dma.hbm_to_vmem [thread:$0]  %s11, 16, %s167, [#allocation6]
    $region25: #{tpu_custom_call.1} parent=1 // pred_fallthru
      _
    // Predicated region
    $region26: #{tpu_custom_call.1} parent=1 // pred_check
      _
    $region27: #{tpu_custom_call.1} parent=1 // pred_check_branch
      %171 = sbr.rel (0) target = $region29
    $region28: #{tpu_custom_call.1} parent=1 // pred_region
      _
    $region29: #{tpu_custom_call.1} parent=1 // pred_fallthru
      _
    // Predicated region
    $region30: #{tpu_custom_call.1} parent=1 // pred_check
      _
    $region31: #{tpu_custom_call.1} parent=1 // pred_check_branch
      %173 = sbr.rel (0) target = $region33
    $region32: #{tpu_custom_call.1} parent=1 // pred_region
      %s175 = ssub.s32 16, 16
      %176 = vsyncadd [#allocation9], %s175
      %s178 = sshll.u32 [#allocation8], 4
      %s179 = int_to_ptr.vmem [resolvable:$true] %s178
      %181 = dma.hbm_to_vmem [thread:$0]  %s15, 16, %s179, [#allocation9]
    $region33: #{tpu_custom_call.1} parent=1 // pred_fallthru
      _
    // Predicated region
    $region34: #{tpu_custom_call.1} parent=1 // pred_check
      _
    $region35: #{tpu_custom_call.1} parent=1 // pred_check_branch
      %183 = sbr.rel (0) target = $region37
    $region36: #{tpu_custom_call.1} parent=1 // pred_region
      _
    $region37: #{tpu_custom_call.1} parent=1 // pred_fallthru
      _
    // Predicated region
    $region38: #{tpu_custom_call.1} parent=1 // pred_check
      _
    $region39: #{tpu_custom_call.1} parent=1 // pred_check_branch
      %185 = sbr.rel (0) target = $region41
    $region40: #{tpu_custom_call.1} parent=1 // pred_region
      %s187 = ssub.s32 16, 16
      %188 = vsyncadd [#allocation9], %s187
      %s190 = sshll.u32 [#allocation10], 4
      %s191 = int_to_ptr.vmem [resolvable:$true] %s190
      %193 = dma.hbm_to_vmem [thread:$0]  %s19, 16, %s191, [#allocation9]
    $region41: #{tpu_custom_call.1} parent=1 // pred_fallthru
      _
    // Predicated region
    $region42: #{tpu_custom_call.1} parent=1 // pred_check
      _
    $region43: #{tpu_custom_call.1} parent=1 // pred_check_branch
      %195 = sbr.rel (0) target = $region45
    $region44: #{tpu_custom_call.1} parent=1 // pred_region
      %s197 = ssub.s32 256, 256
      %198 = vsyncadd [#allocation12], %s197
      %s199 = sshll.u32 [#allocation11], 4
      %s200 = int_to_ptr.vmem [resolvable:$true] %s199
      %205 = dma.hbm_to_vmem [thread:$0]  %s21, 256, %s200, [#allocation12], 128, 128, 8
    $region45: #{tpu_custom_call.1} parent=1 // pred_fallthru
      _
    // Predicated region
    $region46: #{tpu_custom_call.1} parent=1 // pred_check
      _
    $region47: #{tpu_custom_call.1} parent=1 // pred_check_branch
      %207 = sbr.rel (0) target = $region49
    $region48: #{tpu_custom_call.1} parent=1 // pred_region
      %s209 = ssub.s32 16, 16
      %210 = vsyncadd [#allocation12], %s209
      %s212 = sshll.u32 [#allocation13], 4
      %s213 = int_to_ptr.vmem [resolvable:$true] %s212
      %215 = dma.hbm_to_vmem [thread:$0]  %s23, 16, %s213, [#allocation12]
    $region49: #{tpu_custom_call.1} parent=1 // pred_fallthru
      _
    // Predicated region
    $region50: #{tpu_custom_call.1} parent=1 // pred_check
      _
    $region51: #{tpu_custom_call.1} parent=1 // pred_check_branch
      %217 = sbr.rel (0) target = $region53
    $region52: #{tpu_custom_call.1} parent=1 // pred_region
      %s219 = ssub.s32 256, 256
      %220 = vsyncadd [#allocation15], %s219
      %s221 = sshll.u32 [#allocation14], 4
      %s222 = int_to_ptr.vmem [resolvable:$true] %s221
      %227 = dma.hbm_to_vmem [thread:$0]  %s25, 256, %s222, [#allocation15], 128, 128, 8
    $region53: #{tpu_custom_call.1} parent=1 // pred_fallthru
      _
    // Predicated region
    $region54: #{tpu_custom_call.1} parent=1 // pred_check
      _
    $region55: #{tpu_custom_call.1} parent=1 // pred_check_branch
      %229 = sbr.rel (0) target = $region57
    $region56: #{tpu_custom_call.1} parent=1 // pred_region
      %s231 = ssub.s32 16, 16
      %232 = vsyncadd [#allocation15], %s231
      %s234 = sshll.u32 [#allocation16], 4
      %s235 = int_to_ptr.vmem [resolvable:$true] %s234
      %237 = dma.hbm_to_vmem [thread:$0]  %s27, 16, %s235, [#allocation15]
    $region57: #{tpu_custom_call.1} parent=1 // pred_fallthru
      _
    // Predicated region
    $region58: #{tpu_custom_call.1} parent=1 // pred_check
      _
    $region59: #{tpu_custom_call.1} parent=1 // pred_check_branch
      %239 = sbr.rel (0) target = $region61
    $region60: #{tpu_custom_call.1} parent=1 // pred_region
      _
    $region61: #{tpu_custom_call.1} parent=1 // pred_fallthru
      _
    // Predicated region
    $region62: #{tpu_custom_call.1} parent=1 // pred_check
      _
    $region63: #{tpu_custom_call.1} parent=1 // pred_check_branch
      %241 = sbr.rel (0) target = $region65
    $region64: #{tpu_custom_call.1} parent=1 // pred_region
      _
    $region65: #{tpu_custom_call.1} parent=1 // pred_fallthru
      _
    // Predicated region
    $region66: #{tpu_custom_call.1} parent=1 // pred_check
      _
    $region67: #{tpu_custom_call.1} parent=1 // pred_check_branch
      %243 = sbr.rel (0) target = $region69
    $region68: #{tpu_custom_call.1} parent=1 // pred_region
      %s245 = ssub.s32 256, 256
      %246 = vsyncadd [#allocation18], %s245
      %s247 = sshll.u32 [#allocation17], 4
      %s248 = int_to_ptr.vmem [resolvable:$true] %s247
      %253 = dma.hbm_to_vmem [thread:$0]  %s33, 256, %s248, [#allocation18], 128, 128, 8
    $region69: #{tpu_custom_call.1} parent=1 // pred_fallthru
      _
    // Predicated region
    $region70: #{tpu_custom_call.1} parent=1 // pred_check
      _
    $region71: #{tpu_custom_call.1} parent=1 // pred_check_branch
      %255 = sbr.rel (0) target = $region73
    $region72: #{tpu_custom_call.1} parent=1 // pred_region
      %s257 = ssub.s32 16, 16
      %258 = vsyncadd [#allocation18], %s257
      %s260 = sshll.u32 [#allocation19], 4
      %s261 = int_to_ptr.vmem [resolvable:$true] %s260
      %263 = dma.hbm_to_vmem [thread:$0]  %s35, 16, %s261, [#allocation18]
    $region73: #{tpu_custom_call.1} parent=1 // pred_fallthru
      _
    // Predicated region
    $region74: #{tpu_custom_call.1} parent=1 // pred_check
      _
    $region75: #{tpu_custom_call.1} parent=1 // pred_check_branch
      %265 = sbr.rel (0) target = $region77
    $region76: #{tpu_custom_call.1} parent=1 // pred_region
      _
    $region77: #{tpu_custom_call.1} parent=1 // pred_fallthru
      _
    // Predicated region
    $region78: #{tpu_custom_call.1} parent=1 // pred_check
      _
    $region79: #{tpu_custom_call.1} parent=1 // pred_check_branch
      %267 = sbr.rel (0) target = $region81
    $region80: #{tpu_custom_call.1} parent=1 // pred_region
      _
    $region81: #{tpu_custom_call.1} parent=1 // pred_fallthru
      _
    // Predicated region
    $region82: #{tpu_custom_call.1} parent=1 // pred_check
      _
    $region83: #{tpu_custom_call.1} parent=1 // pred_check_branch
      %269 = sbr.rel (0) target = $region85
    $region84: #{tpu_custom_call.1} parent=1 // pred_region
      %s271 = ssub.s32 256, 256
      %272 = vsyncadd [#allocation21], %s271
      %s273 = sshll.u32 [#allocation20], 4
      %s274 = int_to_ptr.vmem [resolvable:$true] %s273
      %279 = dma.hbm_to_vmem [thread:$0]  %s41, 256, %s274, [#allocation21], 128, 128, 8
    $region85: #{tpu_custom_call.1} parent=1 // pred_fallthru
      _
    // Predicated region
    $region86: #{tpu_custom_call.1} parent=1 // pred_check
      _
    $region87: #{tpu_custom_call.1} parent=1 // pred_check_branch
      %281 = sbr.rel (0) target = $region89
    $region88: #{tpu_custom_call.1} parent=1 // pred_region
      %s283 = ssub.s32 16, 16
      %284 = vsyncadd [#allocation21], %s283
      %s286 = sshll.u32 [#allocation22], 4
      %s287 = int_to_ptr.vmem [resolvable:$true] %s286
      %289 = dma.hbm_to_vmem [thread:$0]  %s43, 16, %s287, [#allocation21]
    $region89: #{tpu_custom_call.1} parent=1 // pred_fallthru
      _
    // Predicated region
    $region90: #{tpu_custom_call.1} parent=1 // pred_check
      _
    $region91: #{tpu_custom_call.1} parent=1 // pred_check_branch
      %291 = sbr.rel (0) target = $region93
    $region92: #{tpu_custom_call.1} parent=1 // pred_region
      _
    $region93: #{tpu_custom_call.1} parent=1 // pred_fallthru
      _
    // Predicated region
    $region94: #{tpu_custom_call.1} parent=1 // pred_check
      _
    $region95: #{tpu_custom_call.1} parent=1 // pred_check_branch
      %293 = sbr.rel (0) target = $region97
    $region96: #{tpu_custom_call.1} parent=1 // pred_region
      _
    $region97: #{tpu_custom_call.1} parent=1 // pred_fallthru
      _
    // Predicated region
    $region98: #{tpu_custom_call.1} parent=1 // pred_check
      _
    $region99: #{tpu_custom_call.1} parent=1 // pred_check_branch
      %295 = sbr.rel (0) target = $region101
    $region100: #{tpu_custom_call.1} parent=1 // pred_region
      %s297 = ssub.s32 256, 256
      %298 = vsyncadd [#allocation24], %s297
      %s299 = sshll.u32 [#allocation23], 4
      %s300 = int_to_ptr.vmem [resolvable:$true] %s299
      %305 = dma.hbm_to_vmem [thread:$0]  %s49, 256, %s300, [#allocation24], 128, 128, 8
    $region101: #{tpu_custom_call.1} parent=1 // pred_fallthru
      _
    // Predicated region
    $region102: #{tpu_custom_call.1} parent=1 // pred_check
      _
    $region103: #{tpu_custom_call.1} parent=1 // pred_check_branch
      %307 = sbr.rel (0) target = $region105
    $region104: #{tpu_custom_call.1} parent=1 // pred_region
      %s309 = ssub.s32 16, 16
      %310 = vsyncadd [#allocation24], %s309
      %s312 = sshll.u32 [#allocation25], 4
      %s313 = int_to_ptr.vmem [resolvable:$true] %s312
      %315 = dma.hbm_to_vmem [thread:$0]  %s51, 16, %s313, [#allocation24]
    $region105: #{tpu_custom_call.1} parent=1 // pred_fallthru
      _
    // Predicated region
    $region106: #{tpu_custom_call.1} parent=1 // pred_check
      _
    $region107: #{tpu_custom_call.1} parent=1 // pred_check_branch
      %317 = sbr.rel (0) target = $region109
    $region108: #{tpu_custom_call.1} parent=1 // pred_region
      %s319 = ssub.s32 64, 64
      %320 = vsyncadd [#allocation27], %s319
      %s322 = sshll.u32 [#allocation26], 4
      %s323 = int_to_ptr.vmem [resolvable:$true] %s322
      %325 = dma.hbm_to_vmem [thread:$0]  %s53, 64, %s323, [#allocation27]
    $region109: #{tpu_custom_call.1} parent=1 // pred_fallthru
      _
    // Predicated region
    $region110: #{tpu_custom_call.1} parent=1 // pred_check
      _
    $region111: #{tpu_custom_call.1} parent=1 // pred_check_branch
      %327 = sbr.rel (0) target = $region113
    $region112: #{tpu_custom_call.1} parent=1 // pred_region
      _
    $region113: #{tpu_custom_call.1} parent=1 // pred_fallthru
      _
    // Predicated region
    $region114: #{tpu_custom_call.1} parent=1 // pred_check
      _
    $region115: #{tpu_custom_call.1} parent=1 // pred_check_branch
      %329 = sbr.rel (0) target = $region117
    $region116: #{tpu_custom_call.1} parent=1 // pred_region
      %s331 = ssub.s32 256, 256
      %332 = vsyncadd [#allocation27], %s331
      %s333 = sshll.u32 [#allocation28], 4
      %s334 = int_to_ptr.vmem [resolvable:$true] %s333
      %339 = dma.hbm_to_vmem [thread:$0]  %s57, 256, %s334, [#allocation27], 128, 128, 8
    $region117: #{tpu_custom_call.1} parent=1 // pred_fallthru
      _
    // Predicated region
    $region118: #{tpu_custom_call.1} parent=1 // pred_check
      _
    $region119: #{tpu_custom_call.1} parent=1 // pred_check_branch
      %341 = sbr.rel (0) target = $region121
    $region120: #{tpu_custom_call.1} parent=1 // pred_region
      %s343 = ssub.s32 16, 16
      %344 = vsyncadd [#allocation30], %s343
      %s346 = sshll.u32 [#allocation29], 4
      %s347 = int_to_ptr.vmem [resolvable:$true] %s346
      %349 = dma.hbm_to_vmem [thread:$0]  %s59, 16, %s347, [#allocation30]
    $region121: #{tpu_custom_call.1} parent=1 // pred_fallthru
      _
    // Predicated region
    $region122: #{tpu_custom_call.1} parent=1 // pred_check
      _
    $region123: #{tpu_custom_call.1} parent=1 // pred_check_branch
      %351 = sbr.rel (0) target = $region125
    $region124: #{tpu_custom_call.1} parent=1 // pred_region
      _
    $region125: #{tpu_custom_call.1} parent=1 // pred_fallthru
      _
    // Predicated region
    $region126: #{tpu_custom_call.1} parent=1 // pred_check
      _
    $region127: #{tpu_custom_call.1} parent=1 // pred_check_branch
      %353 = sbr.rel (0) target = $region129
    $region128: #{tpu_custom_call.1} parent=1 // pred_region
      _
    $region129: #{tpu_custom_call.1} parent=1 // pred_fallthru
      _
    // Predicated region
    $region130: #{tpu_custom_call.1} parent=1 // pred_check
      _
    $region131: #{tpu_custom_call.1} parent=1 // pred_check_branch
      %355 = sbr.rel (0) target = $region133
    $region132: #{tpu_custom_call.1} parent=1 // pred_region
      %s357 = ssub.s32 256, 256
      %358 = vsyncadd [#allocation30], %s357
      %s359 = sshll.u32 [#allocation31], 4
      %s360 = int_to_ptr.vmem [resolvable:$true] %s359
      %365 = dma.hbm_to_vmem [thread:$0]  %s65, 256, %s360, [#allocation30], 128, 128, 8
    $region133: #{tpu_custom_call.1} parent=1 // pred_fallthru
      _
    // Predicated region
    $region134: #{tpu_custom_call.1} parent=1 // pred_check
      _
    $region135: #{tpu_custom_call.1} parent=1 // pred_check_branch
      %367 = sbr.rel (0) target = $region137
    $region136: #{tpu_custom_call.1} parent=1 // pred_region
      %s369 = ssub.s32 16, 16
      %370 = vsyncadd [#allocation33], %s369
      %s372 = sshll.u32 [#allocation32], 4
      %s373 = int_to_ptr.vmem [resolvable:$true] %s372
      %375 = dma.hbm_to_vmem [thread:$0]  %s67, 16, %s373, [#allocation33]
    $region137: #{tpu_custom_call.1} parent=1 // pred_fallthru
      _
    // Predicated region
    $region138: #{tpu_custom_call.1} parent=1 // pred_check
      _
    $region139: #{tpu_custom_call.1} parent=1 // pred_check_branch
      %377 = sbr.rel (0) target = $region141
    $region140: #{tpu_custom_call.1} parent=1 // pred_region
      _
    $region141: #{tpu_custom_call.1} parent=1 // pred_fallthru
      _
    // Predicated region
    $region142: #{tpu_custom_call.1} parent=1 // pred_check
      _
    $region143: #{tpu_custom_call.1} parent=1 // pred_check_branch
      %379 = sbr.rel (0) target = $region145
    $region144: #{tpu_custom_call.1} parent=1 // pred_region
      _
    $region145: #{tpu_custom_call.1} parent=1 // pred_fallthru
      _
    // Predicated region
    $region146: #{tpu_custom_call.1} parent=1 // pred_check
      _
    $region147: #{tpu_custom_call.1} parent=1 // pred_check_branch
      %381 = sbr.rel (0) target = $region149
    $region148: #{tpu_custom_call.1} parent=1 // pred_region
      _
    $region149: #{tpu_custom_call.1} parent=1 // pred_fallthru
      _
    // Predicated region
    $region150: #{tpu_custom_call.1} parent=1 // pred_check
      _
    $region151: #{tpu_custom_call.1} parent=1 // pred_check_branch
      %383 = sbr.rel (0) target = $region153
    $region152: #{tpu_custom_call.1} parent=1 // pred_region
      %s385 = ssub.s32 16, 16
      %386 = vsyncadd [#allocation33], %s385
      %s388 = sshll.u32 [#allocation34], 4
      %s389 = int_to_ptr.vmem [resolvable:$true] %s388
      %391 = dma.hbm_to_vmem [thread:$0]  %s75, 16, %s389, [#allocation33]
    $region153: #{tpu_custom_call.1} parent=1 // pred_fallthru
      _
    // Predicated region
    $region154: #{tpu_custom_call.1} parent=1 // pred_check
      _
    $region155: #{tpu_custom_call.1} parent=1 // pred_check_branch
      %393 = sbr.rel (0) target = $region157
    $region156: #{tpu_custom_call.1} parent=1 // pred_region
      %s395 = ssub.s32 64, 64
      %396 = vsyncadd [#allocation36], %s395
      %s398 = sshll.u32 [#allocation35], 4
      %s399 = int_to_ptr.vmem [resolvable:$true] %s398
      %401 = dma.hbm_to_vmem [thread:$0]  %s77, 64, %s399, [#allocation36]
    $region157: #{tpu_custom_call.1} parent=1 // pred_fallthru
      _
    // Predicated region
    $region158: #{tpu_custom_call.1} parent=1 // pred_check
      _
    $region159: #{tpu_custom_call.1} parent=1 // pred_check_branch
      %403 = sbr.rel (0) target = $region161
    $region160: #{tpu_custom_call.1} parent=1 // pred_region
      _
    $region161: #{tpu_custom_call.1} parent=1 // pred_fallthru
      _
    // Predicated region
    $region162: #{tpu_custom_call.1} parent=1 // pred_check
      _
    $region163: #{tpu_custom_call.1} parent=1 // pred_check_branch
      %405 = sbr.rel (0) target = $region165
    $region164: #{tpu_custom_call.1} parent=1 // pred_region
      %s407 = ssub.s32 256, 256
      %408 = vsyncadd [#allocation36], %s407
      %s409 = sshll.u32 [#allocation37], 4
      %s410 = int_to_ptr.vmem [resolvable:$true] %s409
      %415 = dma.hbm_to_vmem [thread:$0]  %s81, 256, %s410, [#allocation36], 128, 128, 8
    $region165: #{tpu_custom_call.1} parent=1 // pred_fallthru
      _
    // Predicated region
    $region166: #{tpu_custom_call.1} parent=1 // pred_check
      _
    $region167: #{tpu_custom_call.1} parent=1 // pred_check_branch
      %417 = sbr.rel (0) target = $region169
    $region168: #{tpu_custom_call.1} parent=1 // pred_region
      %s419 = ssub.s32 16, 16
      %420 = vsyncadd [#allocation39], %s419
      %s422 = sshll.u32 [#allocation38], 4
      %s423 = int_to_ptr.vmem [resolvable:$true] %s422
      %425 = dma.hbm_to_vmem [thread:$0]  %s83, 16, %s423, [#allocation39]
    $region169: #{tpu_custom_call.1} parent=1 // pred_fallthru
      _
    // Predicated region
    $region170: #{tpu_custom_call.1} parent=1 // pred_check
      _
    $region171: #{tpu_custom_call.1} parent=1 // pred_check_branch
      %427 = sbr.rel (0) target = $region173
    $region172: #{tpu_custom_call.1} parent=1 // pred_region
      _
    $region173: #{tpu_custom_call.1} parent=1 // pred_fallthru
      _
    // Predicated region
    $region174: #{tpu_custom_call.1} parent=1 // pred_check
      _
    $region175: #{tpu_custom_call.1} parent=1 // pred_check_branch
      %429 = sbr.rel (0) target = $region177
    $region176: #{tpu_custom_call.1} parent=1 // pred_region
      _
    $region177: #{tpu_custom_call.1} parent=1 // pred_fallthru
      _
    // Predicated region
    $region178: #{tpu_custom_call.1} parent=1 // pred_check
      _
    $region179: #{tpu_custom_call.1} parent=1 // pred_check_branch
      %431 = sbr.rel (0) target = $region181
    $region180: #{tpu_custom_call.1} parent=1 // pred_region
      %s433 = ssub.s32 256, 256
      %434 = vsyncadd [#allocation39], %s433
      %s435 = sshll.u32 [#allocation40], 4
      %s436 = int_to_ptr.vmem [resolvable:$true] %s435
      %441 = dma.hbm_to_vmem [thread:$0]  %s89, 256, %s436, [#allocation39], 128, 128, 8
    $region181: #{tpu_custom_call.1} parent=1 // pred_fallthru
      _
    // Predicated region
    $region182: #{tpu_custom_call.1} parent=1 // pred_check
      _
    $region183: #{tpu_custom_call.1} parent=1 // pred_check_branch
      %443 = sbr.rel (0) target = $region185
    $region184: #{tpu_custom_call.1} parent=1 // pred_region
      %s445 = ssub.s32 16, 16
      %446 = vsyncadd [#allocation42], %s445
      %s448 = sshll.u32 [#allocation41], 4
      %s449 = int_to_ptr.vmem [resolvable:$true] %s448
      %451 = dma.hbm_to_vmem [thread:$0]  %s91, 16, %s449, [#allocation42]
    $region185: #{tpu_custom_call.1} parent=1 // pred_fallthru
      _
    // Predicated region
    $region186: #{tpu_custom_call.1} parent=1 // pred_check
      _
    $region187: #{tpu_custom_call.1} parent=1 // pred_check_branch
      %453 = sbr.rel (0) target = $region189
    $region188: #{tpu_custom_call.1} parent=1 // pred_region
      %s455 = ssub.s32 256, 256
      %456 = vsyncadd [#allocation42], %s455
      %s457 = sshll.u32 [#allocation43], 4
      %s458 = int_to_ptr.vmem [resolvable:$true] %s457
      %463 = dma.hbm_to_vmem [thread:$0]  %s93, 256, %s458, [#allocation42], 128, 128, 8
    $region189: #{tpu_custom_call.1} parent=1 // pred_fallthru
      _
    // Predicated region
    $region190: #{tpu_custom_call.1} parent=1 // pred_check
      _
    $region191: #{tpu_custom_call.1} parent=1 // pred_check_branch
      %465 = sbr.rel (0) target = $region193
    $region192: #{tpu_custom_call.1} parent=1 // pred_region
      _
    $region193: #{tpu_custom_call.1} parent=1 // pred_fallthru
      _
    // Predicated region
    $region194: #{tpu_custom_call.1} parent=1 // pred_check
      _
    $region195: #{tpu_custom_call.1} parent=1 // pred_check_branch
      %467 = sbr.rel (0) target = $region197
    $region196: #{tpu_custom_call.1} parent=1 // pred_region
      %s469 = ssub.s32 256, 256
      %470 = vsyncadd [#allocation45], %s469
      %s471 = sshll.u32 [#allocation44], 4
      %s472 = int_to_ptr.vmem [resolvable:$true] %s471
      %477 = dma.hbm_to_vmem [thread:$0]  %s97, 256, %s472, [#allocation45], 128, 128, 8
    $region197: #{tpu_custom_call.1} parent=1 // pred_fallthru
      _
    // Predicated region
    $region198: #{tpu_custom_call.1} parent=1 // pred_check
      _
    $region199: #{tpu_custom_call.1} parent=1 // pred_check_branch
      %479 = sbr.rel (0) target = $region201
    $region200: #{tpu_custom_call.1} parent=1 // pred_region
      _
    $region201: #{tpu_custom_call.1} parent=1 // pred_fallthru
      _
    // Predicated region
    $region202: #{tpu_custom_call.1} parent=1 // pred_check
      _
    $region203: #{tpu_custom_call.1} parent=1 // pred_check_branch
      %481 = sbr.rel (0) target = $region205
    $region204: #{tpu_custom_call.1} parent=1 // pred_region
      _
    $region205: #{tpu_custom_call.1} parent=1 // pred_fallthru
      _
    // Predicated region
    $region206: #{tpu_custom_call.1} parent=1 // pred_check
      _
    $region207: #{tpu_custom_call.1} parent=1 // pred_check_branch
      %483 = sbr.rel (0) target = $region209
    $region208: #{tpu_custom_call.1} parent=1 // pred_region
      _
    $region209: #{tpu_custom_call.1} parent=1 // pred_fallthru
      _
    // Predicated region
    $region210: #{tpu_custom_call.1} parent=1 // pred_check
      _
    $region211: #{tpu_custom_call.1} parent=1 // pred_check_branch
      %485 = sbr.rel (0) target = $region213
    $region212: #{tpu_custom_call.1} parent=1 // pred_region
      %486 = dma.done [#allocation3], 192
    $region213: #{tpu_custom_call.1} parent=1 // pred_fallthru
      _
    // Predicated region
    $region214: #{tpu_custom_call.1} parent=1 // pred_check
      _
    $region215: #{tpu_custom_call.1} parent=1 // pred_check_branch
      %488 = sbr.rel (0) target = $region217
    $region216: #{tpu_custom_call.1} parent=1 // pred_region
      %489 = dma.done [#allocation6], 32
    $region217: #{tpu_custom_call.1} parent=1 // pred_fallthru
      _
    // Predicated region
    $region218: #{tpu_custom_call.1} parent=1 // pred_check
      _
    $region219: #{tpu_custom_call.1} parent=1 // pred_check_branch
      %491 = sbr.rel (0) target = $region221
    $region220: #{tpu_custom_call.1} parent=1 // pred_region
      %492 = dma.done [#allocation6], 16
    $region221: #{tpu_custom_call.1} parent=1 // pred_fallthru
      _
    // Predicated region
    $region222: #{tpu_custom_call.1} parent=1 // pred_check
      _
    $region223: #{tpu_custom_call.1} parent=1 // pred_check_branch
      %494 = sbr.rel (0) target = $region225
    $region224: #{tpu_custom_call.1} parent=1 // pred_region
      %495 = dma.done [#allocation9], 16
    $region225: #{tpu_custom_call.1} parent=1 // pred_fallthru
      _
    // Predicated region
    $region226: #{tpu_custom_call.1} parent=1 // pred_check
      _
    $region227: #{tpu_custom_call.1} parent=1 // pred_check_branch
      %497 = sbr.rel (0) target = $region229
    $region228: #{tpu_custom_call.1} parent=1 // pred_region
      %498 = dma.done [#allocation9], 16
    $region229: #{tpu_custom_call.1} parent=1 // pred_fallthru
      _
    // Predicated region
    $region230: #{tpu_custom_call.1} parent=1 // pred_check
      _
    $region231: #{tpu_custom_call.1} parent=1 // pred_check_branch
      %500 = sbr.rel (0) target = $region233
    $region232: #{tpu_custom_call.1} parent=1 // pred_region
      %501 = dma.done [#allocation12], 256
    $region233: #{tpu_custom_call.1} parent=1 // pred_fallthru
      _
    // Predicated region
    $region234: #{tpu_custom_call.1} parent=1 // pred_check
      _
    $region235: #{tpu_custom_call.1} parent=1 // pred_check_branch
      %503 = sbr.rel (0) target = $region237
    $region236: #{tpu_custom_call.1} parent=1 // pred_region
      %504 = dma.done [#allocation12], 16
    $region237: #{tpu_custom_call.1} parent=1 // pred_fallthru
      _
    // Predicated region
    $region238: #{tpu_custom_call.1} parent=1 // pred_check
      _
    $region239: #{tpu_custom_call.1} parent=1 // pred_check_branch
      %506 = sbr.rel (0) target = $region241
    $region240: #{tpu_custom_call.1} parent=1 // pred_region
      %507 = dma.done [#allocation15], 256
    $region241: #{tpu_custom_call.1} parent=1 // pred_fallthru
      _
    // Predicated region
    $region242: #{tpu_custom_call.1} parent=1 // pred_check
      _
    $region243: #{tpu_custom_call.1} parent=1 // pred_check_branch
      %509 = sbr.rel (0) target = $region245
    $region244: #{tpu_custom_call.1} parent=1 // pred_region
      %510 = dma.done [#allocation15], 16
    $region245: #{tpu_custom_call.1} parent=1 // pred_fallthru
      _
    // Predicated region
    $region246: #{tpu_custom_call.1} parent=1 // pred_check
      _
    $region247: #{tpu_custom_call.1} parent=1 // pred_check_branch
      %512 = sbr.rel (0) target = $region249
    $region248: #{tpu_custom_call.1} parent=1 // pred_region
      %513 = dma.done [#allocation18], 256
    $region249: #{tpu_custom_call.1} parent=1 // pred_fallthru
      _
    // Predicated region
    $region250: #{tpu_custom_call.1} parent=1 // pred_check
      _
    $region251: #{tpu_custom_call.1} parent=1 // pred_check_branch
      %515 = sbr.rel (0) target = $region253
    $region252: #{tpu_custom_call.1} parent=1 // pred_region
      %516 = dma.done [#allocation18], 16
    $region253: #{tpu_custom_call.1} parent=1 // pred_fallthru
      _
    // Predicated region
    $region254: #{tpu_custom_call.1} parent=1 // pred_check
      _
    $region255: #{tpu_custom_call.1} parent=1 // pred_check_branch
      %518 = sbr.rel (0) target = $region257
    $region256: #{tpu_custom_call.1} parent=1 // pred_region
      %519 = dma.done [#allocation21], 256
    $region257: #{tpu_custom_call.1} parent=1 // pred_fallthru
      _
    // Predicated region
    $region258: #{tpu_custom_call.1} parent=1 // pred_check
      _
    $region259: #{tpu_custom_call.1} parent=1 // pred_check_branch
      %521 = sbr.rel (0) target = $region261
    $region260: #{tpu_custom_call.1} parent=1 // pred_region
      %522 = dma.done [#allocation21], 16
    $region261: #{tpu_custom_call.1} parent=1 // pred_fallthru
      _
    // Predicated region
    $region262: #{tpu_custom_call.1} parent=1 // pred_check
      _
    $region263: #{tpu_custom_call.1} parent=1 // pred_check_branch
      %524 = sbr.rel (0) target = $region265
    $region264: #{tpu_custom_call.1} parent=1 // pred_region
      %525 = dma.done [#allocation24], 256
    $region265: #{tpu_custom_call.1} parent=1 // pred_fallthru
      _
    // Predicated region
    $region266: #{tpu_custom_call.1} parent=1 // pred_check
      _
    $region267: #{tpu_custom_call.1} parent=1 // pred_check_branch
      %527 = sbr.rel (0) target = $region269
    $region268: #{tpu_custom_call.1} parent=1 // pred_region
      %528 = dma.done [#allocation24], 16
    $region269: #{tpu_custom_call.1} parent=1 // pred_fallthru
      _
    // Predicated region
    $region270: #{tpu_custom_call.1} parent=1 // pred_check
      _
    $region271: #{tpu_custom_call.1} parent=1 // pred_check_branch
      %530 = sbr.rel (0) target = $region273
    $region272: #{tpu_custom_call.1} parent=1 // pred_region
      %531 = dma.done [#allocation27], 64
    $region273: #{tpu_custom_call.1} parent=1 // pred_fallthru
      _
    // Predicated region
    $region274: #{tpu_custom_call.1} parent=1 // pred_check
      _
    $region275: #{tpu_custom_call.1} parent=1 // pred_check_branch
      %533 = sbr.rel (0) target = $region277
    $region276: #{tpu_custom_call.1} parent=1 // pred_region
      %534 = dma.done [#allocation27], 256
    $region277: #{tpu_custom_call.1} parent=1 // pred_fallthru
      _
    // Predicated region
    $region278: #{tpu_custom_call.1} parent=1 // pred_check
      _
    $region279: #{tpu_custom_call.1} parent=1 // pred_check_branch
      %536 = sbr.rel (0) target = $region281
    $region280: #{tpu_custom_call.1} parent=1 // pred_region
      %537 = dma.done [#allocation30], 16
    $region281: #{tpu_custom_call.1} parent=1 // pred_fallthru
      _
    // Predicated region
    $region282: #{tpu_custom_call.1} parent=1 // pred_check
      _
    $region283: #{tpu_custom_call.1} parent=1 // pred_check_branch
      %539 = sbr.rel (0) target = $region285
    $region284: #{tpu_custom_call.1} parent=1 // pred_region
      %540 = dma.done [#allocation30], 256
    $region285: #{tpu_custom_call.1} parent=1 // pred_fallthru
      _
    // Predicated region
    $region286: #{tpu_custom_call.1} parent=1 // pred_check
      _
    $region287: #{tpu_custom_call.1} parent=1 // pred_check_branch
      %542 = sbr.rel (0) target = $region289
    $region288: #{tpu_custom_call.1} parent=1 // pred_region
      %543 = dma.done [#allocation33], 16
    $region289: #{tpu_custom_call.1} parent=1 // pred_fallthru
      _
    // Predicated region
    $region290: #{tpu_custom_call.1} parent=1 // pred_check
      _
    $region291: #{tpu_custom_call.1} parent=1 // pred_check_branch
      %545 = sbr.rel (0) target = $region293
    $region292: #{tpu_custom_call.1} parent=1 // pred_region
      %546 = dma.done [#allocation33], 16
    $region293: #{tpu_custom_call.1} parent=1 // pred_fallthru
      _
    // Predicated region
    $region294: #{tpu_custom_call.1} parent=1 // pred_check
      _
    $region295: #{tpu_custom_call.1} parent=1 // pred_check_branch
      %548 = sbr.rel (0) target = $region297
    $region296: #{tpu_custom_call.1} parent=1 // pred_region
      %549 = dma.done [#allocation36], 64
    $region297: #{tpu_custom_call.1} parent=1 // pred_fallthru
      _
    // Predicated region
    $region298: #{tpu_custom_call.1} parent=1 // pred_check
      _
    $region299: #{tpu_custom_call.1} parent=1 // pred_check_branch
      %551 = sbr.rel (0) target = $region301
    $region300: #{tpu_custom_call.1} parent=1 // pred_region
      %552 = dma.done [#allocation36], 256
    $region301: #{tpu_custom_call.1} parent=1 // pred_fallthru
      _
    // Predicated region
    $region302: #{tpu_custom_call.1} parent=1 // pred_check
      _
    $region303: #{tpu_custom_call.1} parent=1 // pred_check_branch
      %554 = sbr.rel (0) target = $region305
    $region304: #{tpu_custom_call.1} parent=1 // pred_region
      %555 = dma.done [#allocation39], 16
    $region305: #{tpu_custom_call.1} parent=1 // pred_fallthru
      _
    // Predicated region
    $region306: #{tpu_custom_call.1} parent=1 // pred_check
      _
    $region307: #{tpu_custom_call.1} parent=1 // pred_check_branch
      %557 = sbr.rel (0) target = $region309
    $region308: #{tpu_custom_call.1} parent=1 // pred_region
      %558 = dma.done [#allocation39], 256
    $region309: #{tpu_custom_call.1} parent=1 // pred_fallthru
      _
    // Predicated region
    $region310: #{tpu_custom_call.1} parent=1 // pred_check
      _
    $region311: #{tpu_custom_call.1} parent=1 // pred_check_branch
      %560 = sbr.rel (0) target = $region313
    $region312: #{tpu_custom_call.1} parent=1 // pred_region
      %561 = dma.done [#allocation42], 16
    $region313: #{tpu_custom_call.1} parent=1 // pred_fallthru
      _
    // Predicated region
    $region314: #{tpu_custom_call.1} parent=1 // pred_check
      _
    $region315: #{tpu_custom_call.1} parent=1 // pred_check_branch
      %563 = sbr.rel (0) target = $region317
    $region316: #{tpu_custom_call.1} parent=1 // pred_region
      %564 = dma.done [#allocation42], 256
    $region317: #{tpu_custom_call.1} parent=1 // pred_fallthru
      _
    // Predicated region
    $region318: #{tpu_custom_call.1} parent=1 // pred_check
      _
    $region319: #{tpu_custom_call.1} parent=1 // pred_check_branch
      %566 = sbr.rel (0) target = $region321
    $region320: #{tpu_custom_call.1} parent=1 // pred_region
      %567 = dma.done [#allocation45], 256
    $region321: #{tpu_custom_call.1} parent=1 // pred_fallthru
      _
    %v568 = vld [vmem:[#allocation5] sm:$0x3]
    %v569 = vmul.f32 %v568, %v568
    %vm570 = vcmask 254976
    %v571 = vsel %vm570, %v569, 0.0
    %572 = vadd.xlane.f32.xlu0 %v571
    %v573 = vpop.xlane.xlu0 %572
    %v574 = vrcp.pop 32.0
    %v575 = vmul.f32 %v573, %v574
    %v576 = vadd.f32 %v575, 1e-08
    %v577 = vrsqrt.pop %v576
    %v578 = vmul.f32 %v568, %v577
    %v579 = vld [vmem:[%s9] sm:$0xff]
    %v580 = vld [vmem:[%s9 + $0x8] sm:$0xff]
    %v581 = vld [vmem:[%s9 + $0x10] sm:$0xff]
    %v582 = vld [vmem:[%s9 + $0x18] sm:$0xff]
    %v583 = vld [vmem:[#allocation7] sm:$0x1]
    %v585 = vlaneseq
    %v586 = vshrl.u32 %v585, 7
    %v587 = vsub.s32 0, %v586
    %v588 = vrot.slane %v583, %v587
    %vm590 = vcmask 261120
    %v592 = vsel %vm590, %v578, 0
    %594 = vmatprep.subr.mxu0 0.0
    %595 = vmatpush1.msra.mxu0 0.0
    %596 = vmatprep.subr.mxu0 0.0
    %597 = vmatpush1.msra.mxu0 0.0
    %598 = vmatprep.subr.mxu0 0.0
    %599 = vmatpush1.msra.mxu0 0.0
    %600 = vmatprep.subr.mxu0 0.0
    %601 = vmatpush1.msra.mxu0 0.0
    %602 = vmatprep.subr.mxu0 0.0
    %603 = vmatpush1.msra.mxu0 0.0
    %604 = vmatprep.subr.mxu0 0.0
    %605 = vmatpush1.msra.mxu0 0.0
    %606 = vmatprep.subr.mxu0 0.0
    %607 = vmatpush1.msra.mxu0 0.0
    %608 = vmatprep.subr.mxu0 0.0
    %609 = vmatpush1.msra.mxu0 0.0
    %610 = vmatprep.subr.mxu0 0.0
    %611 = vmatpush1.msra.mxu0 0.0
    %612 = vmatprep.subr.mxu0 0.0
    %613 = vmatpush1.msra.mxu0 0.0
    %614 = vmatprep.subr.mxu0 0.0
    %615 = vmatpush1.msra.mxu0 0.0
    %616 = vmatprep.subr.mxu0 0.0
    %617 = vmatpush1.msra.mxu0 0.0
    %618 = vmatprep.subr.mxu0 0.0
    %619 = vmatpush1.msra.mxu0 %v582
    %620 = vmatprep.subr.mxu0 0.0
    %621 = vmatpush1.msra.mxu0 %v581
    %622 = vmatprep.subr.mxu0 0.0
    %623 = vmatpush1.msra.mxu0 %v580
    %624 = vmatprep.subr.mxu0 0.0
    %625 = vmatpush1.msra.mxu0 %v579
    %626 = vmatprep.subr.mxu0 0.0
    %627 = vmatpush2.msra.mxu0 0.0
    %628 = vmatprep.subr.mxu0 0.0
    %629 = vmatpush2.msra.mxu0 0.0
    %630 = vmatprep.subr.mxu0 0.0
    %631 = vmatpush2.msra.mxu0 0.0
    %632 = vmatprep.subr.mxu0 0.0
    %633 = vmatpush2.msra.mxu0 0.0
    %634 = vmatprep.subr.mxu0 0.0
    %635 = vmatpush2.msra.mxu0 0.0
    %636 = vmatprep.subr.mxu0 0.0
    %637 = vmatpush2.msra.mxu0 0.0
    %638 = vmatprep.subr.mxu0 0.0
    %639 = vmatpush2.msra.mxu0 0.0
    %640 = vmatprep.subr.mxu0 0.0
    %641 = vmatpush2.msra.mxu0 0.0
    %642 = vmatprep.subr.mxu0 0.0
    %643 = vmatpush2.msra.mxu0 0.0
    %644 = vmatprep.subr.mxu0 0.0
    %645 = vmatpush2.msra.mxu0 0.0
    %646 = vmatprep.subr.mxu0 0.0
    %647 = vmatpush2.msra.mxu0 0.0
    %648 = vmatprep.subr.mxu0 0.0
    %649 = vmatpush2.msra.mxu0 0.0
    %650 = vmatprep.subr.mxu0 0.0
    %651 = vmatpush2.msra.mxu0 0.0
    %652 = vmatprep.subr.mxu0 0.0
    %653 = vmatpush2.msra.mxu0 0.0
    %654 = vmatprep.subr.mxu0 0.0
    %655 = vmatpush2.msra.mxu0 0.0
    %656 = vmatprep.subr.mxu0 0.0
    %657 = vmatpush2.msra.mxu0 0.0
    %658 = vmatprep.mubr.f32.mxu0 0.0
    %659 = vmatmul.mubr.f32.gmra.mxu0 %v592
    %v660 = vpop.f32.mrf.mxu0
    %v661 = vadd.f32 %v588, %v660
    %v662 = vpop.f32.mrf.mxu0
    %663 = vdwg.mxu0
    %vm664 = vcmp.ge.f32.partialorder %v661, 0.0
    %v665 = vmul.f32 %v661, 0.2
    %v666 = vsel %vm664, %v661, %v665
    %v667 = vmul.f32 %v666, 1.4142135
    %v668 = vld [vmem:[%s13] sm:$0xff]
    %v669 = vld [vmem:[%s13 + $0x8] sm:$0xff]
    %v670 = vld [vmem:[%s13 + $0x10] sm:$0xff]
    %v671 = vld [vmem:[%s13 + $0x18] sm:$0xff]
    %v672 = vld [vmem:[#allocation8] sm:$0x1]
    %v674 = vlaneseq
    %v675 = vshrl.u32 %v674, 7
    %v676 = vsub.s32 0, %v675
    %v677 = vrot.slane %v672, %v676
    %v680 = vsel %vm590, %v667, 0
    %682 = vmatprep.subr.mxu0 0.0
    %683 = vmatpush1.msra.mxu0 0.0
    %684 = vmatprep.subr.mxu0 0.0
    %685 = vmatpush1.msra.mxu0 0.0
    %686 = vmatprep.subr.mxu0 0.0
    %687 = vmatpush1.msra.mxu0 0.0
    %688 = vmatprep.subr.mxu0 0.0
    %689 = vmatpush1.msra.mxu0 0.0
    %690 = vmatprep.subr.mxu0 0.0
    %691 = vmatpush1.msra.mxu0 0.0
    %692 = vmatprep.subr.mxu0 0.0
    %693 = vmatpush1.msra.mxu0 0.0
    %694 = vmatprep.subr.mxu0 0.0
    %695 = vmatpush1.msra.mxu0 0.0
    %696 = vmatprep.subr.mxu0 0.0
    %697 = vmatpush1.msra.mxu0 0.0
    %698 = vmatprep.subr.mxu0 0.0
    %699 = vmatpush1.msra.mxu0 0.0
    %700 = vmatprep.subr.mxu0 0.0
    %701 = vmatpush1.msra.mxu0 0.0
    %702 = vmatprep.subr.mxu0 0.0
    %703 = vmatpush1.msra.mxu0 0.0
    %704 = vmatprep.subr.mxu0 0.0
    %705 = vmatpush1.msra.mxu0 0.0
    %706 = vmatprep.subr.mxu0 0.0
    %707 = vmatpush1.msra.mxu0 %v671
    %708 = vmatprep.subr.mxu0 0.0
    %709 = vmatpush1.msra.mxu0 %v670
    %710 = vmatprep.subr.mxu0 0.0
    %711 = vmatpush1.msra.mxu0 %v669
    %712 = vmatprep.subr.mxu0 0.0
    %713 = vmatpush1.msra.mxu0 %v668
    %714 = vmatprep.subr.mxu0 0.0
    %715 = vmatpush2.msra.mxu0 0.0
    %716 = vmatprep.subr.mxu0 0.0
    %717 = vmatpush2.msra.mxu0 0.0
    %718 = vmatprep.subr.mxu0 0.0
    %719 = vmatpush2.msra.mxu0 0.0
    %720 = vmatprep.subr.mxu0 0.0
    %721 = vmatpush2.msra.mxu0 0.0
    %722 = vmatprep.subr.mxu0 0.0
    %723 = vmatpush2.msra.mxu0 0.0
    %724 = vmatprep.subr.mxu0 0.0
    %725 = vmatpush2.msra.mxu0 0.0
    %726 = vmatprep.subr.mxu0 0.0
    %727 = vmatpush2.msra.mxu0 0.0
    %728 = vmatprep.subr.mxu0 0.0
    %729 = vmatpush2.msra.mxu0 0.0
    %730 = vmatprep.subr.mxu0 0.0
    %731 = vmatpush2.msra.mxu0 0.0
    %732 = vmatprep.subr.mxu0 0.0
    %733 = vmatpush2.msra.mxu0 0.0
    %734 = vmatprep.subr.mxu0 0.0
    %735 = vmatpush2.msra.mxu0 0.0
    %736 = vmatprep.subr.mxu0 0.0
    %737 = vmatpush2.msra.mxu0 0.0
    %738 = vmatprep.subr.mxu0 0.0
    %739 = vmatpush2.msra.mxu0 0.0
    %740 = vmatprep.subr.mxu0 0.0
    %741 = vmatpush2.msra.mxu0 0.0
    %742 = vmatprep.subr.mxu0 0.0
    %743 = vmatpush2.msra.mxu0 0.0
    %744 = vmatprep.subr.mxu0 0.0
    %745 = vmatpush2.msra.mxu0 0.0
    %746 = vmatprep.mubr.f32.mxu0 0.0
    %747 = vmatmul.mubr.f32.gmra.mxu0 %v680
    %v748 = vpop.f32.mrf.mxu0
    %v749 = vadd.f32 %v677, %v748
    %v750 = vpop.f32.mrf.mxu0
    %751 = vdwg.mxu0
    %vm752 = vcmp.ge.f32.partialorder %v749, 0.0
    %v753 = vmul.f32 %v749, 0.2
    %v754 = vsel %vm752, %v749, %v753
    %v755 = vmul.f32 %v754, 1.4142135
    %v756 = vld [vmem:[%s5] sm:$0x7]
    %v757 = vld [vmem:[%s5 + $0x4] sm:$0x7]
    %vm758 = vcmask 124928
    %v759 = vsel %vm758, %v756, 0.0
    %v760 = vrot.slane %v759, 4
    %v761 = vadd.f32 %v759, %v760
    %v762 = vrot.slane %v761, 2
    %v763 = vadd.f32 %v761, %v762
    %v764 = vrot.slane %v763, 1
    %v765 = vadd.f32 %v763, %v764
    %v766 = vsel %vm758, %v757, 0.0
    %v767 = vrot.slane %v766, 4
    %v768 = vadd.f32 %v766, %v767
    %v769 = vrot.slane %v768, 2
    %v770 = vadd.f32 %v768, %v769
    %v771 = vrot.slane %v770, 1
    %v772 = vadd.f32 %v770, %v771
    %v773 = vrcp.pop 3.0
    %v774 = vmul.f32 %v765, %v773
    %v775 = vmul.f32 %v772, %v773
    %v776 = vld [vmem:[%s17] sm:$0xff]
    %v777 = vld [vmem:[%s17 + $0x8] sm:$0xff]
    %v778 = vld [vmem:[%s17 + $0x10] sm:$0xff]
    %v779 = vld [vmem:[%s17 + $0x18] sm:$0xff]
    %v780 = vld [vmem:[%s17 + $0x20] sm:$0xff]
    %v781 = vld [vmem:[%s17 + $0x28] sm:$0xff]
    %v783 = vsel %vm590, %v755, 0
    %785 = vmatprep.subr.mxu0 0.0
    %786 = vmatpush1.msra.mxu0 0.0
    %787 = vmatprep.subr.mxu0 0.0
    %788 = vmatpush1.msra.mxu0 0.0
    %789 = vmatprep.subr.mxu0 0.0
    %790 = vmatpush1.msra.mxu0 0.0
    %791 = vmatprep.subr.mxu0 0.0
    %792 = vmatpush1.msra.mxu0 0.0
    %793 = vmatprep.subr.mxu0 0.0
    %794 = vmatpush1.msra.mxu0 0.0
    %795 = vmatprep.subr.mxu0 0.0
    %796 = vmatpush1.msra.mxu0 0.0
    %797 = vmatprep.subr.mxu0 0.0
    %798 = vmatpush1.msra.mxu0 0.0
    %799 = vmatprep.subr.mxu0 0.0
    %800 = vmatpush1.msra.mxu0 0.0
    %801 = vmatprep.subr.mxu0 0.0
    %802 = vmatpush1.msra.mxu0 0.0
    %803 = vmatprep.subr.mxu0 0.0
    %804 = vmatpush1.msra.mxu0 0.0
    %805 = vmatprep.subr.mxu0 0.0
    %806 = vmatpush1.msra.mxu0 0.0
    %807 = vmatprep.subr.mxu0 0.0
    %808 = vmatpush1.msra.mxu0 0.0
    %809 = vmatprep.subr.mxu0 0.0
    %810 = vmatpush1.msra.mxu0 %v781
    %811 = vmatprep.subr.mxu0 0.0
    %812 = vmatpush1.msra.mxu0 %v780
    %813 = vmatprep.subr.mxu0 0.0
    %814 = vmatpush1.msra.mxu0 %v779
    %815 = vmatprep.subr.mxu0 0.0
    %816 = vmatpush1.msra.mxu0 %v778
    %817 = vmatprep.subr.mxu0 0.0
    %818 = vmatpush2.msra.mxu0 0.0
    %819 = vmatprep.subr.mxu0 0.0
    %820 = vmatpush2.msra.mxu0 0.0
    %821 = vmatprep.subr.mxu0 0.0
    %822 = vmatpush2.msra.mxu0 0.0
    %823 = vmatprep.subr.mxu0 0.0
    %824 = vmatpush2.msra.mxu0 0.0
    %825 = vmatprep.subr.mxu0 0.0
    %826 = vmatpush2.msra.mxu0 0.0
    %827 = vmatprep.subr.mxu0 0.0
    %828 = vmatpush2.msra.mxu0 0.0
    %829 = vmatprep.subr.mxu0 0.0
    %830 = vmatpush2.msra.mxu0 0.0
    %831 = vmatprep.subr.mxu0 0.0
    %832 = vmatpush2.msra.mxu0 0.0
    %833 = vmatprep.subr.mxu0 0.0
    %834 = vmatpush2.msra.mxu0 0.0
    %835 = vmatprep.subr.mxu0 0.0
    %836 = vmatpush2.msra.mxu0 0.0
    %837 = vmatprep.subr.mxu0 0.0
    %838 = vmatpush2.msra.mxu0 0.0
    %839 = vmatprep.subr.mxu0 0.0
    %840 = vmatpush2.msra.mxu0 0.0
    %841 = vmatprep.subr.mxu0 0.0
    %842 = vmatpush2.msra.mxu0 0.0
    %843 = vmatprep.subr.mxu0 0.0
    %844 = vmatpush2.msra.mxu0 0.0
    %845 = vmatprep.subr.mxu0 0.0
    %846 = vmatpush2.msra.mxu0 0.0
    %847 = vmatprep.subr.mxu0 0.0
    %848 = vmatpush2.msra.mxu0 0.0
    %849 = vmatprep.mubr.f32.mxu0 0.0
    %850 = vmatmul.mubr.f32.gmra.mxu0 %v783
    %v851 = vpop.f32.mrf.mxu0
    %v852 = vadd.f32 0.0, %v851
    %v853 = vpop.f32.mrf.mxu0
    %854 = vdwg.mxu0
    %vm857 = vcmask 1041409
    %v858 = vsel %vm857, %v775, %v774
    %vm859 = vcmask 130048
    %v860 = vsel %vm859, %v858, 0
    %862 = vmatprep.subr.mxu0 0.0
    %863 = vmatpush1.msra.mxu0 0.0
    %864 = vmatprep.subr.mxu0 0.0
    %865 = vmatpush1.msra.mxu0 0.0
    %866 = vmatprep.subr.mxu0 0.0
    %867 = vmatpush1.msra.mxu0 0.0
    %868 = vmatprep.subr.mxu0 0.0
    %869 = vmatpush1.msra.mxu0 0.0
    %870 = vmatprep.subr.mxu0 0.0
    %871 = vmatpush1.msra.mxu0 0.0
    %872 = vmatprep.subr.mxu0 0.0
    %873 = vmatpush1.msra.mxu0 0.0
    %874 = vmatprep.subr.mxu0 0.0
    %875 = vmatpush1.msra.mxu0 0.0
    %876 = vmatprep.subr.mxu0 0.0
    %877 = vmatpush1.msra.mxu0 0.0
    %878 = vmatprep.subr.mxu0 0.0
    %879 = vmatpush1.msra.mxu0 0.0
    %880 = vmatprep.subr.mxu0 0.0
    %881 = vmatpush1.msra.mxu0 0.0
    %882 = vmatprep.subr.mxu0 0.0
    %883 = vmatpush1.msra.mxu0 0.0
    %884 = vmatprep.subr.mxu0 0.0
    %885 = vmatpush1.msra.mxu0 0.0
    %886 = vmatprep.subr.mxu0 0.0
    %887 = vmatpush1.msra.mxu0 0.0
    %888 = vmatprep.subr.mxu0 0.0
    %889 = vmatpush1.msra.mxu0 0.0
    %890 = vmatprep.subr.mxu0 0.0
    %891 = vmatpush1.msra.mxu0 %v777
    %892 = vmatprep.subr.mxu0 0.0
    %893 = vmatpush1.msra.mxu0 %v776
    %894 = vmatprep.subr.mxu0 0.0
    %895 = vmatpush2.msra.mxu0 0.0
    %896 = vmatprep.subr.mxu0 0.0
    %897 = vmatpush2.msra.mxu0 0.0
    %898 = vmatprep.subr.mxu0 0.0
    %899 = vmatpush2.msra.mxu0 0.0
    %900 = vmatprep.subr.mxu0 0.0
    %901 = vmatpush2.msra.mxu0 0.0
    %902 = vmatprep.subr.mxu0 0.0
    %903 = vmatpush2.msra.mxu0 0.0
    %904 = vmatprep.subr.mxu0 0.0
    %905 = vmatpush2.msra.mxu0 0.0
    %906 = vmatprep.subr.mxu0 0.0
    %907 = vmatpush2.msra.mxu0 0.0
    %908 = vmatprep.subr.mxu0 0.0
    %909 = vmatpush2.msra.mxu0 0.0
    %910 = vmatprep.subr.mxu0 0.0
    %911 = vmatpush2.msra.mxu0 0.0
    %912 = vmatprep.subr.mxu0 0.0
    %913 = vmatpush2.msra.mxu0 0.0
    %914 = vmatprep.subr.mxu0 0.0
    %915 = vmatpush2.msra.mxu0 0.0
    %916 = vmatprep.subr.mxu0 0.0
    %917 = vmatpush2.msra.mxu0 0.0
    %918 = vmatprep.subr.mxu0 0.0
    %919 = vmatpush2.msra.mxu0 0.0
    %920 = vmatprep.subr.mxu0 0.0
    %921 = vmatpush2.msra.mxu0 0.0
    %922 = vmatprep.subr.mxu0 0.0
    %923 = vmatpush2.msra.mxu0 0.0
    %924 = vmatprep.subr.mxu0 0.0
    %925 = vmatpush2.msra.mxu0 0.0
    %926 = vmatprep.mubr.f32.mxu0 0.0
    %927 = vmatmul.mubr.f32.gmra.mxu0 %v860
    %v928 = vpop.f32.mrf.mxu0
    %v929 = vadd.f32 %v852, %v928
    %v930 = vpop.f32.mrf.mxu0
    %931 = vdwg.mxu0
    %v932 = vld [vmem:[#allocation10] sm:$0x1]
    %v934 = vlaneseq
    %v935 = vshrl.u32 %v934, 7
    %v936 = vsub.s32 0, %v935
    %v937 = vrot.slane %v932, %v936
    %v939 = vadd.f32 %v929, %v937
    %vm940 = vcmp.ge.f32.partialorder %v939, 0.0
    %v941 = vmul.f32 %v939, 0.2
    %v942 = vsel %vm940, %v939, %v941
    %v943 = vmul.f32 %v942, 1.4142135
    %v944 = vld [vmem:[#allocation11] sm:$0xff]
    %v945 = vld [vmem:[#allocation11 + $0x8] sm:$0xff]
    %v946 = vld [vmem:[#allocation13] sm:$0x1]
    %v948 = vlaneseq
    %v949 = vshrl.u32 %v948, 7
    %v950 = vsub.s32 0, %v949
    %v951 = vrot.slane %v946, %v950
    %v954 = vsel %vm859, %v943, 0
    %956 = vmatprep.subr.mxu0 0.0
    %957 = vmatpush1.msra.mxu0 0.0
    %958 = vmatprep.subr.mxu0 0.0
    %959 = vmatpush1.msra.mxu0 0.0
    %960 = vmatprep.subr.mxu0 0.0
    %961 = vmatpush1.msra.mxu0 0.0
    %962 = vmatprep.subr.mxu0 0.0
    %963 = vmatpush1.msra.mxu0 0.0
    %964 = vmatprep.subr.mxu0 0.0
    %965 = vmatpush1.msra.mxu0 0.0
    %966 = vmatprep.subr.mxu0 0.0
    %967 = vmatpush1.msra.mxu0 0.0
    %968 = vmatprep.subr.mxu0 0.0
    %969 = vmatpush1.msra.mxu0 0.0
    %970 = vmatprep.subr.mxu0 0.0
    %971 = vmatpush1.msra.mxu0 0.0
    %972 = vmatprep.subr.mxu0 0.0
    %973 = vmatpush1.msra.mxu0 0.0
    %974 = vmatprep.subr.mxu0 0.0
    %975 = vmatpush1.msra.mxu0 0.0
    %976 = vmatprep.subr.mxu0 0.0
    %977 = vmatpush1.msra.mxu0 0.0
    %978 = vmatprep.subr.mxu0 0.0
    %979 = vmatpush1.msra.mxu0 0.0
    %980 = vmatprep.subr.mxu0 0.0
    %981 = vmatpush1.msra.mxu0 0.0
    %982 = vmatprep.subr.mxu0 0.0
    %983 = vmatpush1.msra.mxu0 0.0
    %984 = vmatprep.subr.mxu0 0.0
    %985 = vmatpush1.msra.mxu0 %v945
    %986 = vmatprep.subr.mxu0 0.0
    %987 = vmatpush1.msra.mxu0 %v944
    %988 = vmatprep.subr.mxu0 0.0
    %989 = vmatpush2.msra.mxu0 0.0
    %990 = vmatprep.subr.mxu0 0.0
    %991 = vmatpush2.msra.mxu0 0.0
    %992 = vmatprep.subr.mxu0 0.0
    %993 = vmatpush2.msra.mxu0 0.0
    %994 = vmatprep.subr.mxu0 0.0
    %995 = vmatpush2.msra.mxu0 0.0
    %996 = vmatprep.subr.mxu0 0.0
    %997 = vmatpush2.msra.mxu0 0.0
    %998 = vmatprep.subr.mxu0 0.0
    %999 = vmatpush2.msra.mxu0 0.0
    %1000 = vmatprep.subr.mxu0 0.0
    %1001 = vmatpush2.msra.mxu0 0.0
    %1002 = vmatprep.subr.mxu0 0.0
    %1003 = vmatpush2.msra.mxu0 0.0
    %1004 = vmatprep.subr.mxu0 0.0
    %1005 = vmatpush2.msra.mxu0 0.0
    %1006 = vmatprep.subr.mxu0 0.0
    %1007 = vmatpush2.msra.mxu0 0.0
    %1008 = vmatprep.subr.mxu0 0.0
    %1009 = vmatpush2.msra.mxu0 0.0
    %1010 = vmatprep.subr.mxu0 0.0
    %1011 = vmatpush2.msra.mxu0 0.0
    %1012 = vmatprep.subr.mxu0 0.0
    %1013 = vmatpush2.msra.mxu0 0.0
    %1014 = vmatprep.subr.mxu0 0.0
    %1015 = vmatpush2.msra.mxu0 0.0
    %1016 = vmatprep.subr.mxu0 0.0
    %1017 = vmatpush2.msra.mxu0 0.0
    %1018 = vmatprep.subr.mxu0 0.0
    %1019 = vmatpush2.msra.mxu0 0.0
    %1020 = vmatprep.mubr.f32.mxu0 0.0
    %1021 = vmatmul.mubr.f32.gmra.mxu0 %v954
    %v1022 = vpop.f32.mrf.mxu0
    %v1023 = vadd.f32 %v951, %v1022
    %v1024 = vpop.f32.mrf.mxu0
    %1025 = vdwg.mxu0
    %vm1026 = vcmp.ge.f32.partialorder %v1023, 0.0
    %v1027 = vmul.f32 %v1023, 0.2
    %v1028 = vsel %vm1026, %v1023, %v1027
    %v1029 = vmul.f32 %v1028, 1.4142135
    %vm1030 = vcmask 123904
    %1031 = vst.msk [vmem:[#allocation47] sm:$0x3] %vm1030, %v1029
    %v1032 = vld [vmem:[#allocation14] sm:$0xff]
    %v1033 = vld [vmem:[#allocation14 + $0x8] sm:$0xff]
    %v1034 = vld [vmem:[#allocation16] sm:$0x1]
    %v1036 = vlaneseq
    %v1037 = vshrl.u32 %v1036, 7
    %v1038 = vsub.s32 0, %v1037
    %v1039 = vrot.slane %v1034, %v1038
    %v1042 = vsel %vm859, %v1029, 0
    %1044 = vmatprep.subr.mxu0 0.0
    %1045 = vmatpush1.msra.mxu0 0.0
    %1046 = vmatprep.subr.mxu0 0.0
    %1047 = vmatpush1.msra.mxu0 0.0
    %1048 = vmatprep.subr.mxu0 0.0
    %1049 = vmatpush1.msra.mxu0 0.0
    %1050 = vmatprep.subr.mxu0 0.0
    %1051 = vmatpush1.msra.mxu0 0.0
    %1052 = vmatprep.subr.mxu0 0.0
    %1053 = vmatpush1.msra.mxu0 0.0
    %1054 = vmatprep.subr.mxu0 0.0
    %1055 = vmatpush1.msra.mxu0 0.0
    %1056 = vmatprep.subr.mxu0 0.0
    %1057 = vmatpush1.msra.mxu0 0.0
    %1058 = vmatprep.subr.mxu0 0.0
    %1059 = vmatpush1.msra.mxu0 0.0
    %1060 = vmatprep.subr.mxu0 0.0
    %1061 = vmatpush1.msra.mxu0 0.0
    %1062 = vmatprep.subr.mxu0 0.0
    %1063 = vmatpush1.msra.mxu0 0.0
    %1064 = vmatprep.subr.mxu0 0.0
    %1065 = vmatpush1.msra.mxu0 0.0
    %1066 = vmatprep.subr.mxu0 0.0
    %1067 = vmatpush1.msra.mxu0 0.0
    %1068 = vmatprep.subr.mxu0 0.0
    %1069 = vmatpush1.msra.mxu0 0.0
    %1070 = vmatprep.subr.mxu0 0.0
    %1071 = vmatpush1.msra.mxu0 0.0
    %1072 = vmatprep.subr.mxu0 0.0
    %1073 = vmatpush1.msra.mxu0 %v1033
    %1074 = vmatprep.subr.mxu0 0.0
    %1075 = vmatpush1.msra.mxu0 %v1032
    %1076 = vmatprep.subr.mxu0 0.0
    %1077 = vmatpush2.msra.mxu0 0.0
    %1078 = vmatprep.subr.mxu0 0.0
    %1079 = vmatpush2.msra.mxu0 0.0
    %1080 = vmatprep.subr.mxu0 0.0
    %1081 = vmatpush2.msra.mxu0 0.0
    %1082 = vmatprep.subr.mxu0 0.0
    %1083 = vmatpush2.msra.mxu0 0.0
    %1084 = vmatprep.subr.mxu0 0.0
    %1085 = vmatpush2.msra.mxu0 0.0
    %1086 = vmatprep.subr.mxu0 0.0
    %1087 = vmatpush2.msra.mxu0 0.0
    %1088 = vmatprep.subr.mxu0 0.0
    %1089 = vmatpush2.msra.mxu0 0.0
    %1090 = vmatprep.subr.mxu0 0.0
    %1091 = vmatpush2.msra.mxu0 0.0
    %1092 = vmatprep.subr.mxu0 0.0
    %1093 = vmatpush2.msra.mxu0 0.0
    %1094 = vmatprep.subr.mxu0 0.0
    %1095 = vmatpush2.msra.mxu0 0.0
    %1096 = vmatprep.subr.mxu0 0.0
    %1097 = vmatpush2.msra.mxu0 0.0
    %1098 = vmatprep.subr.mxu0 0.0
    %1099 = vmatpush2.msra.mxu0 0.0
    %1100 = vmatprep.subr.mxu0 0.0
    %1101 = vmatpush2.msra.mxu0 0.0
    %1102 = vmatprep.subr.mxu0 0.0
    %1103 = vmatpush2.msra.mxu0 0.0
    %1104 = vmatprep.subr.mxu0 0.0
    %1105 = vmatpush2.msra.mxu0 0.0
    %1106 = vmatprep.subr.mxu0 0.0
    %1107 = vmatpush2.msra.mxu0 0.0
    %1108 = vmatprep.mubr.f32.mxu0 0.0
    %1109 = vmatmul.mubr.f32.gmra.mxu0 %v1042
    %v1110 = vpop.f32.mrf.mxu0
    %v1111 = vadd.f32 %v1039, %v1110
    %v1112 = vpop.f32.mrf.mxu0
    %1113 = vdwg.mxu0
    %v1114 = vmul.f32 %v1111, 0.25
    %v1115 = vld [vmem:[#allocation17] sm:$0xff]
    %v1116 = vld [vmem:[#allocation17 + $0x8] sm:$0xff]
    %v1117 = vld [vmem:[#allocation19] sm:$0x1]
    %v1119 = vlaneseq
    %v1120 = vshrl.u32 %v1119, 7
    %v1121 = vsub.s32 0, %v1120
    %v1122 = vrot.slane %v1117, %v1121
    %1124 = vmatprep.subr.mxu0 0.0
    %1125 = vmatpush1.msra.mxu0 0.0
    %1126 = vmatprep.subr.mxu0 0.0
    %1127 = vmatpush1.msra.mxu0 0.0
    %1128 = vmatprep.subr.mxu0 0.0
    %1129 = vmatpush1.msra.mxu0 0.0
    %1130 = vmatprep.subr.mxu0 0.0
    %1131 = vmatpush1.msra.mxu0 0.0
    %1132 = vmatprep.subr.mxu0 0.0
    %1133 = vmatpush1.msra.mxu0 0.0
    %1134 = vmatprep.subr.mxu0 0.0
    %1135 = vmatpush1.msra.mxu0 0.0
    %1136 = vmatprep.subr.mxu0 0.0
    %1137 = vmatpush1.msra.mxu0 0.0
    %1138 = vmatprep.subr.mxu0 0.0
    %1139 = vmatpush1.msra.mxu0 0.0
    %1140 = vmatprep.subr.mxu0 0.0
    %1141 = vmatpush1.msra.mxu0 0.0
    %1142 = vmatprep.subr.mxu0 0.0
    %1143 = vmatpush1.msra.mxu0 0.0
    %1144 = vmatprep.subr.mxu0 0.0
    %1145 = vmatpush1.msra.mxu0 0.0
    %1146 = vmatprep.subr.mxu0 0.0
    %1147 = vmatpush1.msra.mxu0 0.0
    %1148 = vmatprep.subr.mxu0 0.0
    %1149 = vmatpush1.msra.mxu0 0.0
    %1150 = vmatprep.subr.mxu0 0.0
    %1151 = vmatpush1.msra.mxu0 0.0
    %1152 = vmatprep.subr.mxu0 0.0
    %1153 = vmatpush1.msra.mxu0 %v1116
    %1154 = vmatprep.subr.mxu0 0.0
    %1155 = vmatpush1.msra.mxu0 %v1115
    %1156 = vmatprep.subr.mxu0 0.0
    %1157 = vmatpush2.msra.mxu0 0.0
    %1158 = vmatprep.subr.mxu0 0.0
    %1159 = vmatpush2.msra.mxu0 0.0
    %1160 = vmatprep.subr.mxu0 0.0
    %1161 = vmatpush2.msra.mxu0 0.0
    %1162 = vmatprep.subr.mxu0 0.0
    %1163 = vmatpush2.msra.mxu0 0.0
    %1164 = vmatprep.subr.mxu0 0.0
    %1165 = vmatpush2.msra.mxu0 0.0
    %1166 = vmatprep.subr.mxu0 0.0
    %1167 = vmatpush2.msra.mxu0 0.0
    %1168 = vmatprep.subr.mxu0 0.0
    %1169 = vmatpush2.msra.mxu0 0.0
    %1170 = vmatprep.subr.mxu0 0.0
    %1171 = vmatpush2.msra.mxu0 0.0
    %1172 = vmatprep.subr.mxu0 0.0
    %1173 = vmatpush2.msra.mxu0 0.0
    %1174 = vmatprep.subr.mxu0 0.0
    %1175 = vmatpush2.msra.mxu0 0.0
    %1176 = vmatprep.subr.mxu0 0.0
    %1177 = vmatpush2.msra.mxu0 0.0
    %1178 = vmatprep.subr.mxu0 0.0
    %1179 = vmatpush2.msra.mxu0 0.0
    %1180 = vmatprep.subr.mxu0 0.0
    %1181 = vmatpush2.msra.mxu0 0.0
    %1182 = vmatprep.subr.mxu0 0.0
    %1183 = vmatpush2.msra.mxu0 0.0
    %1184 = vmatprep.subr.mxu0 0.0
    %1185 = vmatpush2.msra.mxu0 0.0
    %1186 = vmatprep.subr.mxu0 0.0
    %1187 = vmatpush2.msra.mxu0 0.0
    %1188 = vmatprep.mubr.f32.mxu0 0.0
    %1189 = vmatmul.mubr.f32.gmra.mxu0 %v1042
    %v1190 = vpop.f32.mrf.mxu0
    %v1191 = vadd.f32 %v1122, %v1190
    %v1192 = vpop.f32.mrf.mxu0
    %1193 = vdwg.mxu0
    %v1194 = vmul.f32 %v1191, 0.17677669
    %v1195 = vld [vmem:[#allocation20] sm:$0xff]
    %v1196 = vld [vmem:[#allocation20 + $0x8] sm:$0xff]
    %v1197 = vld [vmem:[#allocation22] sm:$0x1]
    %v1199 = vlaneseq
    %v1200 = vshrl.u32 %v1199, 7
    %v1201 = vsub.s32 0, %v1200
    %v1202 = vrot.slane %v1197, %v1201
    %1204 = vmatprep.subr.mxu0 0.0
    %1205 = vmatpush1.msra.mxu0 0.0
    %1206 = vmatprep.subr.mxu0 0.0
    %1207 = vmatpush1.msra.mxu0 0.0
    %1208 = vmatprep.subr.mxu0 0.0
    %1209 = vmatpush1.msra.mxu0 0.0
    %1210 = vmatprep.subr.mxu0 0.0
    %1211 = vmatpush1.msra.mxu0 0.0
    %1212 = vmatprep.subr.mxu0 0.0
    %1213 = vmatpush1.msra.mxu0 0.0
    %1214 = vmatprep.subr.mxu0 0.0
    %1215 = vmatpush1.msra.mxu0 0.0
    %1216 = vmatprep.subr.mxu0 0.0
    %1217 = vmatpush1.msra.mxu0 0.0
    %1218 = vmatprep.subr.mxu0 0.0
    %1219 = vmatpush1.msra.mxu0 0.0
    %1220 = vmatprep.subr.mxu0 0.0
    %1221 = vmatpush1.msra.mxu0 0.0
    %1222 = vmatprep.subr.mxu0 0.0
    %1223 = vmatpush1.msra.mxu0 0.0
    %1224 = vmatprep.subr.mxu0 0.0
    %1225 = vmatpush1.msra.mxu0 0.0
    %1226 = vmatprep.subr.mxu0 0.0
    %1227 = vmatpush1.msra.mxu0 0.0
    %1228 = vmatprep.subr.mxu0 0.0
    %1229 = vmatpush1.msra.mxu0 0.0
    %1230 = vmatprep.subr.mxu0 0.0
    %1231 = vmatpush1.msra.mxu0 0.0
    %1232 = vmatprep.subr.mxu0 0.0
    %1233 = vmatpush1.msra.mxu0 %v1196
    %1234 = vmatprep.subr.mxu0 0.0
    %1235 = vmatpush1.msra.mxu0 %v1195
    %1236 = vmatprep.subr.mxu0 0.0
    %1237 = vmatpush2.msra.mxu0 0.0
    %1238 = vmatprep.subr.mxu0 0.0
    %1239 = vmatpush2.msra.mxu0 0.0
    %1240 = vmatprep.subr.mxu0 0.0
    %1241 = vmatpush2.msra.mxu0 0.0
    %1242 = vmatprep.subr.mxu0 0.0
    %1243 = vmatpush2.msra.mxu0 0.0
    %1244 = vmatprep.subr.mxu0 0.0
    %1245 = vmatpush2.msra.mxu0 0.0
    %1246 = vmatprep.subr.mxu0 0.0
    %1247 = vmatpush2.msra.mxu0 0.0
    %1248 = vmatprep.subr.mxu0 0.0
    %1249 = vmatpush2.msra.mxu0 0.0
    %1250 = vmatprep.subr.mxu0 0.0
    %1251 = vmatpush2.msra.mxu0 0.0
    %1252 = vmatprep.subr.mxu0 0.0
    %1253 = vmatpush2.msra.mxu0 0.0
    %1254 = vmatprep.subr.mxu0 0.0
    %1255 = vmatpush2.msra.mxu0 0.0
    %1256 = vmatprep.subr.mxu0 0.0
    %1257 = vmatpush2.msra.mxu0 0.0
    %1258 = vmatprep.subr.mxu0 0.0
    %1259 = vmatpush2.msra.mxu0 0.0
    %1260 = vmatprep.subr.mxu0 0.0
    %1261 = vmatpush2.msra.mxu0 0.0
    %1262 = vmatprep.subr.mxu0 0.0
    %1263 = vmatpush2.msra.mxu0 0.0
    %1264 = vmatprep.subr.mxu0 0.0
    %1265 = vmatpush2.msra.mxu0 0.0
    %1266 = vmatprep.subr.mxu0 0.0
    %1267 = vmatpush2.msra.mxu0 0.0
    %1268 = vmatprep.mubr.f32.mxu0 0.0
    %1269 = vmatmul.mubr.f32.gmra.mxu0 %v1042
    %v1270 = vpop.f32.mrf.mxu0
    %v1271 = vadd.f32 %v1202, %v1270
    %v1272 = vpop.f32.mrf.mxu0
    %1273 = vdwg.mxu0
    %v1274 = vmul.f32 %v1271, 0.17677669
    %v1275 = vld [vmem:[#allocation23] sm:$0xff]
    %v1276 = vld [vmem:[#allocation23 + $0x8] sm:$0xff]
    %v1277 = vld [vmem:[#allocation25] sm:$0x1]
    %v1279 = vlaneseq
    %v1280 = vshrl.u32 %v1279, 7
    %v1281 = vsub.s32 0, %v1280
    %v1282 = vrot.slane %v1277, %v1281
    %1284 = vmatprep.subr.mxu0 0.0
    %1285 = vmatpush1.msra.mxu0 0.0
    %1286 = vmatprep.subr.mxu0 0.0
    %1287 = vmatpush1.msra.mxu0 0.0
    %1288 = vmatprep.subr.mxu0 0.0
    %1289 = vmatpush1.msra.mxu0 0.0
    %1290 = vmatprep.subr.mxu0 0.0
    %1291 = vmatpush1.msra.mxu0 0.0
    %1292 = vmatprep.subr.mxu0 0.0
    %1293 = vmatpush1.msra.mxu0 0.0
    %1294 = vmatprep.subr.mxu0 0.0
    %1295 = vmatpush1.msra.mxu0 0.0
    %1296 = vmatprep.subr.mxu0 0.0
    %1297 = vmatpush1.msra.mxu0 0.0
    %1298 = vmatprep.subr.mxu0 0.0
    %1299 = vmatpush1.msra.mxu0 0.0
    %1300 = vmatprep.subr.mxu0 0.0
    %1301 = vmatpush1.msra.mxu0 0.0
    %1302 = vmatprep.subr.mxu0 0.0
    %1303 = vmatpush1.msra.mxu0 0.0
    %1304 = vmatprep.subr.mxu0 0.0
    %1305 = vmatpush1.msra.mxu0 0.0
    %1306 = vmatprep.subr.mxu0 0.0
    %1307 = vmatpush1.msra.mxu0 0.0
    %1308 = vmatprep.subr.mxu0 0.0
    %1309 = vmatpush1.msra.mxu0 0.0
    %1310 = vmatprep.subr.mxu0 0.0
    %1311 = vmatpush1.msra.mxu0 0.0
    %1312 = vmatprep.subr.mxu0 0.0
    %1313 = vmatpush1.msra.mxu0 %v1276
    %1314 = vmatprep.subr.mxu0 0.0
    %1315 = vmatpush1.msra.mxu0 %v1275
    %1316 = vmatprep.subr.mxu0 0.0
    %1317 = vmatpush2.msra.mxu0 0.0
    %1318 = vmatprep.subr.mxu0 0.0
    %1319 = vmatpush2.msra.mxu0 0.0
    %1320 = vmatprep.subr.mxu0 0.0
    %1321 = vmatpush2.msra.mxu0 0.0
    %1322 = vmatprep.subr.mxu0 0.0
    %1323 = vmatpush2.msra.mxu0 0.0
    %1324 = vmatprep.subr.mxu0 0.0
    %1325 = vmatpush2.msra.mxu0 0.0
    %1326 = vmatprep.subr.mxu0 0.0
    %1327 = vmatpush2.msra.mxu0 0.0
    %1328 = vmatprep.subr.mxu0 0.0
    %1329 = vmatpush2.msra.mxu0 0.0
    %1330 = vmatprep.subr.mxu0 0.0
    %1331 = vmatpush2.msra.mxu0 0.0
    %1332 = vmatprep.subr.mxu0 0.0
    %1333 = vmatpush2.msra.mxu0 0.0
    %1334 = vmatprep.subr.mxu0 0.0
    %1335 = vmatpush2.msra.mxu0 0.0
    %1336 = vmatprep.subr.mxu0 0.0
    %1337 = vmatpush2.msra.mxu0 0.0
    %1338 = vmatprep.subr.mxu0 0.0
    %1339 = vmatpush2.msra.mxu0 0.0
    %1340 = vmatprep.subr.mxu0 0.0
    %1341 = vmatpush2.msra.mxu0 0.0
    %1342 = vmatprep.subr.mxu0 0.0
    %1343 = vmatpush2.msra.mxu0 0.0
    %1344 = vmatprep.subr.mxu0 0.0
    %1345 = vmatpush2.msra.mxu0 0.0
    %1346 = vmatprep.subr.mxu0 0.0
    %1347 = vmatpush2.msra.mxu0 0.0
    %1348 = vmatprep.mubr.f32.mxu0 0.0
    %1349 = vmatmul.mubr.f32.gmra.mxu0 %v1042
    %v1350 = vpop.f32.mrf.mxu0
    %v1351 = vadd.f32 %v1282, %v1350
    %v1352 = vpop.f32.mrf.mxu0
    %1353 = vdwg.mxu0
    %v1354 = vmul.f32 %v1351, 0.17677669
    %v1355 = vld [vmem:[#allocation28] sm:$0xff]
    %v1356 = vld [vmem:[#allocation28 + $0x8] sm:$0xff]
    %v1357 = vld [vmem:[#allocation29] sm:$0x1]
    %v1359 = vlaneseq
    %v1360 = vshrl.u32 %v1359, 7
    %v1361 = vsub.s32 0, %v1360
    %v1362 = vrot.slane %v1357, %v1361
    %1364 = vmatprep.subr.mxu0 0.0
    %1365 = vmatpush1.msra.mxu0 0.0
    %1366 = vmatprep.subr.mxu0 0.0
    %1367 = vmatpush1.msra.mxu0 0.0
    %1368 = vmatprep.subr.mxu0 0.0
    %1369 = vmatpush1.msra.mxu0 0.0
    %1370 = vmatprep.subr.mxu0 0.0
    %1371 = vmatpush1.msra.mxu0 0.0
    %1372 = vmatprep.subr.mxu0 0.0
    %1373 = vmatpush1.msra.mxu0 0.0
    %1374 = vmatprep.subr.mxu0 0.0
    %1375 = vmatpush1.msra.mxu0 0.0
    %1376 = vmatprep.subr.mxu0 0.0
    %1377 = vmatpush1.msra.mxu0 0.0
    %1378 = vmatprep.subr.mxu0 0.0
    %1379 = vmatpush1.msra.mxu0 0.0
    %1380 = vmatprep.subr.mxu0 0.0
    %1381 = vmatpush1.msra.mxu0 0.0
    %1382 = vmatprep.subr.mxu0 0.0
    %1383 = vmatpush1.msra.mxu0 0.0
    %1384 = vmatprep.subr.mxu0 0.0
    %1385 = vmatpush1.msra.mxu0 0.0
    %1386 = vmatprep.subr.mxu0 0.0
    %1387 = vmatpush1.msra.mxu0 0.0
    %1388 = vmatprep.subr.mxu0 0.0
    %1389 = vmatpush1.msra.mxu0 0.0
    %1390 = vmatprep.subr.mxu0 0.0
    %1391 = vmatpush1.msra.mxu0 0.0
    %1392 = vmatprep.subr.mxu0 0.0
    %1393 = vmatpush1.msra.mxu0 %v1356
    %1394 = vmatprep.subr.mxu0 0.0
    %1395 = vmatpush1.msra.mxu0 %v1355
    %1396 = vmatprep.subr.mxu0 0.0
    %1397 = vmatpush2.msra.mxu0 0.0
    %1398 = vmatprep.subr.mxu0 0.0
    %1399 = vmatpush2.msra.mxu0 0.0
    %1400 = vmatprep.subr.mxu0 0.0
    %1401 = vmatpush2.msra.mxu0 0.0
    %1402 = vmatprep.subr.mxu0 0.0
    %1403 = vmatpush2.msra.mxu0 0.0
    %1404 = vmatprep.subr.mxu0 0.0
    %1405 = vmatpush2.msra.mxu0 0.0
    %1406 = vmatprep.subr.mxu0 0.0
    %1407 = vmatpush2.msra.mxu0 0.0
    %1408 = vmatprep.subr.mxu0 0.0
    %1409 = vmatpush2.msra.mxu0 0.0
    %1410 = vmatprep.subr.mxu0 0.0
    %1411 = vmatpush2.msra.mxu0 0.0
    %1412 = vmatprep.subr.mxu0 0.0
    %1413 = vmatpush2.msra.mxu0 0.0
    %1414 = vmatprep.subr.mxu0 0.0
    %1415 = vmatpush2.msra.mxu0 0.0
    %1416 = vmatprep.subr.mxu0 0.0
    %1417 = vmatpush2.msra.mxu0 0.0
    %1418 = vmatprep.subr.mxu0 0.0
    %1419 = vmatpush2.msra.mxu0 0.0
    %1420 = vmatprep.subr.mxu0 0.0
    %1421 = vmatpush2.msra.mxu0 0.0
    %1422 = vmatprep.subr.mxu0 0.0
    %1423 = vmatpush2.msra.mxu0 0.0
    %1424 = vmatprep.subr.mxu0 0.0
    %1425 = vmatpush2.msra.mxu0 0.0
    %1426 = vmatprep.subr.mxu0 0.0
    %1427 = vmatpush2.msra.mxu0 0.0
    %1428 = vmatprep.mubr.f32.mxu0 0.0
    %1429 = vmatmul.mubr.f32.gmra.mxu0 %v1042
    %v1430 = vpop.f32.mrf.mxu0
    %v1431 = vadd.f32 %v1362, %v1430
    %v1432 = vpop.f32.mrf.mxu0
    %1433 = vdwg.mxu0
    %v1434 = vmul.f32 %v1431, 0.17677669
    %v1435 = vld [vmem:[#allocation31] sm:$0xff]
    %v1436 = vld [vmem:[#allocation31 + $0x8] sm:$0xff]
    %v1437 = vld [vmem:[#allocation32] sm:$0x1]
    %v1439 = vlaneseq
    %v1440 = vshrl.u32 %v1439, 7
    %v1441 = vsub.s32 0, %v1440
    %v1442 = vrot.slane %v1437, %v1441
    %1444 = vmatprep.subr.mxu0 0.0
    %1445 = vmatpush1.msra.mxu0 0.0
    %1446 = vmatprep.subr.mxu0 0.0
    %1447 = vmatpush1.msra.mxu0 0.0
    %1448 = vmatprep.subr.mxu0 0.0
    %1449 = vmatpush1.msra.mxu0 0.0
    %1450 = vmatprep.subr.mxu0 0.0
    %1451 = vmatpush1.msra.mxu0 0.0
    %1452 = vmatprep.subr.mxu0 0.0
    %1453 = vmatpush1.msra.mxu0 0.0
    %1454 = vmatprep.subr.mxu0 0.0
    %1455 = vmatpush1.msra.mxu0 0.0
    %1456 = vmatprep.subr.mxu0 0.0
    %1457 = vmatpush1.msra.mxu0 0.0
    %1458 = vmatprep.subr.mxu0 0.0
    %1459 = vmatpush1.msra.mxu0 0.0
    %1460 = vmatprep.subr.mxu0 0.0
    %1461 = vmatpush1.msra.mxu0 0.0
    %1462 = vmatprep.subr.mxu0 0.0
    %1463 = vmatpush1.msra.mxu0 0.0
    %1464 = vmatprep.subr.mxu0 0.0
    %1465 = vmatpush1.msra.mxu0 0.0
    %1466 = vmatprep.subr.mxu0 0.0
    %1467 = vmatpush1.msra.mxu0 0.0
    %1468 = vmatprep.subr.mxu0 0.0
    %1469 = vmatpush1.msra.mxu0 0.0
    %1470 = vmatprep.subr.mxu0 0.0
    %1471 = vmatpush1.msra.mxu0 0.0
    %1472 = vmatprep.subr.mxu0 0.0
    %1473 = vmatpush1.msra.mxu0 %v1436
    %1474 = vmatprep.subr.mxu0 0.0
    %1475 = vmatpush1.msra.mxu0 %v1435
    %1476 = vmatprep.subr.mxu0 0.0
    %1477 = vmatpush2.msra.mxu0 0.0
    %1478 = vmatprep.subr.mxu0 0.0
    %1479 = vmatpush2.msra.mxu0 0.0
    %1480 = vmatprep.subr.mxu0 0.0
    %1481 = vmatpush2.msra.mxu0 0.0
    %1482 = vmatprep.subr.mxu0 0.0
    %1483 = vmatpush2.msra.mxu0 0.0
    %1484 = vmatprep.subr.mxu0 0.0
    %1485 = vmatpush2.msra.mxu0 0.0
    %1486 = vmatprep.subr.mxu0 0.0
    %1487 = vmatpush2.msra.mxu0 0.0
    %1488 = vmatprep.subr.mxu0 0.0
    %1489 = vmatpush2.msra.mxu0 0.0
    %1490 = vmatprep.subr.mxu0 0.0
    %1491 = vmatpush2.msra.mxu0 0.0
    %1492 = vmatprep.subr.mxu0 0.0
    %1493 = vmatpush2.msra.mxu0 0.0
    %1494 = vmatprep.subr.mxu0 0.0
    %1495 = vmatpush2.msra.mxu0 0.0
    %1496 = vmatprep.subr.mxu0 0.0
    %1497 = vmatpush2.msra.mxu0 0.0
    %1498 = vmatprep.subr.mxu0 0.0
    %1499 = vmatpush2.msra.mxu0 0.0
    %1500 = vmatprep.subr.mxu0 0.0
    %1501 = vmatpush2.msra.mxu0 0.0
    %1502 = vmatprep.subr.mxu0 0.0
    %1503 = vmatpush2.msra.mxu0 0.0
    %1504 = vmatprep.subr.mxu0 0.0
    %1505 = vmatpush2.msra.mxu0 0.0
    %1506 = vmatprep.subr.mxu0 0.0
    %1507 = vmatpush2.msra.mxu0 0.0
    %1508 = vmatprep.mubr.f32.mxu0 0.0
    %1509 = vmatmul.mubr.f32.gmra.mxu0 %v1042
    %v1510 = vpop.f32.mrf.mxu0
    %v1511 = vadd.f32 %v1442, %v1510
    %v1512 = vpop.f32.mrf.mxu0
    %1513 = vdwg.mxu0
    %v1514 = vmul.f32 %v1511, 0.17677669
    %v1515 = vld [vmem:[%s73] sm:$0xff]
    %v1516 = vld [vmem:[%s73 + $0x8] sm:$0xff]
    %v1517 = vld [vmem:[#allocation34] sm:$0x1]
    %v1519 = vlaneseq
    %v1520 = vshrl.u32 %v1519, 7
    %v1521 = vsub.s32 0, %v1520
    %v1522 = vrot.slane %v1517, %v1521
    %1524 = vmatprep.subr.mxu0 0.0
    %1525 = vmatpush1.msra.mxu0 0.0
    %1526 = vmatprep.subr.mxu0 0.0
    %1527 = vmatpush1.msra.mxu0 0.0
    %1528 = vmatprep.subr.mxu0 0.0
    %1529 = vmatpush1.msra.mxu0 0.0
    %1530 = vmatprep.subr.mxu0 0.0
    %1531 = vmatpush1.msra.mxu0 0.0
    %1532 = vmatprep.subr.mxu0 0.0
    %1533 = vmatpush1.msra.mxu0 0.0
    %1534 = vmatprep.subr.mxu0 0.0
    %1535 = vmatpush1.msra.mxu0 0.0
    %1536 = vmatprep.subr.mxu0 0.0
    %1537 = vmatpush1.msra.mxu0 0.0
    %1538 = vmatprep.subr.mxu0 0.0
    %1539 = vmatpush1.msra.mxu0 0.0
    %1540 = vmatprep.subr.mxu0 0.0
    %1541 = vmatpush1.msra.mxu0 0.0
    %1542 = vmatprep.subr.mxu0 0.0
    %1543 = vmatpush1.msra.mxu0 0.0
    %1544 = vmatprep.subr.mxu0 0.0
    %1545 = vmatpush1.msra.mxu0 0.0
    %1546 = vmatprep.subr.mxu0 0.0
    %1547 = vmatpush1.msra.mxu0 0.0
    %1548 = vmatprep.subr.mxu0 0.0
    %1549 = vmatpush1.msra.mxu0 0.0
    %1550 = vmatprep.subr.mxu0 0.0
    %1551 = vmatpush1.msra.mxu0 0.0
    %1552 = vmatprep.subr.mxu0 0.0
    %1553 = vmatpush1.msra.mxu0 %v1516
    %1554 = vmatprep.subr.mxu0 0.0
    %1555 = vmatpush1.msra.mxu0 %v1515
    %1556 = vmatprep.subr.mxu0 0.0
    %1557 = vmatpush2.msra.mxu0 0.0
    %1558 = vmatprep.subr.mxu0 0.0
    %1559 = vmatpush2.msra.mxu0 0.0
    %1560 = vmatprep.subr.mxu0 0.0
    %1561 = vmatpush2.msra.mxu0 0.0
    %1562 = vmatprep.subr.mxu0 0.0
    %1563 = vmatpush2.msra.mxu0 0.0
    %1564 = vmatprep.subr.mxu0 0.0
    %1565 = vmatpush2.msra.mxu0 0.0
    %1566 = vmatprep.subr.mxu0 0.0
    %1567 = vmatpush2.msra.mxu0 0.0
    %1568 = vmatprep.subr.mxu0 0.0
    %1569 = vmatpush2.msra.mxu0 0.0
    %1570 = vmatprep.subr.mxu0 0.0
    %1571 = vmatpush2.msra.mxu0 0.0
    %1572 = vmatprep.subr.mxu0 0.0
    %1573 = vmatpush2.msra.mxu0 0.0
    %1574 = vmatprep.subr.mxu0 0.0
    %1575 = vmatpush2.msra.mxu0 0.0
    %1576 = vmatprep.subr.mxu0 0.0
    %1577 = vmatpush2.msra.mxu0 0.0
    %1578 = vmatprep.subr.mxu0 0.0
    %1579 = vmatpush2.msra.mxu0 0.0
    %1580 = vmatprep.subr.mxu0 0.0
    %1581 = vmatpush2.msra.mxu0 0.0
    %1582 = vmatprep.subr.mxu0 0.0
    %1583 = vmatpush2.msra.mxu0 0.0
    %1584 = vmatprep.subr.mxu0 0.0
    %1585 = vmatpush2.msra.mxu0 0.0
    %1586 = vmatprep.subr.mxu0 0.0
    %1587 = vmatpush2.msra.mxu0 0.0
    %1588 = vmatprep.mubr.f32.mxu0 0.0
    %1589 = vmatmul.mubr.f32.gmra.mxu0 %v1042
    %v1590 = vpop.f32.mrf.mxu0
    %v1591 = vadd.f32 %v1522, %v1590
    %v1592 = vpop.f32.mrf.mxu0
    %1593 = vdwg.mxu0
    %v1594 = vmul.f32 %v1591, 0.17677669
    %v1595 = vld [vmem:[#allocation37] sm:$0xff]
    %v1596 = vld [vmem:[#allocation37 + $0x8] sm:$0xff]
    %v1597 = vld [vmem:[#allocation38] sm:$0x1]
    %v1599 = vlaneseq
    %v1600 = vshrl.u32 %v1599, 7
    %v1601 = vsub.s32 0, %v1600
    %v1602 = vrot.slane %v1597, %v1601
    %1604 = vmatprep.subr.mxu0 0.0
    %1605 = vmatpush1.msra.mxu0 0.0
    %1606 = vmatprep.subr.mxu0 0.0
    %1607 = vmatpush1.msra.mxu0 0.0
    %1608 = vmatprep.subr.mxu0 0.0
    %1609 = vmatpush1.msra.mxu0 0.0
    %1610 = vmatprep.subr.mxu0 0.0
    %1611 = vmatpush1.msra.mxu0 0.0
    %1612 = vmatprep.subr.mxu0 0.0
    %1613 = vmatpush1.msra.mxu0 0.0
    %1614 = vmatprep.subr.mxu0 0.0
    %1615 = vmatpush1.msra.mxu0 0.0
    %1616 = vmatprep.subr.mxu0 0.0
    %1617 = vmatpush1.msra.mxu0 0.0
    %1618 = vmatprep.subr.mxu0 0.0
    %1619 = vmatpush1.msra.mxu0 0.0
    %1620 = vmatprep.subr.mxu0 0.0
    %1621 = vmatpush1.msra.mxu0 0.0
    %1622 = vmatprep.subr.mxu0 0.0
    %1623 = vmatpush1.msra.mxu0 0.0
    %1624 = vmatprep.subr.mxu0 0.0
    %1625 = vmatpush1.msra.mxu0 0.0
    %1626 = vmatprep.subr.mxu0 0.0
    %1627 = vmatpush1.msra.mxu0 0.0
    %1628 = vmatprep.subr.mxu0 0.0
    %1629 = vmatpush1.msra.mxu0 0.0
    %1630 = vmatprep.subr.mxu0 0.0
    %1631 = vmatpush1.msra.mxu0 0.0
    %1632 = vmatprep.subr.mxu0 0.0
    %1633 = vmatpush1.msra.mxu0 %v1596
    %1634 = vmatprep.subr.mxu0 0.0
    %1635 = vmatpush1.msra.mxu0 %v1595
    %1636 = vmatprep.subr.mxu0 0.0
    %1637 = vmatpush2.msra.mxu0 0.0
    %1638 = vmatprep.subr.mxu0 0.0
    %1639 = vmatpush2.msra.mxu0 0.0
    %1640 = vmatprep.subr.mxu0 0.0
    %1641 = vmatpush2.msra.mxu0 0.0
    %1642 = vmatprep.subr.mxu0 0.0
    %1643 = vmatpush2.msra.mxu0 0.0
    %1644 = vmatprep.subr.mxu0 0.0
    %1645 = vmatpush2.msra.mxu0 0.0
    %1646 = vmatprep.subr.mxu0 0.0
    %1647 = vmatpush2.msra.mxu0 0.0
    %1648 = vmatprep.subr.mxu0 0.0
    %1649 = vmatpush2.msra.mxu0 0.0
    %1650 = vmatprep.subr.mxu0 0.0
    %1651 = vmatpush2.msra.mxu0 0.0
    %1652 = vmatprep.subr.mxu0 0.0
    %1653 = vmatpush2.msra.mxu0 0.0
    %1654 = vmatprep.subr.mxu0 0.0
    %1655 = vmatpush2.msra.mxu0 0.0
    %1656 = vmatprep.subr.mxu0 0.0
    %1657 = vmatpush2.msra.mxu0 0.0
    %1658 = vmatprep.subr.mxu0 0.0
    %1659 = vmatpush2.msra.mxu0 0.0
    %1660 = vmatprep.subr.mxu0 0.0
    %1661 = vmatpush2.msra.mxu0 0.0
    %1662 = vmatprep.subr.mxu0 0.0
    %1663 = vmatpush2.msra.mxu0 0.0
    %1664 = vmatprep.subr.mxu0 0.0
    %1665 = vmatpush2.msra.mxu0 0.0
    %1666 = vmatprep.subr.mxu0 0.0
    %1667 = vmatpush2.msra.mxu0 0.0
    %1668 = vmatprep.mubr.f32.mxu0 0.0
    %1669 = vmatmul.mubr.f32.gmra.mxu0 %v1042
    %v1670 = vpop.f32.mrf.mxu0
    %v1671 = vadd.f32 %v1602, %v1670
    %v1672 = vpop.f32.mrf.mxu0
    %1673 = vdwg.mxu0
    %v1674 = vmul.f32 %v1671, 0.17677669
    %v1675 = vld [vmem:[#allocation40] sm:$0xff]
    %v1676 = vld [vmem:[#allocation40 + $0x8] sm:$0xff]
    %v1677 = vld [vmem:[#allocation41] sm:$0x1]
    %v1679 = vlaneseq
    %v1680 = vshrl.u32 %v1679, 7
    %v1681 = vsub.s32 0, %v1680
    %v1682 = vrot.slane %v1677, %v1681
    %1684 = vmatprep.subr.mxu0 0.0
    %1685 = vmatpush1.msra.mxu0 0.0
    %1686 = vmatprep.subr.mxu0 0.0
    %1687 = vmatpush1.msra.mxu0 0.0
    %1688 = vmatprep.subr.mxu0 0.0
    %1689 = vmatpush1.msra.mxu0 0.0
    %1690 = vmatprep.subr.mxu0 0.0
    %1691 = vmatpush1.msra.mxu0 0.0
    %1692 = vmatprep.subr.mxu0 0.0
    %1693 = vmatpush1.msra.mxu0 0.0
    %1694 = vmatprep.subr.mxu0 0.0
    %1695 = vmatpush1.msra.mxu0 0.0
    %1696 = vmatprep.subr.mxu0 0.0
    %1697 = vmatpush1.msra.mxu0 0.0
    %1698 = vmatprep.subr.mxu0 0.0
    %1699 = vmatpush1.msra.mxu0 0.0
    %1700 = vmatprep.subr.mxu0 0.0
    %1701 = vmatpush1.msra.mxu0 0.0
    %1702 = vmatprep.subr.mxu0 0.0
    %1703 = vmatpush1.msra.mxu0 0.0
    %1704 = vmatprep.subr.mxu0 0.0
    %1705 = vmatpush1.msra.mxu0 0.0
    %1706 = vmatprep.subr.mxu0 0.0
    %1707 = vmatpush1.msra.mxu0 0.0
    %1708 = vmatprep.subr.mxu0 0.0
    %1709 = vmatpush1.msra.mxu0 0.0
    %1710 = vmatprep.subr.mxu0 0.0
    %1711 = vmatpush1.msra.mxu0 0.0
    %1712 = vmatprep.subr.mxu0 0.0
    %1713 = vmatpush1.msra.mxu0 %v1676
    %1714 = vmatprep.subr.mxu0 0.0
    %1715 = vmatpush1.msra.mxu0 %v1675
    %1716 = vmatprep.subr.mxu0 0.0
    %1717 = vmatpush2.msra.mxu0 0.0
    %1718 = vmatprep.subr.mxu0 0.0
    %1719 = vmatpush2.msra.mxu0 0.0
    %1720 = vmatprep.subr.mxu0 0.0
    %1721 = vmatpush2.msra.mxu0 0.0
    %1722 = vmatprep.subr.mxu0 0.0
    %1723 = vmatpush2.msra.mxu0 0.0
    %1724 = vmatprep.subr.mxu0 0.0
    %1725 = vmatpush2.msra.mxu0 0.0
    %1726 = vmatprep.subr.mxu0 0.0
    %1727 = vmatpush2.msra.mxu0 0.0
    %1728 = vmatprep.subr.mxu0 0.0
    %1729 = vmatpush2.msra.mxu0 0.0
    %1730 = vmatprep.subr.mxu0 0.0
    %1731 = vmatpush2.msra.mxu0 0.0
    %1732 = vmatprep.subr.mxu0 0.0
    %1733 = vmatpush2.msra.mxu0 0.0
    %1734 = vmatprep.subr.mxu0 0.0
    %1735 = vmatpush2.msra.mxu0 0.0
    %1736 = vmatprep.subr.mxu0 0.0
    %1737 = vmatpush2.msra.mxu0 0.0
    %1738 = vmatprep.subr.mxu0 0.0
    %1739 = vmatpush2.msra.mxu0 0.0
    %1740 = vmatprep.subr.mxu0 0.0
    %1741 = vmatpush2.msra.mxu0 0.0
    %1742 = vmatprep.subr.mxu0 0.0
    %1743 = vmatpush2.msra.mxu0 0.0
    %1744 = vmatprep.subr.mxu0 0.0
    %1745 = vmatpush2.msra.mxu0 0.0
    %1746 = vmatprep.subr.mxu0 0.0
    %1747 = vmatpush2.msra.mxu0 0.0
    %1748 = vmatprep.mubr.f32.mxu0 0.0
    %1749 = vmatmul.mubr.f32.gmra.mxu0 %v1042
    %v1750 = vpop.f32.mrf.mxu0
    %v1751 = vadd.f32 %v1682, %v1750
    %v1752 = vpop.f32.mrf.mxu0
    %1753 = vdwg.mxu0
    %v1754 = vmul.f32 %v1751, 0.25
    %v1755 = vld [vmem:[#allocation44] sm:$0xff]
    %v1756 = vld [vmem:[#allocation44 + $0x8] sm:$0xff]
    %v1757 = vld [vmem:[%s99] sm:$0x1]
    %v1759 = vlaneseq
    %v1760 = vshrl.u32 %v1759, 7
    %v1761 = vsub.s32 0, %v1760
    %v1762 = vrot.slane %v1757, %v1761
    %1764 = vmatprep.subr.mxu0 0.0
    %1765 = vmatpush1.msra.mxu0 0.0
    %1766 = vmatprep.subr.mxu0 0.0
    %1767 = vmatpush1.msra.mxu0 0.0
    %1768 = vmatprep.subr.mxu0 0.0
    %1769 = vmatpush1.msra.mxu0 0.0
    %1770 = vmatprep.subr.mxu0 0.0
    %1771 = vmatpush1.msra.mxu0 0.0
    %1772 = vmatprep.subr.mxu0 0.0
    %1773 = vmatpush1.msra.mxu0 0.0
    %1774 = vmatprep.subr.mxu0 0.0
    %1775 = vmatpush1.msra.mxu0 0.0
    %1776 = vmatprep.subr.mxu0 0.0
    %1777 = vmatpush1.msra.mxu0 0.0
    %1778 = vmatprep.subr.mxu0 0.0
    %1779 = vmatpush1.msra.mxu0 0.0
    %1780 = vmatprep.subr.mxu0 0.0
    %1781 = vmatpush1.msra.mxu0 0.0
    %1782 = vmatprep.subr.mxu0 0.0
    %1783 = vmatpush1.msra.mxu0 0.0
    %1784 = vmatprep.subr.mxu0 0.0
    %1785 = vmatpush1.msra.mxu0 0.0
    %1786 = vmatprep.subr.mxu0 0.0
    %1787 = vmatpush1.msra.mxu0 0.0
    %1788 = vmatprep.subr.mxu0 0.0
    %1789 = vmatpush1.msra.mxu0 0.0
    %1790 = vmatprep.subr.mxu0 0.0
    %1791 = vmatpush1.msra.mxu0 0.0
    %1792 = vmatprep.subr.mxu0 0.0
    %1793 = vmatpush1.msra.mxu0 %v1756
    %1794 = vmatprep.subr.mxu0 0.0
    %1795 = vmatpush1.msra.mxu0 %v1755
    %1796 = vmatprep.subr.mxu0 0.0
    %1797 = vmatpush2.msra.mxu0 0.0
    %1798 = vmatprep.subr.mxu0 0.0
    %1799 = vmatpush2.msra.mxu0 0.0
    %1800 = vmatprep.subr.mxu0 0.0
    %1801 = vmatpush2.msra.mxu0 0.0
    %1802 = vmatprep.subr.mxu0 0.0
    %1803 = vmatpush2.msra.mxu0 0.0
    %1804 = vmatprep.subr.mxu0 0.0
    %1805 = vmatpush2.msra.mxu0 0.0
    %1806 = vmatprep.subr.mxu0 0.0
    %1807 = vmatpush2.msra.mxu0 0.0
    %1808 = vmatprep.subr.mxu0 0.0
    %1809 = vmatpush2.msra.mxu0 0.0
    %1810 = vmatprep.subr.mxu0 0.0
    %1811 = vmatpush2.msra.mxu0 0.0
    %1812 = vmatprep.subr.mxu0 0.0
    %1813 = vmatpush2.msra.mxu0 0.0
    %1814 = vmatprep.subr.mxu0 0.0
    %1815 = vmatpush2.msra.mxu0 0.0
    %1816 = vmatprep.subr.mxu0 0.0
    %1817 = vmatpush2.msra.mxu0 0.0
    %1818 = vmatprep.subr.mxu0 0.0
    %1819 = vmatpush2.msra.mxu0 0.0
    %1820 = vmatprep.subr.mxu0 0.0
    %1821 = vmatpush2.msra.mxu0 0.0
    %1822 = vmatprep.subr.mxu0 0.0
    %1823 = vmatpush2.msra.mxu0 0.0
    %1824 = vmatprep.subr.mxu0 0.0
    %1825 = vmatpush2.msra.mxu0 0.0
    %1826 = vmatprep.subr.mxu0 0.0
    %1827 = vmatpush2.msra.mxu0 0.0
    %1828 = vmatprep.mubr.f32.mxu0 0.0
    %1829 = vmatmul.mubr.f32.gmra.mxu0 %v1042
    %v1830 = vpop.f32.mrf.mxu0
    %v1831 = vadd.f32 %v1762, %v1830
    %v1832 = vpop.f32.mrf.mxu0
    %1833 = vdwg.mxu0
    %v1834 = vmul.f32 %v1831, 0.25
    %v1835 = vld [vmem:[%s1] sm:$0xff]
    %v1836 = vld [vmem:[%s1 + $0x8] sm:$0xff]
    %v1837 = vld [vmem:[%s1 + $0x10] sm:$0xff]
    %v1838 = vld [vmem:[%s1 + $0x18] sm:$0xff]
    %v1839 = vld [vmem:[%s1 + $0x20] sm:$0xff]
    %v1840 = vld [vmem:[%s1 + $0x28] sm:$0xff]
    %v1841 = vld [vmem:[%s1 + $0x30] sm:$0xff]
    %v1842 = vld [vmem:[%s1 + $0x38] sm:$0xff]
    %v1843 = vld [vmem:[%s1 + $0x40] sm:$0xff]
    %v1844 = vld [vmem:[%s1 + $0x48] sm:$0xff]
    %v1845 = vld [vmem:[%s1 + $0x50] sm:$0xff]
    %v1846 = vld [vmem:[%s1 + $0x58] sm:$0xff]
    %v1847 = vld [vmem:[#allocation2] sm:$0x3]
    %v1848 = vld [vmem:[#allocation2 + $0x2] sm:$0x3]
    %v1849 = vld [vmem:[#allocation2 + $0x4] sm:$0x3]
    %v1853 = vlaneseq
    %v1854 = vshrl.u32 %v1853, 7
    %v1855 = vsub.s32 0, %v1854
    %v1856 = vrot.slane %v1847, %v1855
    %v1857 = vlaneseq
    %v1858 = vshrl.u32 %v1857, 7
    %v1859 = vsub.s32 1, %v1858
    %v1860 = vrot.slane %v1847, %v1859
    %v1861 = vlaneseq
    %v1862 = vshrl.u32 %v1861, 7
    %v1863 = vsub.s32 0, %v1862
    %v1864 = vrot.slane %v1848, %v1863
    %v1865 = vlaneseq
    %v1866 = vshrl.u32 %v1865, 7
    %v1867 = vsub.s32 1, %v1866
    %v1868 = vrot.slane %v1848, %v1867
    %v1869 = vlaneseq
    %v1870 = vshrl.u32 %v1869, 7
    %v1871 = vsub.s32 0, %v1870
    %v1872 = vrot.slane %v1849, %v1871
    %v1873 = vlaneseq
    %v1874 = vshrl.u32 %v1873, 7
    %v1875 = vsub.s32 1, %v1874
    %v1876 = vrot.slane %v1849, %v1875
    %v1883 = vmul.f32 %v1835, %v1856
    %v1884 = vmul.f32 %v1836, %v1860
    %v1885 = vmul.f32 %v1837, %v1856
    %v1886 = vmul.f32 %v1838, %v1860
    %v1887 = vmul.f32 %v1839, %v1864
    %v1888 = vmul.f32 %v1840, %v1868
    %v1889 = vmul.f32 %v1841, %v1864
    %v1890 = vmul.f32 %v1842, %v1868
    %v1891 = vmul.f32 %v1843, %v1872
    %v1892 = vmul.f32 %v1844, %v1876
    %v1893 = vmul.f32 %v1845, %v1872
    %v1894 = vmul.f32 %v1846, %v1876
    %v1895 = vadd.f32 %v1883, %v1887
    %v1896 = vadd.f32 %v1895, %v1891
    %v1897 = vadd.f32 %v1884, %v1888
    %v1898 = vadd.f32 %v1897, %v1892
    %v1899 = vadd.f32 %v1885, %v1889
    %v1900 = vadd.f32 %v1899, %v1893
    %v1901 = vadd.f32 %v1886, %v1890
    %v1902 = vadd.f32 %v1901, %v1894
    %v1903 = vld [vmem:[%s29] sm:$0xff]
    %v1904 = vld [vmem:[%s29 + $0x8] sm:$0xff]
    %v1905 = vld [vmem:[%s29 + $0x10] sm:$0xff]
    %v1906 = vld [vmem:[%s29 + $0x18] sm:$0xff]
    %v1907 = vlaneseq
    %v1908 = vshrl.u32 %v1907, 7
    %v1909 = vsub.s32 0, %v1908
    %v1910 = vrot.slane %v1114, %v1909
    %v1911 = vmul.f32 %v1903, %v1910
    %v1912 = vmul.f32 %v1904, %v1910
    %v1913 = vmul.f32 %v1905, %v1910
    %v1914 = vmul.f32 %v1906, %v1910
    %v1915 = vmul.f32 %v1911, %v1911
    %v1916 = vmul.f32 %v1912, %v1912
    %v1917 = vmul.f32 %v1913, %v1913
    %v1918 = vmul.f32 %v1914, %v1914
    %v1919 = vsel %vm859, %v1915, 0.0
    %1920 = vadd.xlane.f32.xlu0 %v1919
    %v1921 = vpop.xlane.xlu0 %1920
    %v1922 = vsel %vm859, %v1916, 0.0
    %1923 = vadd.xlane.f32.xlu0 %v1922
    %v1924 = vpop.xlane.xlu0 %1923
    %v1925 = vsel %vm859, %v1917, 0.0
    %1926 = vadd.xlane.f32.xlu0 %v1925
    %v1927 = vpop.xlane.xlu0 %1926
    %v1928 = vsel %vm859, %v1918, 0.0
    %1929 = vadd.xlane.f32.xlu0 %v1928
    %v1930 = vpop.xlane.xlu0 %1929
    %v1931 = vadd.f32 %v1921, 1e-08
    %v1932 = vadd.f32 %v1924, 1e-08
    %v1933 = vadd.f32 %v1927, 1e-08
    %v1934 = vadd.f32 %v1930, 1e-08
    %v1935 = vrsqrt.pop %v1931
    %v1936 = vrsqrt.pop %v1932
    %v1937 = vrsqrt.pop %v1933
    %v1938 = vrsqrt.pop %v1934
    %v1939 = vmul.f32 %v1911, %v1935
    %v1940 = vmul.f32 %v1912, %v1936
    %v1941 = vmul.f32 %v1913, %v1937
    %v1942 = vmul.f32 %v1914, %v1938
    %v1943 = vld [vmem:[%s31] sm:$0xff]
    %v1944 = vld [vmem:[%s31 + $0x8] sm:$0xff]
    %v1945 = vld [vmem:[%s31 + $0x10] sm:$0xff]
    %v1946 = vld [vmem:[%s31 + $0x18] sm:$0xff]
    %1948 = vset.pattern.permute.xlu0 0
    %1949 = vperm.xlu0 %1948, %v1943
    %v1950 = vpop.permute.xlu0 %1949
    %1953 = vset.pattern.permute.xlu0 0
    %1954 = vperm.xlu0 %1953, %v1944
    %v1955 = vpop.permute.xlu0 %1954
    %1958 = vset.pattern.permute.xlu0 0
    %1959 = vperm.xlu0 %1958, %v1945
    %v1960 = vpop.permute.xlu0 %1959
    %1963 = vset.pattern.permute.xlu0 0
    %1964 = vperm.xlu0 %1963, %v1946
    %v1965 = vpop.permute.xlu0 %1964
    %v1968 = vsel %vm859, %v1939, 0
    %v1971 = vsel %vm859, %v1940, 0
    %v1974 = vsel %vm859, %v1941, 0
    %v1977 = vsel %vm859, %v1942, 0
    %1979 = vmatprep.subr.mxu0 0.0
    %1980 = vmatpush1.msra.mxu0 0.0
    %1981 = vmatprep.subr.mxu0 0.0
    %1982 = vmatpush1.msra.mxu0 0.0
    %1983 = vmatprep.subr.mxu0 0.0
    %1984 = vmatpush1.msra.mxu0 0.0
    %1985 = vmatprep.subr.mxu0 0.0
    %1986 = vmatpush1.msra.mxu0 0.0
    %1987 = vmatprep.subr.mxu0 0.0
    %1988 = vmatpush1.msra.mxu0 0.0
    %1989 = vmatprep.subr.mxu0 0.0
    %1990 = vmatpush1.msra.mxu0 0.0
    %1991 = vmatprep.subr.mxu0 0.0
    %1992 = vmatpush1.msra.mxu0 0.0
    %1993 = vmatprep.subr.mxu0 0.0
    %1994 = vmatpush1.msra.mxu0 0.0
    %1995 = vmatprep.subr.mxu0 0.0
    %1996 = vmatpush1.msra.mxu0 0.0
    %1997 = vmatprep.subr.mxu0 0.0
    %1998 = vmatpush1.msra.mxu0 0.0
    %1999 = vmatprep.subr.mxu0 0.0
    %2000 = vmatpush1.msra.mxu0 0.0
    %2001 = vmatprep.subr.mxu0 0.0
    %2002 = vmatpush1.msra.mxu0 0.0
    %2003 = vmatprep.subr.mxu0 0.0
    %2004 = vmatpush1.msra.mxu0 0.0
    %2005 = vmatprep.subr.mxu0 0.0
    %2006 = vmatpush1.msra.mxu0 0.0
    %2007 = vmatprep.subr.mxu0 %v1902
    %2008 = vmatpush1.msra.mxu0 %v1900
    %2009 = vmatprep.subr.mxu0 %v1898
    %2010 = vmatpush1.msra.mxu0 %v1896
    %2011 = vmatprep.subr.mxu0 0.0
    %2012 = vmatpush2.msra.mxu0 0.0
    %2013 = vmatprep.subr.mxu0 0.0
    %2014 = vmatpush2.msra.mxu0 0.0
    %2015 = vmatprep.subr.mxu0 0.0
    %2016 = vmatpush2.msra.mxu0 0.0
    %2017 = vmatprep.subr.mxu0 0.0
    %2018 = vmatpush2.msra.mxu0 0.0
    %2019 = vmatprep.subr.mxu0 0.0
    %2020 = vmatpush2.msra.mxu0 0.0
    %2021 = vmatprep.subr.mxu0 0.0
    %2022 = vmatpush2.msra.mxu0 0.0
    %2023 = vmatprep.subr.mxu0 0.0
    %2024 = vmatpush2.msra.mxu0 0.0
    %2025 = vmatprep.subr.mxu0 0.0
    %2026 = vmatpush2.msra.mxu0 0.0
    %2027 = vmatprep.subr.mxu0 0.0
    %2028 = vmatpush2.msra.mxu0 0.0
    %2029 = vmatprep.subr.mxu0 0.0
    %2030 = vmatpush2.msra.mxu0 0.0
    %2031 = vmatprep.subr.mxu0 0.0
    %2032 = vmatpush2.msra.mxu0 0.0
    %2033 = vmatprep.subr.mxu0 0.0
    %2034 = vmatpush2.msra.mxu0 0.0
    %2035 = vmatprep.subr.mxu0 0.0
    %2036 = vmatpush2.msra.mxu0 0.0
    %2037 = vmatprep.subr.mxu0 0.0
    %2038 = vmatpush2.msra.mxu0 0.0
    %2039 = vmatprep.subr.mxu0 0.0
    %2040 = vmatpush2.msra.mxu0 0.0
    %2041 = vmatprep.subr.mxu0 0.0
    %2042 = vmatpush2.msra.mxu0 0.0
    %2043 = vmatprep.mubr.f32.mxu0 0.0
    %2044 = vmatmul.mubr.f32.gmra.mxu0 %v1968
    %v2045 = vpop.f32.mrf.mxu0
    %v2046 = vadd.f32 %v1950, %v2045
    %v2047 = vpop.f32.mrf.mxu0
    %v2048 = vadd.f32 %v1950, %v2047
    %2049 = vmatprep.mubr.f32.mxu0 0.0
    %2050 = vmatmul.mubr.f32.gmra.mxu0 %v1971
    %v2051 = vpop.f32.mrf.mxu0
    %v2052 = vadd.f32 %v1955, %v2051
    %v2053 = vpop.f32.mrf.mxu0
    %v2054 = vadd.f32 %v1955, %v2053
    %2055 = vmatprep.mubr.f32.mxu0 0.0
    %2056 = vmatmul.mubr.f32.gmra.mxu0 %v1974
    %v2057 = vpop.f32.mrf.mxu0
    %v2058 = vadd.f32 %v1960, %v2057
    %v2059 = vpop.f32.mrf.mxu0
    %v2060 = vadd.f32 %v1960, %v2059
    %2061 = vmatprep.mubr.f32.mxu0 0.0
    %2062 = vmatmul.mubr.f32.gmra.mxu0 %v1977
    %v2063 = vpop.f32.mrf.mxu0
    %v2064 = vadd.f32 %v1965, %v2063
    %v2065 = vpop.f32.mrf.mxu0
    %v2066 = vadd.f32 %v1965, %v2065
    %2067 = vdwg.mxu0
    %vm2068 = vcmp.ge.f32.partialorder %v2046, 0.0
    %vm2069 = vcmp.ge.f32.partialorder %v2048, 0.0
    %vm2070 = vcmp.ge.f32.partialorder %v2052, 0.0
    %vm2071 = vcmp.ge.f32.partialorder %v2054, 0.0
    %vm2072 = vcmp.ge.f32.partialorder %v2058, 0.0
    %vm2073 = vcmp.ge.f32.partialorder %v2060, 0.0
    %vm2074 = vcmp.ge.f32.partialorder %v2064, 0.0
    %vm2075 = vcmp.ge.f32.partialorder %v2066, 0.0
    %v2076 = vmul.f32 %v2046, 0.2
    %v2077 = vmul.f32 %v2048, 0.2
    %v2078 = vmul.f32 %v2052, 0.2
    %v2079 = vmul.f32 %v2054, 0.2
    %v2080 = vmul.f32 %v2058, 0.2
    %v2081 = vmul.f32 %v2060, 0.2
    %v2082 = vmul.f32 %v2064, 0.2
    %v2083 = vmul.f32 %v2066, 0.2
    %v2084 = vsel %vm2068, %v2046, %v2076
    %v2085 = vsel %vm2069, %v2048, %v2077
    %v2086 = vsel %vm2070, %v2052, %v2078
    %v2087 = vsel %vm2071, %v2054, %v2079
    %v2088 = vsel %vm2072, %v2058, %v2080
    %v2089 = vsel %vm2073, %v2060, %v2081
    %v2090 = vsel %vm2074, %v2064, %v2082
    %v2091 = vsel %vm2075, %v2066, %v2083
    %v2092 = vmul.f32 %v2084, 1.4142135
    %v2093 = vmul.f32 %v2085, 1.4142135
    %v2094 = vmul.f32 %v2086, 1.4142135
    %v2095 = vmul.f32 %v2087, 1.4142135
    %v2096 = vmul.f32 %v2088, 1.4142135
    %v2097 = vmul.f32 %v2089, 1.4142135
    %v2098 = vmul.f32 %v2090, 1.4142135
    %v2099 = vmul.f32 %v2091, 1.4142135
    %v2100 = vld [vmem:[%s37] sm:$0xff]
    %v2101 = vld [vmem:[%s37 + $0x8] sm:$0xff]
    %v2102 = vld [vmem:[%s37 + $0x10] sm:$0xff]
    %v2103 = vld [vmem:[%s37 + $0x18] sm:$0xff]
    %v2104 = vlaneseq
    %v2105 = vshrl.u32 %v2104, 7
    %v2106 = vsub.s32 0, %v2105
    %v2107 = vrot.slane %v1194, %v2106
    %v2108 = vmul.f32 %v2100, %v2107
    %v2109 = vmul.f32 %v2101, %v2107
    %v2110 = vmul.f32 %v2102, %v2107
    %v2111 = vmul.f32 %v2103, %v2107
    %v2112 = vmul.f32 %v2108, %v2108
    %v2113 = vmul.f32 %v2109, %v2109
    %v2114 = vmul.f32 %v2110, %v2110
    %v2115 = vmul.f32 %v2111, %v2111
    %v2116 = vsel %vm590, %v2112, 0.0
    %2117 = vadd.xlane.f32.xlu0 %v2116
    %v2118 = vpop.xlane.xlu0 %2117
    %v2119 = vsel %vm590, %v2113, 0.0
    %2120 = vadd.xlane.f32.xlu0 %v2119
    %v2121 = vpop.xlane.xlu0 %2120
    %v2122 = vsel %vm590, %v2114, 0.0
    %2123 = vadd.xlane.f32.xlu0 %v2122
    %v2124 = vpop.xlane.xlu0 %2123
    %v2125 = vsel %vm590, %v2115, 0.0
    %2126 = vadd.xlane.f32.xlu0 %v2125
    %v2127 = vpop.xlane.xlu0 %2126
    %v2128 = vadd.f32 %v2118, 1e-08
    %v2129 = vadd.f32 %v2121, 1e-08
    %v2130 = vadd.f32 %v2124, 1e-08
    %v2131 = vadd.f32 %v2127, 1e-08
    %v2132 = vrsqrt.pop %v2128
    %v2133 = vrsqrt.pop %v2129
    %v2134 = vrsqrt.pop %v2130
    %v2135 = vrsqrt.pop %v2131
    %v2136 = vmul.f32 %v2108, %v2132
    %v2137 = vmul.f32 %v2109, %v2133
    %v2138 = vmul.f32 %v2110, %v2134
    %v2139 = vmul.f32 %v2111, %v2135
    %v2140 = vld [vmem:[%s39] sm:$0xff]
    %v2141 = vld [vmem:[%s39 + $0x8] sm:$0xff]
    %v2142 = vld [vmem:[%s39 + $0x10] sm:$0xff]
    %v2143 = vld [vmem:[%s39 + $0x18] sm:$0xff]
    %2145 = vset.pattern.permute.xlu0 0
    %2146 = vperm.xlu0 %2145, %v2140
    %v2147 = vpop.permute.xlu0 %2146
    %2150 = vset.pattern.permute.xlu0 0
    %2151 = vperm.xlu0 %2150, %v2141
    %v2152 = vpop.permute.xlu0 %2151
    %2155 = vset.pattern.permute.xlu0 0
    %2156 = vperm.xlu0 %2155, %v2142
    %v2157 = vpop.permute.xlu0 %2156
    %2160 = vset.pattern.permute.xlu0 0
    %2161 = vperm.xlu0 %2160, %v2143
    %v2162 = vpop.permute.xlu0 %2161
    %v2165 = vsel %vm590, %v2136, 0
    %v2168 = vsel %vm590, %v2137, 0
    %v2171 = vsel %vm590, %v2138, 0
    %v2174 = vsel %vm590, %v2139, 0
    %2176 = vmatprep.subr.mxu0 0.0
    %2177 = vmatpush1.msra.mxu0 0.0
    %2178 = vmatprep.subr.mxu0 0.0
    %2179 = vmatpush1.msra.mxu0 0.0
    %2180 = vmatprep.subr.mxu0 0.0
    %2181 = vmatpush1.msra.mxu0 0.0
    %2182 = vmatprep.subr.mxu0 0.0
    %2183 = vmatpush1.msra.mxu0 0.0
    %2184 = vmatprep.subr.mxu0 0.0
    %2185 = vmatpush1.msra.mxu0 0.0
    %2186 = vmatprep.subr.mxu0 0.0
    %2187 = vmatpush1.msra.mxu0 0.0
    %2188 = vmatprep.subr.mxu0 0.0
    %2189 = vmatpush1.msra.mxu0 0.0
    %2190 = vmatprep.subr.mxu0 0.0
    %2191 = vmatpush1.msra.mxu0 0.0
    %2192 = vmatprep.subr.mxu0 0.0
    %2193 = vmatpush1.msra.mxu0 0.0
    %2194 = vmatprep.subr.mxu0 0.0
    %2195 = vmatpush1.msra.mxu0 0.0
    %2196 = vmatprep.subr.mxu0 0.0
    %2197 = vmatpush1.msra.mxu0 0.0
    %2198 = vmatprep.subr.mxu0 0.0
    %2199 = vmatpush1.msra.mxu0 0.0
    %2200 = vmatprep.subr.mxu0 %v2099
    %2201 = vmatpush1.msra.mxu0 %v2098
    %2202 = vmatprep.subr.mxu0 %v2097
    %2203 = vmatpush1.msra.mxu0 %v2096
    %2204 = vmatprep.subr.mxu0 %v2095
    %2205 = vmatpush1.msra.mxu0 %v2094
    %2206 = vmatprep.subr.mxu0 %v2093
    %2207 = vmatpush1.msra.mxu0 %v2092
    %2208 = vmatprep.subr.mxu0 0.0
    %2209 = vmatpush2.msra.mxu0 0.0
    %2210 = vmatprep.subr.mxu0 0.0
    %2211 = vmatpush2.msra.mxu0 0.0
    %2212 = vmatprep.subr.mxu0 0.0
    %2213 = vmatpush2.msra.mxu0 0.0
    %2214 = vmatprep.subr.mxu0 0.0
    %2215 = vmatpush2.msra.mxu0 0.0
    %2216 = vmatprep.subr.mxu0 0.0
    %2217 = vmatpush2.msra.mxu0 0.0
    %2218 = vmatprep.subr.mxu0 0.0
    %2219 = vmatpush2.msra.mxu0 0.0
    %2220 = vmatprep.subr.mxu0 0.0
    %2221 = vmatpush2.msra.mxu0 0.0
    %2222 = vmatprep.subr.mxu0 0.0
    %2223 = vmatpush2.msra.mxu0 0.0
    %2224 = vmatprep.subr.mxu0 0.0
    %2225 = vmatpush2.msra.mxu0 0.0
    %2226 = vmatprep.subr.mxu0 0.0
    %2227 = vmatpush2.msra.mxu0 0.0
    %2228 = vmatprep.subr.mxu0 0.0
    %2229 = vmatpush2.msra.mxu0 0.0
    %2230 = vmatprep.subr.mxu0 0.0
    %2231 = vmatpush2.msra.mxu0 0.0
    %2232 = vmatprep.subr.mxu0 0.0
    %2233 = vmatpush2.msra.mxu0 0.0
    %2234 = vmatprep.subr.mxu0 0.0
    %2235 = vmatpush2.msra.mxu0 0.0
    %2236 = vmatprep.subr.mxu0 0.0
    %2237 = vmatpush2.msra.mxu0 0.0
    %2238 = vmatprep.subr.mxu0 0.0
    %2239 = vmatpush2.msra.mxu0 0.0
    %2240 = vmatprep.mubr.f32.mxu0 0.0
    %2241 = vmatmul.mubr.f32.gmra.mxu0 %v2165
    %v2242 = vpop.f32.mrf.mxu0
    %v2243 = vadd.f32 %v2147, %v2242
    %v2244 = vpop.f32.mrf.mxu0
    %v2245 = vadd.f32 %v2147, %v2244
    %2246 = vmatprep.mubr.f32.mxu0 0.0
    %2247 = vmatmul.mubr.f32.gmra.mxu0 %v2168
    %v2248 = vpop.f32.mrf.mxu0
    %v2249 = vadd.f32 %v2152, %v2248
    %v2250 = vpop.f32.mrf.mxu0
    %v2251 = vadd.f32 %v2152, %v2250
    %2252 = vmatprep.mubr.f32.mxu0 0.0
    %2253 = vmatmul.mubr.f32.gmra.mxu0 %v2171
    %v2254 = vpop.f32.mrf.mxu0
    %v2255 = vadd.f32 %v2157, %v2254
    %v2256 = vpop.f32.mrf.mxu0
    %v2257 = vadd.f32 %v2157, %v2256
    %2258 = vmatprep.mubr.f32.mxu0 0.0
    %2259 = vmatmul.mubr.f32.gmra.mxu0 %v2174
    %v2260 = vpop.f32.mrf.mxu0
    %v2261 = vadd.f32 %v2162, %v2260
    %v2262 = vpop.f32.mrf.mxu0
    %v2263 = vadd.f32 %v2162, %v2262
    %2264 = vdwg.mxu0
    %vm2265 = vcmp.ge.f32.partialorder %v2243, 0.0
    %vm2266 = vcmp.ge.f32.partialorder %v2245, 0.0
    %vm2267 = vcmp.ge.f32.partialorder %v2249, 0.0
    %vm2268 = vcmp.ge.f32.partialorder %v2251, 0.0
    %vm2269 = vcmp.ge.f32.partialorder %v2255, 0.0
    %vm2270 = vcmp.ge.f32.partialorder %v2257, 0.0
    %vm2271 = vcmp.ge.f32.partialorder %v2261, 0.0
    %vm2272 = vcmp.ge.f32.partialorder %v2263, 0.0
    %v2273 = vmul.f32 %v2243, 0.2
    %v2274 = vmul.f32 %v2245, 0.2
    %v2275 = vmul.f32 %v2249, 0.2
    %v2276 = vmul.f32 %v2251, 0.2
    %v2277 = vmul.f32 %v2255, 0.2
    %v2278 = vmul.f32 %v2257, 0.2
    %v2279 = vmul.f32 %v2261, 0.2
    %v2280 = vmul.f32 %v2263, 0.2
    %v2281 = vsel %vm2265, %v2243, %v2273
    %v2282 = vsel %vm2266, %v2245, %v2274
    %v2283 = vsel %vm2267, %v2249, %v2275
    %v2284 = vsel %vm2268, %v2251, %v2276
    %v2285 = vsel %vm2269, %v2255, %v2277
    %v2286 = vsel %vm2270, %v2257, %v2278
    %v2287 = vsel %vm2271, %v2261, %v2279
    %v2288 = vsel %vm2272, %v2263, %v2280
    %v2289 = vmul.f32 %v2281, 1.4142135
    %v2290 = vmul.f32 %v2282, 1.4142135
    %v2291 = vmul.f32 %v2283, 1.4142135
    %v2292 = vmul.f32 %v2284, 1.4142135
    %v2293 = vmul.f32 %v2285, 1.4142135
    %v2294 = vmul.f32 %v2286, 1.4142135
    %v2295 = vmul.f32 %v2287, 1.4142135
    %v2296 = vmul.f32 %v2288, 1.4142135
    %v2297 = vld [vmem:[%s45] sm:$0xff]
    %v2298 = vld [vmem:[%s45 + $0x8] sm:$0xff]
    %v2299 = vld [vmem:[%s45 + $0x10] sm:$0xff]
    %v2300 = vld [vmem:[%s45 + $0x18] sm:$0xff]
    %v2301 = vlaneseq
    %v2302 = vshrl.u32 %v2301, 7
    %v2303 = vsub.s32 0, %v2302
    %v2304 = vrot.slane %v1274, %v2303
    %v2305 = vmul.f32 %v2297, %v2304
    %v2306 = vmul.f32 %v2298, %v2304
    %v2307 = vmul.f32 %v2299, %v2304
    %v2308 = vmul.f32 %v2300, %v2304
    %v2309 = vmul.f32 %v2305, %v2305
    %v2310 = vmul.f32 %v2306, %v2306
    %v2311 = vmul.f32 %v2307, %v2307
    %v2312 = vmul.f32 %v2308, %v2308
    %v2313 = vsel %vm590, %v2309, 0.0
    %2314 = vadd.xlane.f32.xlu0 %v2313
    %v2315 = vpop.xlane.xlu0 %2314
    %v2316 = vsel %vm590, %v2310, 0.0
    %2317 = vadd.xlane.f32.xlu0 %v2316
    %v2318 = vpop.xlane.xlu0 %2317
    %v2319 = vsel %vm590, %v2311, 0.0
    %2320 = vadd.xlane.f32.xlu0 %v2319
    %v2321 = vpop.xlane.xlu0 %2320
    %v2322 = vsel %vm590, %v2312, 0.0
    %2323 = vadd.xlane.f32.xlu0 %v2322
    %v2324 = vpop.xlane.xlu0 %2323
    %v2325 = vadd.f32 %v2315, 1e-08
    %v2326 = vadd.f32 %v2318, 1e-08
    %v2327 = vadd.f32 %v2321, 1e-08
    %v2328 = vadd.f32 %v2324, 1e-08
    %v2329 = vrsqrt.pop %v2325
    %v2330 = vrsqrt.pop %v2326
    %v2331 = vrsqrt.pop %v2327
    %v2332 = vrsqrt.pop %v2328
    %v2333 = vmul.f32 %v2305, %v2329
    %v2334 = vmul.f32 %v2306, %v2330
    %v2335 = vmul.f32 %v2307, %v2331
    %v2336 = vmul.f32 %v2308, %v2332
    %v2337 = vld [vmem:[%s47] sm:$0xff]
    %v2338 = vld [vmem:[%s47 + $0x8] sm:$0xff]
    %v2339 = vld [vmem:[%s47 + $0x10] sm:$0xff]
    %v2340 = vld [vmem:[%s47 + $0x18] sm:$0xff]
    %2342 = vset.pattern.permute.xlu0 0
    %2343 = vperm.xlu0 %2342, %v2337
    %v2344 = vpop.permute.xlu0 %2343
    %2347 = vset.pattern.permute.xlu0 0
    %2348 = vperm.xlu0 %2347, %v2338
    %v2349 = vpop.permute.xlu0 %2348
    %2352 = vset.pattern.permute.xlu0 0
    %2353 = vperm.xlu0 %2352, %v2339
    %v2354 = vpop.permute.xlu0 %2353
    %2357 = vset.pattern.permute.xlu0 0
    %2358 = vperm.xlu0 %2357, %v2340
    %v2359 = vpop.permute.xlu0 %2358
    %v2362 = vsel %vm590, %v2333, 0
    %v2365 = vsel %vm590, %v2334, 0
    %v2368 = vsel %vm590, %v2335, 0
    %v2371 = vsel %vm590, %v2336, 0
    %2373 = vmatprep.subr.mxu0 0.0
    %2374 = vmatpush1.msra.mxu0 0.0
    %2375 = vmatprep.subr.mxu0 0.0
    %2376 = vmatpush1.msra.mxu0 0.0
    %2377 = vmatprep.subr.mxu0 0.0
    %2378 = vmatpush1.msra.mxu0 0.0
    %2379 = vmatprep.subr.mxu0 0.0
    %2380 = vmatpush1.msra.mxu0 0.0
    %2381 = vmatprep.subr.mxu0 0.0
    %2382 = vmatpush1.msra.mxu0 0.0
    %2383 = vmatprep.subr.mxu0 0.0
    %2384 = vmatpush1.msra.mxu0 0.0
    %2385 = vmatprep.subr.mxu0 0.0
    %2386 = vmatpush1.msra.mxu0 0.0
    %2387 = vmatprep.subr.mxu0 0.0
    %2388 = vmatpush1.msra.mxu0 0.0
    %2389 = vmatprep.subr.mxu0 0.0
    %2390 = vmatpush1.msra.mxu0 0.0
    %2391 = vmatprep.subr.mxu0 0.0
    %2392 = vmatpush1.msra.mxu0 0.0
    %2393 = vmatprep.subr.mxu0 0.0
    %2394 = vmatpush1.msra.mxu0 0.0
    %2395 = vmatprep.subr.mxu0 0.0
    %2396 = vmatpush1.msra.mxu0 0.0
    %2397 = vmatprep.subr.mxu0 %v2296
    %2398 = vmatpush1.msra.mxu0 %v2295
    %2399 = vmatprep.subr.mxu0 %v2294
    %2400 = vmatpush1.msra.mxu0 %v2293
    %2401 = vmatprep.subr.mxu0 %v2292
    %2402 = vmatpush1.msra.mxu0 %v2291
    %2403 = vmatprep.subr.mxu0 %v2290
    %2404 = vmatpush1.msra.mxu0 %v2289
    %2405 = vmatprep.subr.mxu0 0.0
    %2406 = vmatpush2.msra.mxu0 0.0
    %2407 = vmatprep.subr.mxu0 0.0
    %2408 = vmatpush2.msra.mxu0 0.0
    %2409 = vmatprep.subr.mxu0 0.0
    %2410 = vmatpush2.msra.mxu0 0.0
    %2411 = vmatprep.subr.mxu0 0.0
    %2412 = vmatpush2.msra.mxu0 0.0
    %2413 = vmatprep.subr.mxu0 0.0
    %2414 = vmatpush2.msra.mxu0 0.0
    %2415 = vmatprep.subr.mxu0 0.0
    %2416 = vmatpush2.msra.mxu0 0.0
    %2417 = vmatprep.subr.mxu0 0.0
    %2418 = vmatpush2.msra.mxu0 0.0
    %2419 = vmatprep.subr.mxu0 0.0
    %2420 = vmatpush2.msra.mxu0 0.0
    %2421 = vmatprep.subr.mxu0 0.0
    %2422 = vmatpush2.msra.mxu0 0.0
    %2423 = vmatprep.subr.mxu0 0.0
    %2424 = vmatpush2.msra.mxu0 0.0
    %2425 = vmatprep.subr.mxu0 0.0
    %2426 = vmatpush2.msra.mxu0 0.0
    %2427 = vmatprep.subr.mxu0 0.0
    %2428 = vmatpush2.msra.mxu0 0.0
    %2429 = vmatprep.subr.mxu0 0.0
    %2430 = vmatpush2.msra.mxu0 0.0
    %2431 = vmatprep.subr.mxu0 0.0
    %2432 = vmatpush2.msra.mxu0 0.0
    %2433 = vmatprep.subr.mxu0 0.0
    %2434 = vmatpush2.msra.mxu0 0.0
    %2435 = vmatprep.subr.mxu0 0.0
    %2436 = vmatpush2.msra.mxu0 0.0
    %2437 = vmatprep.mubr.f32.mxu0 0.0
    %2438 = vmatmul.mubr.f32.gmra.mxu0 %v2362
    %v2439 = vpop.f32.mrf.mxu0
    %v2440 = vadd.f32 %v2344, %v2439
    %v2441 = vpop.f32.mrf.mxu0
    %v2442 = vadd.f32 %v2344, %v2441
    %2443 = vmatprep.mubr.f32.mxu0 0.0
    %2444 = vmatmul.mubr.f32.gmra.mxu0 %v2365
    %v2445 = vpop.f32.mrf.mxu0
    %v2446 = vadd.f32 %v2349, %v2445
    %v2447 = vpop.f32.mrf.mxu0
    %v2448 = vadd.f32 %v2349, %v2447
    %2449 = vmatprep.mubr.f32.mxu0 0.0
    %2450 = vmatmul.mubr.f32.gmra.mxu0 %v2368
    %v2451 = vpop.f32.mrf.mxu0
    %v2452 = vadd.f32 %v2354, %v2451
    %v2453 = vpop.f32.mrf.mxu0
    %v2454 = vadd.f32 %v2354, %v2453
    %2455 = vmatprep.mubr.f32.mxu0 0.0
    %2456 = vmatmul.mubr.f32.gmra.mxu0 %v2371
    %v2457 = vpop.f32.mrf.mxu0
    %v2458 = vadd.f32 %v2359, %v2457
    %v2459 = vpop.f32.mrf.mxu0
    %v2460 = vadd.f32 %v2359, %v2459
    %2461 = vdwg.mxu0
    %vm2462 = vcmp.ge.f32.partialorder %v2440, 0.0
    %vm2463 = vcmp.ge.f32.partialorder %v2442, 0.0
    %vm2464 = vcmp.ge.f32.partialorder %v2446, 0.0
    %vm2465 = vcmp.ge.f32.partialorder %v2448, 0.0
    %vm2466 = vcmp.ge.f32.partialorder %v2452, 0.0
    %vm2467 = vcmp.ge.f32.partialorder %v2454, 0.0
    %vm2468 = vcmp.ge.f32.partialorder %v2458, 0.0
    %vm2469 = vcmp.ge.f32.partialorder %v2460, 0.0
    %v2470 = vmul.f32 %v2440, 0.2
    %v2471 = vmul.f32 %v2442, 0.2
    %v2472 = vmul.f32 %v2446, 0.2
    %v2473 = vmul.f32 %v2448, 0.2
    %v2474 = vmul.f32 %v2452, 0.2
    %v2475 = vmul.f32 %v2454, 0.2
    %v2476 = vmul.f32 %v2458, 0.2
    %v2477 = vmul.f32 %v2460, 0.2
    %v2478 = vsel %vm2462, %v2440, %v2470
    %v2479 = vsel %vm2463, %v2442, %v2471
    %v2480 = vsel %vm2464, %v2446, %v2472
    %v2481 = vsel %vm2465, %v2448, %v2473
    %v2482 = vsel %vm2466, %v2452, %v2474
    %v2483 = vsel %vm2467, %v2454, %v2475
    %v2484 = vsel %vm2468, %v2458, %v2476
    %v2485 = vsel %vm2469, %v2460, %v2477
    %v2486 = vmul.f32 %v2478, 1.4142135
    %v2487 = vmul.f32 %v2479, 1.4142135
    %v2488 = vmul.f32 %v2480, 1.4142135
    %v2489 = vmul.f32 %v2481, 1.4142135
    %v2490 = vmul.f32 %v2482, 1.4142135
    %v2491 = vmul.f32 %v2483, 1.4142135
    %v2492 = vmul.f32 %v2484, 1.4142135
    %v2493 = vmul.f32 %v2485, 1.4142135
    %v2494 = vld [vmem:[#allocation26] sm:$0x7]
    %v2495 = vlaneseq
    %v2496 = vshrl.u32 %v2495, 7
    %v2497 = vsub.s32 0, %v2496
    %v2498 = vrot.slane %v1354, %v2497
    %v2499 = vmul.f32 %v2494, %v2498
    %v2500 = vld [vmem:[%s55] sm:$0x7]
    %2502 = vset.pattern.permute.xlu0 0
    %2503 = vperm.xlu0 %2502, %v2500
    %v2504 = vpop.permute.xlu0 %2503
    %v2507 = vsel %vm590, %v2499, 0
    %2509 = vmatprep.subr.mxu0 0.0
    %2510 = vmatpush1.msra.mxu0 0.0
    %2511 = vmatprep.subr.mxu0 0.0
    %2512 = vmatpush1.msra.mxu0 0.0
    %2513 = vmatprep.subr.mxu0 0.0
    %2514 = vmatpush1.msra.mxu0 0.0
    %2515 = vmatprep.subr.mxu0 0.0
    %2516 = vmatpush1.msra.mxu0 0.0
    %2517 = vmatprep.subr.mxu0 0.0
    %2518 = vmatpush1.msra.mxu0 0.0
    %2519 = vmatprep.subr.mxu0 0.0
    %2520 = vmatpush1.msra.mxu0 0.0
    %2521 = vmatprep.subr.mxu0 0.0
    %2522 = vmatpush1.msra.mxu0 0.0
    %2523 = vmatprep.subr.mxu0 0.0
    %2524 = vmatpush1.msra.mxu0 0.0
    %2525 = vmatprep.subr.mxu0 0.0
    %2526 = vmatpush1.msra.mxu0 0.0
    %2527 = vmatprep.subr.mxu0 0.0
    %2528 = vmatpush1.msra.mxu0 0.0
    %2529 = vmatprep.subr.mxu0 0.0
    %2530 = vmatpush1.msra.mxu0 0.0
    %2531 = vmatprep.subr.mxu0 0.0
    %2532 = vmatpush1.msra.mxu0 0.0
    %2533 = vmatprep.subr.mxu0 %v2493
    %2534 = vmatpush1.msra.mxu0 %v2492
    %2535 = vmatprep.subr.mxu0 %v2491
    %2536 = vmatpush1.msra.mxu0 %v2490
    %2537 = vmatprep.subr.mxu0 %v2489
    %2538 = vmatpush1.msra.mxu0 %v2488
    %2539 = vmatprep.subr.mxu0 %v2487
    %2540 = vmatpush1.msra.mxu0 %v2486
    %2541 = vmatprep.subr.mxu0 0.0
    %2542 = vmatpush2.msra.mxu0 0.0
    %2543 = vmatprep.subr.mxu0 0.0
    %2544 = vmatpush2.msra.mxu0 0.0
    %2545 = vmatprep.subr.mxu0 0.0
    %2546 = vmatpush2.msra.mxu0 0.0
    %2547 = vmatprep.subr.mxu0 0.0
    %2548 = vmatpush2.msra.mxu0 0.0
    %2549 = vmatprep.subr.mxu0 0.0
    %2550 = vmatpush2.msra.mxu0 0.0
    %2551 = vmatprep.subr.mxu0 0.0
    %2552 = vmatpush2.msra.mxu0 0.0
    %2553 = vmatprep.subr.mxu0 0.0
    %2554 = vmatpush2.msra.mxu0 0.0
    %2555 = vmatprep.subr.mxu0 0.0
    %2556 = vmatpush2.msra.mxu0 0.0
    %2557 = vmatprep.subr.mxu0 0.0
    %2558 = vmatpush2.msra.mxu0 0.0
    %2559 = vmatprep.subr.mxu0 0.0
    %2560 = vmatpush2.msra.mxu0 0.0
    %2561 = vmatprep.subr.mxu0 0.0
    %2562 = vmatpush2.msra.mxu0 0.0
    %2563 = vmatprep.subr.mxu0 0.0
    %2564 = vmatpush2.msra.mxu0 0.0
    %2565 = vmatprep.subr.mxu0 0.0
    %2566 = vmatpush2.msra.mxu0 0.0
    %2567 = vmatprep.subr.mxu0 0.0
    %2568 = vmatpush2.msra.mxu0 0.0
    %2569 = vmatprep.subr.mxu0 0.0
    %2570 = vmatpush2.msra.mxu0 0.0
    %2571 = vmatprep.subr.mxu0 0.0
    %2572 = vmatpush2.msra.mxu0 0.0
    %2573 = vmatprep.mubr.f32.mxu0 0.0
    %2574 = vmatmul.mubr.f32.gmra.mxu0 %v2507
    %v2575 = vpop.f32.mrf.mxu0
    %v2576 = vadd.f32 %v2504, %v2575
    %v2577 = vpop.f32.mrf.mxu0
    %v2578 = vadd.f32 %v2504, %v2577
    %2579 = vdwg.mxu0
    %v2580 = vadd.f32 %v2576, 0.0
    %v2581 = vadd.f32 %v2578, 0.0
    %v2582 = vld [vmem:[%s61] sm:$0xff]
    %v2583 = vld [vmem:[%s61 + $0x8] sm:$0xff]
    %v2584 = vld [vmem:[%s61 + $0x10] sm:$0xff]
    %v2585 = vld [vmem:[%s61 + $0x18] sm:$0xff]
    %v2586 = vlaneseq
    %v2587 = vshrl.u32 %v2586, 7
    %v2588 = vsub.s32 0, %v2587
    %v2589 = vrot.slane %v1434, %v2588
    %v2590 = vmul.f32 %v2582, %v2589
    %v2591 = vmul.f32 %v2583, %v2589
    %v2592 = vmul.f32 %v2584, %v2589
    %v2593 = vmul.f32 %v2585, %v2589
    %v2594 = vmul.f32 %v2590, %v2590
    %v2595 = vmul.f32 %v2591, %v2591
    %v2596 = vmul.f32 %v2592, %v2592
    %v2597 = vmul.f32 %v2593, %v2593
    %v2598 = vsel %vm590, %v2594, 0.0
    %2599 = vadd.xlane.f32.xlu0 %v2598
    %v2600 = vpop.xlane.xlu0 %2599
    %v2601 = vsel %vm590, %v2595, 0.0
    %2602 = vadd.xlane.f32.xlu0 %v2601
    %v2603 = vpop.xlane.xlu0 %2602
    %v2604 = vsel %vm590, %v2596, 0.0
    %2605 = vadd.xlane.f32.xlu0 %v2604
    %v2606 = vpop.xlane.xlu0 %2605
    %v2607 = vsel %vm590, %v2597, 0.0
    %2608 = vadd.xlane.f32.xlu0 %v2607
    %v2609 = vpop.xlane.xlu0 %2608
    %v2610 = vadd.f32 %v2600, 1e-08
    %v2611 = vadd.f32 %v2603, 1e-08
    %v2612 = vadd.f32 %v2606, 1e-08
    %v2613 = vadd.f32 %v2609, 1e-08
    %v2614 = vrsqrt.pop %v2610
    %v2615 = vrsqrt.pop %v2611
    %v2616 = vrsqrt.pop %v2612
    %v2617 = vrsqrt.pop %v2613
    %v2618 = vmul.f32 %v2590, %v2614
    %v2619 = vmul.f32 %v2591, %v2615
    %v2620 = vmul.f32 %v2592, %v2616
    %v2621 = vmul.f32 %v2593, %v2617
    %v2622 = vld [vmem:[%s63] sm:$0xff]
    %v2623 = vld [vmem:[%s63 + $0x8] sm:$0xff]
    %v2624 = vld [vmem:[%s63 + $0x10] sm:$0xff]
    %v2625 = vld [vmem:[%s63 + $0x18] sm:$0xff]
    %2627 = vset.pattern.permute.xlu0 0
    %2628 = vperm.xlu0 %2627, %v2622
    %v2629 = vpop.permute.xlu0 %2628
    %2632 = vset.pattern.permute.xlu0 0
    %2633 = vperm.xlu0 %2632, %v2623
    %v2634 = vpop.permute.xlu0 %2633
    %2637 = vset.pattern.permute.xlu0 0
    %2638 = vperm.xlu0 %2637, %v2624
    %v2639 = vpop.permute.xlu0 %2638
    %2642 = vset.pattern.permute.xlu0 0
    %2643 = vperm.xlu0 %2642, %v2625
    %v2644 = vpop.permute.xlu0 %2643
    %v2647 = vsel %vm590, %v2618, 0
    %v2650 = vsel %vm590, %v2619, 0
    %v2653 = vsel %vm590, %v2620, 0
    %v2656 = vsel %vm590, %v2621, 0
    %2658 = vmatprep.subr.mxu0 0.0
    %2659 = vmatpush1.msra.mxu0 0.0
    %2660 = vmatprep.subr.mxu0 0.0
    %2661 = vmatpush1.msra.mxu0 0.0
    %2662 = vmatprep.subr.mxu0 0.0
    %2663 = vmatpush1.msra.mxu0 0.0
    %2664 = vmatprep.subr.mxu0 0.0
    %2665 = vmatpush1.msra.mxu0 0.0
    %2666 = vmatprep.subr.mxu0 0.0
    %2667 = vmatpush1.msra.mxu0 0.0
    %2668 = vmatprep.subr.mxu0 0.0
    %2669 = vmatpush1.msra.mxu0 0.0
    %2670 = vmatprep.subr.mxu0 0.0
    %2671 = vmatpush1.msra.mxu0 0.0
    %2672 = vmatprep.subr.mxu0 0.0
    %2673 = vmatpush1.msra.mxu0 0.0
    %2674 = vmatprep.subr.mxu0 0.0
    %2675 = vmatpush1.msra.mxu0 0.0
    %2676 = vmatprep.subr.mxu0 0.0
    %2677 = vmatpush1.msra.mxu0 0.0
    %2678 = vmatprep.subr.mxu0 0.0
    %2679 = vmatpush1.msra.mxu0 0.0
    %2680 = vmatprep.subr.mxu0 0.0
    %2681 = vmatpush1.msra.mxu0 0.0
    %2682 = vmatprep.subr.mxu0 %v2493
    %2683 = vmatpush1.msra.mxu0 %v2492
    %2684 = vmatprep.subr.mxu0 %v2491
    %2685 = vmatpush1.msra.mxu0 %v2490
    %2686 = vmatprep.subr.mxu0 %v2489
    %2687 = vmatpush1.msra.mxu0 %v2488
    %2688 = vmatprep.subr.mxu0 %v2487
    %2689 = vmatpush1.msra.mxu0 %v2486
    %2690 = vmatprep.subr.mxu0 0.0
    %2691 = vmatpush2.msra.mxu0 0.0
    %2692 = vmatprep.subr.mxu0 0.0
    %2693 = vmatpush2.msra.mxu0 0.0
    %2694 = vmatprep.subr.mxu0 0.0
    %2695 = vmatpush2.msra.mxu0 0.0
    %2696 = vmatprep.subr.mxu0 0.0
    %2697 = vmatpush2.msra.mxu0 0.0
    %2698 = vmatprep.subr.mxu0 0.0
    %2699 = vmatpush2.msra.mxu0 0.0
    %2700 = vmatprep.subr.mxu0 0.0
    %2701 = vmatpush2.msra.mxu0 0.0
    %2702 = vmatprep.subr.mxu0 0.0
    %2703 = vmatpush2.msra.mxu0 0.0
    %2704 = vmatprep.subr.mxu0 0.0
    %2705 = vmatpush2.msra.mxu0 0.0
    %2706 = vmatprep.subr.mxu0 0.0
    %2707 = vmatpush2.msra.mxu0 0.0
    %2708 = vmatprep.subr.mxu0 0.0
    %2709 = vmatpush2.msra.mxu0 0.0
    %2710 = vmatprep.subr.mxu0 0.0
    %2711 = vmatpush2.msra.mxu0 0.0
    %2712 = vmatprep.subr.mxu0 0.0
    %2713 = vmatpush2.msra.mxu0 0.0
    %2714 = vmatprep.subr.mxu0 0.0
    %2715 = vmatpush2.msra.mxu0 0.0
    %2716 = vmatprep.subr.mxu0 0.0
    %2717 = vmatpush2.msra.mxu0 0.0
    %2718 = vmatprep.subr.mxu0 0.0
    %2719 = vmatpush2.msra.mxu0 0.0
    %2720 = vmatprep.subr.mxu0 0.0
    %2721 = vmatpush2.msra.mxu0 0.0
    %2722 = vmatprep.mubr.f32.mxu0 0.0
    %2723 = vmatmul.mubr.f32.gmra.mxu0 %v2647
    %v2724 = vpop.f32.mrf.mxu0
    %v2725 = vadd.f32 %v2629, %v2724
    %v2726 = vpop.f32.mrf.mxu0
    %v2727 = vadd.f32 %v2629, %v2726
    %2728 = vmatprep.mubr.f32.mxu0 0.0
    %2729 = vmatmul.mubr.f32.gmra.mxu0 %v2650
    %v2730 = vpop.f32.mrf.mxu0
    %v2731 = vadd.f32 %v2634, %v2730
    %v2732 = vpop.f32.mrf.mxu0
    %v2733 = vadd.f32 %v2634, %v2732
    %2734 = vmatprep.mubr.f32.mxu0 0.0
    %2735 = vmatmul.mubr.f32.gmra.mxu0 %v2653
    %v2736 = vpop.f32.mrf.mxu0
    %v2737 = vadd.f32 %v2639, %v2736
    %v2738 = vpop.f32.mrf.mxu0
    %v2739 = vadd.f32 %v2639, %v2738
    %2740 = vmatprep.mubr.f32.mxu0 0.0
    %2741 = vmatmul.mubr.f32.gmra.mxu0 %v2656
    %v2742 = vpop.f32.mrf.mxu0
    %v2743 = vadd.f32 %v2644, %v2742
    %v2744 = vpop.f32.mrf.mxu0
    %v2745 = vadd.f32 %v2644, %v2744
    %2746 = vdwg.mxu0
    %vm2747 = vcmp.ge.f32.partialorder %v2725, 0.0
    %vm2748 = vcmp.ge.f32.partialorder %v2727, 0.0
    %vm2749 = vcmp.ge.f32.partialorder %v2731, 0.0
    %vm2750 = vcmp.ge.f32.partialorder %v2733, 0.0
    %vm2751 = vcmp.ge.f32.partialorder %v2737, 0.0
    %vm2752 = vcmp.ge.f32.partialorder %v2739, 0.0
    %vm2753 = vcmp.ge.f32.partialorder %v2743, 0.0
    %vm2754 = vcmp.ge.f32.partialorder %v2745, 0.0
    %v2755 = vmul.f32 %v2725, 0.2
    %v2756 = vmul.f32 %v2727, 0.2
    %v2757 = vmul.f32 %v2731, 0.2
    %v2758 = vmul.f32 %v2733, 0.2
    %v2759 = vmul.f32 %v2737, 0.2
    %v2760 = vmul.f32 %v2739, 0.2
    %v2761 = vmul.f32 %v2743, 0.2
    %v2762 = vmul.f32 %v2745, 0.2
    %v2763 = vsel %vm2747, %v2725, %v2755
    %v2764 = vsel %vm2748, %v2727, %v2756
    %v2765 = vsel %vm2749, %v2731, %v2757
    %v2766 = vsel %vm2750, %v2733, %v2758
    %v2767 = vsel %vm2751, %v2737, %v2759
    %v2768 = vsel %vm2752, %v2739, %v2760
    %v2769 = vsel %vm2753, %v2743, %v2761
    %v2770 = vsel %vm2754, %v2745, %v2762
    %v2771 = vmul.f32 %v2763, 1.4142135
    %v2772 = vmul.f32 %v2764, 1.4142135
    %v2773 = vmul.f32 %v2765, 1.4142135
    %v2774 = vmul.f32 %v2766, 1.4142135
    %v2775 = vmul.f32 %v2767, 1.4142135
    %v2776 = vmul.f32 %v2768, 1.4142135
    %v2777 = vmul.f32 %v2769, 1.4142135
    %v2778 = vmul.f32 %v2770, 1.4142135
    %v2779 = vld [vmem:[%s69] sm:$0xff]
    %v2780 = vld [vmem:[%s69 + $0x8] sm:$0xff]
    %v2781 = vld [vmem:[%s69 + $0x10] sm:$0xff]
    %v2782 = vld [vmem:[%s69 + $0x18] sm:$0xff]
    %v2783 = vlaneseq
    %v2784 = vshrl.u32 %v2783, 7
    %v2785 = vsub.s32 0, %v2784
    %v2786 = vrot.slane %v1514, %v2785
    %v2787 = vmul.f32 %v2779, %v2786
    %v2788 = vmul.f32 %v2780, %v2786
    %v2789 = vmul.f32 %v2781, %v2786
    %v2790 = vmul.f32 %v2782, %v2786
    %v2791 = vmul.f32 %v2787, %v2787
    %v2792 = vmul.f32 %v2788, %v2788
    %v2793 = vmul.f32 %v2789, %v2789
    %v2794 = vmul.f32 %v2790, %v2790
    %v2795 = vsel %vm590, %v2791, 0.0
    %2796 = vadd.xlane.f32.xlu0 %v2795
    %v2797 = vpop.xlane.xlu0 %2796
    %v2798 = vsel %vm590, %v2792, 0.0
    %2799 = vadd.xlane.f32.xlu0 %v2798
    %v2800 = vpop.xlane.xlu0 %2799
    %v2801 = vsel %vm590, %v2793, 0.0
    %2802 = vadd.xlane.f32.xlu0 %v2801
    %v2803 = vpop.xlane.xlu0 %2802
    %v2804 = vsel %vm590, %v2794, 0.0
    %2805 = vadd.xlane.f32.xlu0 %v2804
    %v2806 = vpop.xlane.xlu0 %2805
    %v2807 = vadd.f32 %v2797, 1e-08
    %v2808 = vadd.f32 %v2800, 1e-08
    %v2809 = vadd.f32 %v2803, 1e-08
    %v2810 = vadd.f32 %v2806, 1e-08
    %v2811 = vrsqrt.pop %v2807
    %v2812 = vrsqrt.pop %v2808
    %v2813 = vrsqrt.pop %v2809
    %v2814 = vrsqrt.pop %v2810
    %v2815 = vmul.f32 %v2787, %v2811
    %v2816 = vmul.f32 %v2788, %v2812
    %v2817 = vmul.f32 %v2789, %v2813
    %v2818 = vmul.f32 %v2790, %v2814
    %v2819 = vld [vmem:[%s71] sm:$0xff]
    %v2820 = vld [vmem:[%s71 + $0x8] sm:$0xff]
    %v2821 = vld [vmem:[%s71 + $0x10] sm:$0xff]
    %v2822 = vld [vmem:[%s71 + $0x18] sm:$0xff]
    %2824 = vset.pattern.permute.xlu0 0
    %2825 = vperm.xlu0 %2824, %v2819
    %v2826 = vpop.permute.xlu0 %2825
    %2829 = vset.pattern.permute.xlu0 0
    %2830 = vperm.xlu0 %2829, %v2820
    %v2831 = vpop.permute.xlu0 %2830
    %2834 = vset.pattern.permute.xlu0 0
    %2835 = vperm.xlu0 %2834, %v2821
    %v2836 = vpop.permute.xlu0 %2835
    %2839 = vset.pattern.permute.xlu0 0
    %2840 = vperm.xlu0 %2839, %v2822
    %v2841 = vpop.permute.xlu0 %2840
    %v2844 = vsel %vm590, %v2815, 0
    %v2847 = vsel %vm590, %v2816, 0
    %v2850 = vsel %vm590, %v2817, 0
    %v2853 = vsel %vm590, %v2818, 0
    %2855 = vmatprep.subr.mxu0 0.0
    %2856 = vmatpush1.msra.mxu0 0.0
    %2857 = vmatprep.subr.mxu0 0.0
    %2858 = vmatpush1.msra.mxu0 0.0
    %2859 = vmatprep.subr.mxu0 0.0
    %2860 = vmatpush1.msra.mxu0 0.0
    %2861 = vmatprep.subr.mxu0 0.0
    %2862 = vmatpush1.msra.mxu0 0.0
    %2863 = vmatprep.subr.mxu0 0.0
    %2864 = vmatpush1.msra.mxu0 0.0
    %2865 = vmatprep.subr.mxu0 0.0
    %2866 = vmatpush1.msra.mxu0 0.0
    %2867 = vmatprep.subr.mxu0 0.0
    %2868 = vmatpush1.msra.mxu0 0.0
    %2869 = vmatprep.subr.mxu0 0.0
    %2870 = vmatpush1.msra.mxu0 0.0
    %2871 = vmatprep.subr.mxu0 0.0
    %2872 = vmatpush1.msra.mxu0 0.0
    %2873 = vmatprep.subr.mxu0 0.0
    %2874 = vmatpush1.msra.mxu0 0.0
    %2875 = vmatprep.subr.mxu0 0.0
    %2876 = vmatpush1.msra.mxu0 0.0
    %2877 = vmatprep.subr.mxu0 0.0
    %2878 = vmatpush1.msra.mxu0 0.0
    %2879 = vmatprep.subr.mxu0 %v2778
    %2880 = vmatpush1.msra.mxu0 %v2777
    %2881 = vmatprep.subr.mxu0 %v2776
    %2882 = vmatpush1.msra.mxu0 %v2775
    %2883 = vmatprep.subr.mxu0 %v2774
    %2884 = vmatpush1.msra.mxu0 %v2773
    %2885 = vmatprep.subr.mxu0 %v2772
    %2886 = vmatpush1.msra.mxu0 %v2771
    %2887 = vmatprep.subr.mxu0 0.0
    %2888 = vmatpush2.msra.mxu0 0.0
    %2889 = vmatprep.subr.mxu0 0.0
    %2890 = vmatpush2.msra.mxu0 0.0
    %2891 = vmatprep.subr.mxu0 0.0
    %2892 = vmatpush2.msra.mxu0 0.0
    %2893 = vmatprep.subr.mxu0 0.0
    %2894 = vmatpush2.msra.mxu0 0.0
    %2895 = vmatprep.subr.mxu0 0.0
    %2896 = vmatpush2.msra.mxu0 0.0
    %2897 = vmatprep.subr.mxu0 0.0
    %2898 = vmatpush2.msra.mxu0 0.0
    %2899 = vmatprep.subr.mxu0 0.0
    %2900 = vmatpush2.msra.mxu0 0.0
    %2901 = vmatprep.subr.mxu0 0.0
    %2902 = vmatpush2.msra.mxu0 0.0
    %2903 = vmatprep.subr.mxu0 0.0
    %2904 = vmatpush2.msra.mxu0 0.0
    %2905 = vmatprep.subr.mxu0 0.0
    %2906 = vmatpush2.msra.mxu0 0.0
    %2907 = vmatprep.subr.mxu0 0.0
    %2908 = vmatpush2.msra.mxu0 0.0
    %2909 = vmatprep.subr.mxu0 0.0
    %2910 = vmatpush2.msra.mxu0 0.0
    %2911 = vmatprep.subr.mxu0 0.0
    %2912 = vmatpush2.msra.mxu0 0.0
    %2913 = vmatprep.subr.mxu0 0.0
    %2914 = vmatpush2.msra.mxu0 0.0
    %2915 = vmatprep.subr.mxu0 0.0
    %2916 = vmatpush2.msra.mxu0 0.0
    %2917 = vmatprep.subr.mxu0 0.0
    %2918 = vmatpush2.msra.mxu0 0.0
    %2919 = vmatprep.mubr.f32.mxu0 0.0
    %2920 = vmatmul.mubr.f32.gmra.mxu0 %v2844
    %v2921 = vpop.f32.mrf.mxu0
    %v2922 = vadd.f32 %v2826, %v2921
    %v2923 = vpop.f32.mrf.mxu0
    %v2924 = vadd.f32 %v2826, %v2923
    %2925 = vmatprep.mubr.f32.mxu0 0.0
    %2926 = vmatmul.mubr.f32.gmra.mxu0 %v2847
    %v2927 = vpop.f32.mrf.mxu0
    %v2928 = vadd.f32 %v2831, %v2927
    %v2929 = vpop.f32.mrf.mxu0
    %v2930 = vadd.f32 %v2831, %v2929
    %2931 = vmatprep.mubr.f32.mxu0 0.0
    %2932 = vmatmul.mubr.f32.gmra.mxu0 %v2850
    %v2933 = vpop.f32.mrf.mxu0
    %v2934 = vadd.f32 %v2836, %v2933
    %v2935 = vpop.f32.mrf.mxu0
    %v2936 = vadd.f32 %v2836, %v2935
    %2937 = vmatprep.mubr.f32.mxu0 0.0
    %2938 = vmatmul.mubr.f32.gmra.mxu0 %v2853
    %v2939 = vpop.f32.mrf.mxu0
    %v2940 = vadd.f32 %v2841, %v2939
    %v2941 = vpop.f32.mrf.mxu0
    %v2942 = vadd.f32 %v2841, %v2941
    %2943 = vdwg.mxu0
    %vm2944 = vcmp.ge.f32.partialorder %v2922, 0.0
    %vm2945 = vcmp.ge.f32.partialorder %v2924, 0.0
    %vm2946 = vcmp.ge.f32.partialorder %v2928, 0.0
    %vm2947 = vcmp.ge.f32.partialorder %v2930, 0.0
    %vm2948 = vcmp.ge.f32.partialorder %v2934, 0.0
    %vm2949 = vcmp.ge.f32.partialorder %v2936, 0.0
    %vm2950 = vcmp.ge.f32.partialorder %v2940, 0.0
    %vm2951 = vcmp.ge.f32.partialorder %v2942, 0.0
    %v2952 = vmul.f32 %v2922, 0.2
    %v2953 = vmul.f32 %v2924, 0.2
    %v2954 = vmul.f32 %v2928, 0.2
    %v2955 = vmul.f32 %v2930, 0.2
    %v2956 = vmul.f32 %v2934, 0.2
    %v2957 = vmul.f32 %v2936, 0.2
    %v2958 = vmul.f32 %v2940, 0.2
    %v2959 = vmul.f32 %v2942, 0.2
    %v2960 = vsel %vm2944, %v2922, %v2952
    %v2961 = vsel %vm2945, %v2924, %v2953
    %v2962 = vsel %vm2946, %v2928, %v2954
    %v2963 = vsel %vm2947, %v2930, %v2955
    %v2964 = vsel %vm2948, %v2934, %v2956
    %v2965 = vsel %vm2949, %v2936, %v2957
    %v2966 = vsel %vm2950, %v2940, %v2958
    %v2967 = vsel %vm2951, %v2942, %v2959
    %v2968 = vmul.f32 %v2960, 1.4142135
    %v2969 = vmul.f32 %v2961, 1.4142135
    %v2970 = vmul.f32 %v2962, 1.4142135
    %v2971 = vmul.f32 %v2963, 1.4142135
    %v2972 = vmul.f32 %v2964, 1.4142135
    %v2973 = vmul.f32 %v2965, 1.4142135
    %v2974 = vmul.f32 %v2966, 1.4142135
    %v2975 = vmul.f32 %v2967, 1.4142135
    %v2976 = vld [vmem:[#allocation35] sm:$0x7]
    %v2977 = vlaneseq
    %v2978 = vshrl.u32 %v2977, 7
    %v2979 = vsub.s32 0, %v2978
    %v2980 = vrot.slane %v1594, %v2979
    %v2981 = vmul.f32 %v2976, %v2980
    %v2982 = vld [vmem:[%s79] sm:$0x7]
    %2984 = vset.pattern.permute.xlu0 0
    %2985 = vperm.xlu0 %2984, %v2982
    %v2986 = vpop.permute.xlu0 %2985
    %v2989 = vsel %vm590, %v2981, 0
    %2991 = vmatprep.subr.mxu0 0.0
    %2992 = vmatpush1.msra.mxu0 0.0
    %2993 = vmatprep.subr.mxu0 0.0
    %2994 = vmatpush1.msra.mxu0 0.0
    %2995 = vmatprep.subr.mxu0 0.0
    %2996 = vmatpush1.msra.mxu0 0.0
    %2997 = vmatprep.subr.mxu0 0.0
    %2998 = vmatpush1.msra.mxu0 0.0
    %2999 = vmatprep.subr.mxu0 0.0
    %3000 = vmatpush1.msra.mxu0 0.0
    %3001 = vmatprep.subr.mxu0 0.0
    %3002 = vmatpush1.msra.mxu0 0.0
    %3003 = vmatprep.subr.mxu0 0.0
    %3004 = vmatpush1.msra.mxu0 0.0
    %3005 = vmatprep.subr.mxu0 0.0
    %3006 = vmatpush1.msra.mxu0 0.0
    %3007 = vmatprep.subr.mxu0 0.0
    %3008 = vmatpush1.msra.mxu0 0.0
    %3009 = vmatprep.subr.mxu0 0.0
    %3010 = vmatpush1.msra.mxu0 0.0
    %3011 = vmatprep.subr.mxu0 0.0
    %3012 = vmatpush1.msra.mxu0 0.0
    %3013 = vmatprep.subr.mxu0 0.0
    %3014 = vmatpush1.msra.mxu0 0.0
    %3015 = vmatprep.subr.mxu0 %v2975
    %3016 = vmatpush1.msra.mxu0 %v2974
    %3017 = vmatprep.subr.mxu0 %v2973
    %3018 = vmatpush1.msra.mxu0 %v2972
    %3019 = vmatprep.subr.mxu0 %v2971
    %3020 = vmatpush1.msra.mxu0 %v2970
    %3021 = vmatprep.subr.mxu0 %v2969
    %3022 = vmatpush1.msra.mxu0 %v2968
    %3023 = vmatprep.subr.mxu0 0.0
    %3024 = vmatpush2.msra.mxu0 0.0
    %3025 = vmatprep.subr.mxu0 0.0
    %3026 = vmatpush2.msra.mxu0 0.0
    %3027 = vmatprep.subr.mxu0 0.0
    %3028 = vmatpush2.msra.mxu0 0.0
    %3029 = vmatprep.subr.mxu0 0.0
    %3030 = vmatpush2.msra.mxu0 0.0
    %3031 = vmatprep.subr.mxu0 0.0
    %3032 = vmatpush2.msra.mxu0 0.0
    %3033 = vmatprep.subr.mxu0 0.0
    %3034 = vmatpush2.msra.mxu0 0.0
    %3035 = vmatprep.subr.mxu0 0.0
    %3036 = vmatpush2.msra.mxu0 0.0
    %3037 = vmatprep.subr.mxu0 0.0
    %3038 = vmatpush2.msra.mxu0 0.0
    %3039 = vmatprep.subr.mxu0 0.0
    %3040 = vmatpush2.msra.mxu0 0.0
    %3041 = vmatprep.subr.mxu0 0.0
    %3042 = vmatpush2.msra.mxu0 0.0
    %3043 = vmatprep.subr.mxu0 0.0
    %3044 = vmatpush2.msra.mxu0 0.0
    %3045 = vmatprep.subr.mxu0 0.0
    %3046 = vmatpush2.msra.mxu0 0.0
    %3047 = vmatprep.subr.mxu0 0.0
    %3048 = vmatpush2.msra.mxu0 0.0
    %3049 = vmatprep.subr.mxu0 0.0
    %3050 = vmatpush2.msra.mxu0 0.0
    %3051 = vmatprep.subr.mxu0 0.0
    %3052 = vmatpush2.msra.mxu0 0.0
    %3053 = vmatprep.subr.mxu0 0.0
    %3054 = vmatpush2.msra.mxu0 0.0
    %3055 = vmatprep.mubr.f32.mxu0 0.0
    %3056 = vmatmul.mubr.f32.gmra.mxu0 %v2989
    %v3057 = vpop.f32.mrf.mxu0
    %v3058 = vadd.f32 %v2986, %v3057
    %v3059 = vpop.f32.mrf.mxu0
    %v3060 = vadd.f32 %v2986, %v3059
    %3061 = vdwg.mxu0
    %v3062 = vadd.f32 %v2580, %v3058
    %v3063 = vadd.f32 %v2581, %v3060
    %v3064 = vld [vmem:[%s85] sm:$0xff]
    %v3065 = vld [vmem:[%s85 + $0x8] sm:$0xff]
    %v3066 = vlaneseq
    %v3067 = vshrl.u32 %v3066, 7
    %v3068 = vsub.s32 0, %v3067
    %v3069 = vrot.slane %v1674, %v3068
    %v3070 = vmul.f32 %v3064, %v3069
    %v3071 = vmul.f32 %v3065, %v3069
    %v3072 = vmul.f32 %v3070, %v3070
    %v3073 = vmul.f32 %v3071, %v3071
    %v3074 = vsel %vm590, %v3072, 0.0
    %3075 = vadd.xlane.f32.xlu0 %v3074
    %v3076 = vpop.xlane.xlu0 %3075
    %v3077 = vsel %vm590, %v3073, 0.0
    %3078 = vadd.xlane.f32.xlu0 %v3077
    %v3079 = vpop.xlane.xlu0 %3078
    %v3080 = vadd.f32 %v3076, 1e-08
    %v3081 = vadd.f32 %v3079, 1e-08
    %v3082 = vrsqrt.pop %v3080
    %v3083 = vrsqrt.pop %v3081
    %v3084 = vmul.f32 %v3070, %v3082
    %v3085 = vmul.f32 %v3071, %v3083
    %v3086 = vld [vmem:[%s87] sm:$0xff]
    %v3087 = vld [vmem:[%s87 + $0x8] sm:$0xff]
    %3089 = vset.pattern.permute.xlu0 0
    %3090 = vperm.xlu0 %3089, %v3086
    %v3091 = vpop.permute.xlu0 %3090
    %3094 = vset.pattern.permute.xlu0 0
    %3095 = vperm.xlu0 %3094, %v3087
    %v3096 = vpop.permute.xlu0 %3095
    %v3099 = vsel %vm590, %v3084, 0
    %v3102 = vsel %vm590, %v3085, 0
    %3104 = vmatprep.subr.mxu0 0.0
    %3105 = vmatpush1.msra.mxu0 0.0
    %3106 = vmatprep.subr.mxu0 0.0
    %3107 = vmatpush1.msra.mxu0 0.0
    %3108 = vmatprep.subr.mxu0 0.0
    %3109 = vmatpush1.msra.mxu0 0.0
    %3110 = vmatprep.subr.mxu0 0.0
    %3111 = vmatpush1.msra.mxu0 0.0
    %3112 = vmatprep.subr.mxu0 0.0
    %3113 = vmatpush1.msra.mxu0 0.0
    %3114 = vmatprep.subr.mxu0 0.0
    %3115 = vmatpush1.msra.mxu0 0.0
    %3116 = vmatprep.subr.mxu0 0.0
    %3117 = vmatpush1.msra.mxu0 0.0
    %3118 = vmatprep.subr.mxu0 0.0
    %3119 = vmatpush1.msra.mxu0 0.0
    %3120 = vmatprep.subr.mxu0 0.0
    %3121 = vmatpush1.msra.mxu0 0.0
    %3122 = vmatprep.subr.mxu0 0.0
    %3123 = vmatpush1.msra.mxu0 0.0
    %3124 = vmatprep.subr.mxu0 0.0
    %3125 = vmatpush1.msra.mxu0 0.0
    %3126 = vmatprep.subr.mxu0 0.0
    %3127 = vmatpush1.msra.mxu0 0.0
    %3128 = vmatprep.subr.mxu0 %v2975
    %3129 = vmatpush1.msra.mxu0 %v2974
    %3130 = vmatprep.subr.mxu0 %v2973
    %3131 = vmatpush1.msra.mxu0 %v2972
    %3132 = vmatprep.subr.mxu0 %v2971
    %3133 = vmatpush1.msra.mxu0 %v2970
    %3134 = vmatprep.subr.mxu0 %v2969
    %3135 = vmatpush1.msra.mxu0 %v2968
    %3136 = vmatprep.subr.mxu0 0.0
    %3137 = vmatpush2.msra.mxu0 0.0
    %3138 = vmatprep.subr.mxu0 0.0
    %3139 = vmatpush2.msra.mxu0 0.0
    %3140 = vmatprep.subr.mxu0 0.0
    %3141 = vmatpush2.msra.mxu0 0.0
    %3142 = vmatprep.subr.mxu0 0.0
    %3143 = vmatpush2.msra.mxu0 0.0
    %3144 = vmatprep.subr.mxu0 0.0
    %3145 = vmatpush2.msra.mxu0 0.0
    %3146 = vmatprep.subr.mxu0 0.0
    %3147 = vmatpush2.msra.mxu0 0.0
    %3148 = vmatprep.subr.mxu0 0.0
    %3149 = vmatpush2.msra.mxu0 0.0
    %3150 = vmatprep.subr.mxu0 0.0
    %3151 = vmatpush2.msra.mxu0 0.0
    %3152 = vmatprep.subr.mxu0 0.0
    %3153 = vmatpush2.msra.mxu0 0.0
    %3154 = vmatprep.subr.mxu0 0.0
    %3155 = vmatpush2.msra.mxu0 0.0
    %3156 = vmatprep.subr.mxu0 0.0
    %3157 = vmatpush2.msra.mxu0 0.0
    %3158 = vmatprep.subr.mxu0 0.0
    %3159 = vmatpush2.msra.mxu0 0.0
    %3160 = vmatprep.subr.mxu0 0.0
    %3161 = vmatpush2.msra.mxu0 0.0
    %3162 = vmatprep.subr.mxu0 0.0
    %3163 = vmatpush2.msra.mxu0 0.0
    %3164 = vmatprep.subr.mxu0 0.0
    %3165 = vmatpush2.msra.mxu0 0.0
    %3166 = vmatprep.subr.mxu0 0.0
    %3167 = vmatpush2.msra.mxu0 0.0
    %3168 = vmatprep.mubr.f32.mxu0 0.0
    %3169 = vmatmul.mubr.f32.gmra.mxu0 %v3099
    %v3170 = vpop.f32.mrf.mxu0
    %v3171 = vadd.f32 %v3091, %v3170
    %v3172 = vpop.f32.mrf.mxu0
    %v3173 = vadd.f32 %v3091, %v3172
    %3174 = vmatprep.mubr.f32.mxu0 0.0
    %3175 = vmatmul.mubr.f32.gmra.mxu0 %v3102
    %v3176 = vpop.f32.mrf.mxu0
    %v3177 = vadd.f32 %v3096, %v3176
    %v3178 = vpop.f32.mrf.mxu0
    %v3179 = vadd.f32 %v3096, %v3178
    %3180 = vdwg.mxu0
    %vm3181 = vcmp.ge.f32.partialorder %v3171, 0.0
    %vm3182 = vcmp.ge.f32.partialorder %v3173, 0.0
    %vm3183 = vcmp.ge.f32.partialorder %v3177, 0.0
    %vm3184 = vcmp.ge.f32.partialorder %v3179, 0.0
    %v3185 = vmul.f32 %v3171, 0.2
    %v3186 = vmul.f32 %v3173, 0.2
    %v3187 = vmul.f32 %v3177, 0.2
    %v3188 = vmul.f32 %v3179, 0.2
    %v3189 = vsel %vm3181, %v3171, %v3185
    %v3190 = vsel %vm3182, %v3173, %v3186
    %v3191 = vsel %vm3183, %v3177, %v3187
    %v3192 = vsel %vm3184, %v3179, %v3188
    %v3193 = vmul.f32 %v3189, 1.4142135
    %v3194 = vmul.f32 %v3190, 1.4142135
    %v3195 = vmul.f32 %v3191, 1.4142135
    %v3196 = vmul.f32 %v3192, 1.4142135
    %v3197 = vld [vmem:[#allocation43] sm:$0xff]
    %v3198 = vld [vmem:[#allocation43 + $0x8] sm:$0xff]
    %v3199 = vlaneseq
    %v3200 = vshrl.u32 %v3199, 7
    %v3201 = vsub.s32 0, %v3200
    %v3202 = vrot.slane %v1754, %v3201
    %v3203 = vmul.f32 %v3197, %v3202
    %v3204 = vmul.f32 %v3198, %v3202
    %v3205 = vmul.f32 %v3203, %v3203
    %v3206 = vmul.f32 %v3204, %v3204
    %v3207 = vsel %vm859, %v3205, 0.0
    %3208 = vadd.xlane.f32.xlu0 %v3207
    %v3209 = vpop.xlane.xlu0 %3208
    %v3210 = vsel %vm859, %v3206, 0.0
    %3211 = vadd.xlane.f32.xlu0 %v3210
    %v3212 = vpop.xlane.xlu0 %3211
    %v3213 = vadd.f32 %v3209, 1e-08
    %v3214 = vadd.f32 %v3212, 1e-08
    %v3215 = vrsqrt.pop %v3213
    %v3216 = vrsqrt.pop %v3214
    %v3217 = vmul.f32 %v3203, %v3215
    %v3218 = vmul.f32 %v3204, %v3216
    %v3219 = vld [vmem:[%s95] sm:$0xff]
    %v3220 = vld [vmem:[%s95 + $0x8] sm:$0xff]
    %3222 = vset.pattern.permute.xlu0 0
    %3223 = vperm.xlu0 %3222, %v3219
    %v3224 = vpop.permute.xlu0 %3223
    %3227 = vset.pattern.permute.xlu0 0
    %3228 = vperm.xlu0 %3227, %v3220
    %v3229 = vpop.permute.xlu0 %3228
    %v3232 = vsel %vm859, %v3217, 0
    %v3235 = vsel %vm859, %v3218, 0
    %3237 = vmatprep.subr.mxu0 0.0
    %3238 = vmatpush1.msra.mxu0 0.0
    %3239 = vmatprep.subr.mxu0 0.0
    %3240 = vmatpush1.msra.mxu0 0.0
    %3241 = vmatprep.subr.mxu0 0.0
    %3242 = vmatpush1.msra.mxu0 0.0
    %3243 = vmatprep.subr.mxu0 0.0
    %3244 = vmatpush1.msra.mxu0 0.0
    %3245 = vmatprep.subr.mxu0 0.0
    %3246 = vmatpush1.msra.mxu0 0.0
    %3247 = vmatprep.subr.mxu0 0.0
    %3248 = vmatpush1.msra.mxu0 0.0
    %3249 = vmatprep.subr.mxu0 0.0
    %3250 = vmatpush1.msra.mxu0 0.0
    %3251 = vmatprep.subr.mxu0 0.0
    %3252 = vmatpush1.msra.mxu0 0.0
    %3253 = vmatprep.subr.mxu0 0.0
    %3254 = vmatpush1.msra.mxu0 0.0
    %3255 = vmatprep.subr.mxu0 0.0
    %3256 = vmatpush1.msra.mxu0 0.0
    %3257 = vmatprep.subr.mxu0 0.0
    %3258 = vmatpush1.msra.mxu0 0.0
    %3259 = vmatprep.subr.mxu0 0.0
    %3260 = vmatpush1.msra.mxu0 0.0
    %3261 = vmatprep.subr.mxu0 0.0
    %3262 = vmatpush1.msra.mxu0 0.0
    %3263 = vmatprep.subr.mxu0 0.0
    %3264 = vmatpush1.msra.mxu0 0.0
    %3265 = vmatprep.subr.mxu0 %v3196
    %3266 = vmatpush1.msra.mxu0 %v3195
    %3267 = vmatprep.subr.mxu0 %v3194
    %3268 = vmatpush1.msra.mxu0 %v3193
    %3269 = vmatprep.subr.mxu0 0.0
    %3270 = vmatpush2.msra.mxu0 0.0
    %3271 = vmatprep.subr.mxu0 0.0
    %3272 = vmatpush2.msra.mxu0 0.0
    %3273 = vmatprep.subr.mxu0 0.0
    %3274 = vmatpush2.msra.mxu0 0.0
    %3275 = vmatprep.subr.mxu0 0.0
    %3276 = vmatpush2.msra.mxu0 0.0
    %3277 = vmatprep.subr.mxu0 0.0
    %3278 = vmatpush2.msra.mxu0 0.0
    %3279 = vmatprep.subr.mxu0 0.0
    %3280 = vmatpush2.msra.mxu0 0.0
    %3281 = vmatprep.subr.mxu0 0.0
    %3282 = vmatpush2.msra.mxu0 0.0
    %3283 = vmatprep.subr.mxu0 0.0
    %3284 = vmatpush2.msra.mxu0 0.0
    %3285 = vmatprep.subr.mxu0 0.0
    %3286 = vmatpush2.msra.mxu0 0.0
    %3287 = vmatprep.subr.mxu0 0.0
    %3288 = vmatpush2.msra.mxu0 0.0
    %3289 = vmatprep.subr.mxu0 0.0
    %3290 = vmatpush2.msra.mxu0 0.0
    %3291 = vmatprep.subr.mxu0 0.0
    %3292 = vmatpush2.msra.mxu0 0.0
    %3293 = vmatprep.subr.mxu0 0.0
    %3294 = vmatpush2.msra.mxu0 0.0
    %3295 = vmatprep.subr.mxu0 0.0
    %3296 = vmatpush2.msra.mxu0 0.0
    %3297 = vmatprep.subr.mxu0 0.0
    %3298 = vmatpush2.msra.mxu0 0.0
    %3299 = vmatprep.subr.mxu0 0.0
    %3300 = vmatpush2.msra.mxu0 0.0
    %3301 = vmatprep.mubr.f32.mxu0 0.0
    %3302 = vmatmul.mubr.f32.gmra.mxu0 %v3232
    %v3303 = vpop.f32.mrf.mxu0
    %v3304 = vadd.f32 %v3224, %v3303
    %v3305 = vpop.f32.mrf.mxu0
    %v3306 = vadd.f32 %v3224, %v3305
    %3307 = vmatprep.mubr.f32.mxu0 0.0
    %3308 = vmatmul.mubr.f32.gmra.mxu0 %v3235
    %v3309 = vpop.f32.mrf.mxu0
    %v3310 = vadd.f32 %v3229, %v3309
    %v3311 = vpop.f32.mrf.mxu0
    %v3312 = vadd.f32 %v3229, %v3311
    %3313 = vdwg.mxu0
    %vm3314 = vcmp.ge.f32.partialorder %v3304, 0.0
    %vm3315 = vcmp.ge.f32.partialorder %v3306, 0.0
    %vm3316 = vcmp.ge.f32.partialorder %v3310, 0.0
    %vm3317 = vcmp.ge.f32.partialorder %v3312, 0.0
    %v3318 = vmul.f32 %v3304, 0.2
    %v3319 = vmul.f32 %v3306, 0.2
    %v3320 = vmul.f32 %v3310, 0.2
    %v3321 = vmul.f32 %v3312, 0.2
    %v3322 = vsel %vm3314, %v3304, %v3318
    %v3323 = vsel %vm3315, %v3306, %v3319
    %v3324 = vsel %vm3316, %v3310, %v3320
    %v3325 = vsel %vm3317, %v3312, %v3321
    %v3326 = vmul.f32 %v3322, 1.4142135
    %v3327 = vmul.f32 %v3323, 1.4142135
    %v3328 = vmul.f32 %v3324, 1.4142135
    %v3329 = vmul.f32 %v3325, 1.4142135
    %v3330 = vld [vmem:[%s101] sm:$0x7]
    %v3331 = vlaneseq
    %v3332 = vshrl.u32 %v3331, 7
    %v3333 = vsub.s32 0, %v3332
    %v3334 = vrot.slane %v1834, %v3333
    %v3335 = vmul.f32 %v3330, %v3334
    %v3336 = vld [vmem:[%s103] sm:$0x7]
    %3338 = vset.pattern.permute.xlu0 0
    %3339 = vperm.xlu0 %3338, %v3336
    %v3340 = vpop.permute.xlu0 %3339
    %v3343 = vsel %vm859, %v3335, 0
    %3345 = vmatprep.subr.mxu0 0.0
    %3346 = vmatpush1.msra.mxu0 0.0
    %3347 = vmatprep.subr.mxu0 0.0
    %3348 = vmatpush1.msra.mxu0 0.0
    %3349 = vmatprep.subr.mxu0 0.0
    %3350 = vmatpush1.msra.mxu0 0.0
    %3351 = vmatprep.subr.mxu0 0.0
    %3352 = vmatpush1.msra.mxu0 0.0
    %3353 = vmatprep.subr.mxu0 0.0
    %3354 = vmatpush1.msra.mxu0 0.0
    %3355 = vmatprep.subr.mxu0 0.0
    %3356 = vmatpush1.msra.mxu0 0.0
    %3357 = vmatprep.subr.mxu0 0.0
    %3358 = vmatpush1.msra.mxu0 0.0
    %3359 = vmatprep.subr.mxu0 0.0
    %3360 = vmatpush1.msra.mxu0 0.0
    %3361 = vmatprep.subr.mxu0 0.0
    %3362 = vmatpush1.msra.mxu0 0.0
    %3363 = vmatprep.subr.mxu0 0.0
    %3364 = vmatpush1.msra.mxu0 0.0
    %3365 = vmatprep.subr.mxu0 0.0
    %3366 = vmatpush1.msra.mxu0 0.0
    %3367 = vmatprep.subr.mxu0 0.0
    %3368 = vmatpush1.msra.mxu0 0.0
    %3369 = vmatprep.subr.mxu0 0.0
    %3370 = vmatpush1.msra.mxu0 0.0
    %3371 = vmatprep.subr.mxu0 0.0
    %3372 = vmatpush1.msra.mxu0 0.0
    %3373 = vmatprep.subr.mxu0 %v3329
    %3374 = vmatpush1.msra.mxu0 %v3328
    %3375 = vmatprep.subr.mxu0 %v3327
    %3376 = vmatpush1.msra.mxu0 %v3326
    %3377 = vmatprep.subr.mxu0 0.0
    %3378 = vmatpush2.msra.mxu0 0.0
    %3379 = vmatprep.subr.mxu0 0.0
    %3380 = vmatpush2.msra.mxu0 0.0
    %3381 = vmatprep.subr.mxu0 0.0
    %3382 = vmatpush2.msra.mxu0 0.0
    %3383 = vmatprep.subr.mxu0 0.0
    %3384 = vmatpush2.msra.mxu0 0.0
    %3385 = vmatprep.subr.mxu0 0.0
    %3386 = vmatpush2.msra.mxu0 0.0
    %3387 = vmatprep.subr.mxu0 0.0
    %3388 = vmatpush2.msra.mxu0 0.0
    %3389 = vmatprep.subr.mxu0 0.0
    %3390 = vmatpush2.msra.mxu0 0.0
    %3391 = vmatprep.subr.mxu0 0.0
    %3392 = vmatpush2.msra.mxu0 0.0
    %3393 = vmatprep.subr.mxu0 0.0
    %3394 = vmatpush2.msra.mxu0 0.0
    %3395 = vmatprep.subr.mxu0 0.0
    %3396 = vmatpush2.msra.mxu0 0.0
    %3397 = vmatprep.subr.mxu0 0.0
    %3398 = vmatpush2.msra.mxu0 0.0
    %3399 = vmatprep.subr.mxu0 0.0
    %3400 = vmatpush2.msra.mxu0 0.0
    %3401 = vmatprep.subr.mxu0 0.0
    %3402 = vmatpush2.msra.mxu0 0.0
    %3403 = vmatprep.subr.mxu0 0.0
    %3404 = vmatpush2.msra.mxu0 0.0
    %3405 = vmatprep.subr.mxu0 0.0
    %3406 = vmatpush2.msra.mxu0 0.0
    %3407 = vmatprep.subr.mxu0 0.0
    %3408 = vmatpush2.msra.mxu0 0.0
    %3409 = vmatprep.mubr.f32.mxu0 0.0
    %3410 = vmatmul.mubr.f32.gmra.mxu0 %v3343
    %v3411 = vpop.f32.mrf.mxu0
    %v3412 = vadd.f32 %v3340, %v3411
    %v3413 = vpop.f32.mrf.mxu0
    %v3414 = vadd.f32 %v3340, %v3413
    %3415 = vdwg.mxu0
    %v3416 = vadd.f32 %v3062, %v3412
    %v3417 = vadd.f32 %v3063, %v3414
    %3418 = vst [vmem:[#allocation46] sm:$0xff] %v3326
    %3419 = vst [vmem:[#allocation46 + $0x8] sm:$0xff] %v3327
    %3420 = vst [vmem:[#allocation46 + $0x10] sm:$0xff] %v3328
    %3421 = vst [vmem:[#allocation46 + $0x18] sm:$0xff] %v3329
    %v3424 = vcombine.low %v3416, %v3417
    %3426 = vst [vmem:[%s107] sm:$0x77] %v3424
    %s3427 = scalar_lea.vmem %s1, 96
    %v3428 = vld [vmem:[%s3427] sm:$0xff]
    %v3429 = vld [vmem:[%s3427 + $0x8] sm:$0xff]
    %v3430 = vld [vmem:[%s3427 + $0x10] sm:$0xff]
    %v3431 = vld [vmem:[%s3427 + $0x18] sm:$0xff]
    %v3432 = vld [vmem:[%s3427 + $0x20] sm:$0xff]
    %v3433 = vld [vmem:[%s3427 + $0x28] sm:$0xff]
    %v3434 = vld [vmem:[%s3427 + $0x30] sm:$0xff]
    %v3435 = vld [vmem:[%s3427 + $0x38] sm:$0xff]
    %v3436 = vld [vmem:[%s3427 + $0x40] sm:$0xff]
    %v3437 = vld [vmem:[%s3427 + $0x48] sm:$0xff]
    %v3438 = vld [vmem:[%s3427 + $0x50] sm:$0xff]
    %v3439 = vld [vmem:[%s3427 + $0x58] sm:$0xff]
    %s3440 = scalar_lea.vmem [#allocation2], 6
    %v3441 = vld [vmem:[%s3440] sm:$0x3]
    %v3442 = vld [vmem:[%s3440 + $0x2] sm:$0x3]
    %v3443 = vld [vmem:[%s3440 + $0x4] sm:$0x3]
    %v3447 = vlaneseq
    %v3448 = vshrl.u32 %v3447, 7
    %v3449 = vsub.s32 0, %v3448
    %v3450 = vrot.slane %v3441, %v3449
    %v3451 = vlaneseq
    %v3452 = vshrl.u32 %v3451, 7
    %v3453 = vsub.s32 1, %v3452
    %v3454 = vrot.slane %v3441, %v3453
    %v3455 = vlaneseq
    %v3456 = vshrl.u32 %v3455, 7
    %v3457 = vsub.s32 0, %v3456
    %v3458 = vrot.slane %v3442, %v3457
    %v3459 = vlaneseq
    %v3460 = vshrl.u32 %v3459, 7
    %v3461 = vsub.s32 1, %v3460
    %v3462 = vrot.slane %v3442, %v3461
    %v3463 = vlaneseq
    %v3464 = vshrl.u32 %v3463, 7
    %v3465 = vsub.s32 0, %v3464
    %v3466 = vrot.slane %v3443, %v3465
    %v3467 = vlaneseq
    %v3468 = vshrl.u32 %v3467, 7
    %v3469 = vsub.s32 1, %v3468
    %v3470 = vrot.slane %v3443, %v3469
    %v3477 = vmul.f32 %v3428, %v3450
    %v3478 = vmul.f32 %v3429, %v3454
    %v3479 = vmul.f32 %v3430, %v3450
    %v3480 = vmul.f32 %v3431, %v3454
    %v3481 = vmul.f32 %v3432, %v3458
    %v3482 = vmul.f32 %v3433, %v3462
    %v3483 = vmul.f32 %v3434, %v3458
    %v3484 = vmul.f32 %v3435, %v3462
    %v3485 = vmul.f32 %v3436, %v3466
    %v3486 = vmul.f32 %v3437, %v3470
    %v3487 = vmul.f32 %v3438, %v3466
    %v3488 = vmul.f32 %v3439, %v3470
    %v3489 = vadd.f32 %v3477, %v3481
    %v3490 = vadd.f32 %v3489, %v3485
    %v3491 = vadd.f32 %v3478, %v3482
    %v3492 = vadd.f32 %v3491, %v3486
    %v3493 = vadd.f32 %v3479, %v3483
    %v3494 = vadd.f32 %v3493, %v3487
    %v3495 = vadd.f32 %v3480, %v3484
    %v3496 = vadd.f32 %v3495, %v3488
    %v3497 = vld [vmem:[%s29] sm:$0xff]
    %v3498 = vld [vmem:[%s29 + $0x8] sm:$0xff]
    %v3499 = vld [vmem:[%s29 + $0x10] sm:$0xff]
    %v3500 = vld [vmem:[%s29 + $0x18] sm:$0xff]
    %v3501 = vlaneseq
    %v3502 = vshrl.u32 %v3501, 7
    %v3503 = vsub.s32 1, %v3502
    %v3504 = vrot.slane %v1114, %v3503
    %v3505 = vmul.f32 %v3497, %v3504
    %v3506 = vmul.f32 %v3498, %v3504
    %v3507 = vmul.f32 %v3499, %v3504
    %v3508 = vmul.f32 %v3500, %v3504
    %v3509 = vmul.f32 %v3505, %v3505
    %v3510 = vmul.f32 %v3506, %v3506
    %v3511 = vmul.f32 %v3507, %v3507
    %v3512 = vmul.f32 %v3508, %v3508
    %v3513 = vsel %vm859, %v3509, 0.0
    %3514 = vadd.xlane.f32.xlu0 %v3513
    %v3515 = vpop.xlane.xlu0 %3514
    %v3516 = vsel %vm859, %v3510, 0.0
    %3517 = vadd.xlane.f32.xlu0 %v3516
    %v3518 = vpop.xlane.xlu0 %3517
    %v3519 = vsel %vm859, %v3511, 0.0
    %3520 = vadd.xlane.f32.xlu0 %v3519
    %v3521 = vpop.xlane.xlu0 %3520
    %v3522 = vsel %vm859, %v3512, 0.0
    %3523 = vadd.xlane.f32.xlu0 %v3522
    %v3524 = vpop.xlane.xlu0 %3523
    %v3525 = vadd.f32 %v3515, 1e-08
    %v3526 = vadd.f32 %v3518, 1e-08
    %v3527 = vadd.f32 %v3521, 1e-08
    %v3528 = vadd.f32 %v3524, 1e-08
    %v3529 = vrsqrt.pop %v3525
    %v3530 = vrsqrt.pop %v3526
    %v3531 = vrsqrt.pop %v3527
    %v3532 = vrsqrt.pop %v3528
    %v3533 = vmul.f32 %v3505, %v3529
    %v3534 = vmul.f32 %v3506, %v3530
    %v3535 = vmul.f32 %v3507, %v3531
    %v3536 = vmul.f32 %v3508, %v3532
    %v3537 = vld [vmem:[%s31] sm:$0xff]
    %v3538 = vld [vmem:[%s31 + $0x8] sm:$0xff]
    %v3539 = vld [vmem:[%s31 + $0x10] sm:$0xff]
    %v3540 = vld [vmem:[%s31 + $0x18] sm:$0xff]
    %3542 = vset.pattern.permute.xlu0 0
    %3543 = vperm.xlu0 %3542, %v3537
    %v3544 = vpop.permute.xlu0 %3543
    %3547 = vset.pattern.permute.xlu0 0
    %3548 = vperm.xlu0 %3547, %v3538
    %v3549 = vpop.permute.xlu0 %3548
    %3552 = vset.pattern.permute.xlu0 0
    %3553 = vperm.xlu0 %3552, %v3539
    %v3554 = vpop.permute.xlu0 %3553
    %3557 = vset.pattern.permute.xlu0 0
    %3558 = vperm.xlu0 %3557, %v3540
    %v3559 = vpop.permute.xlu0 %3558
    %v3562 = vsel %vm859, %v3533, 0
    %v3565 = vsel %vm859, %v3534, 0
    %v3568 = vsel %vm859, %v3535, 0
    %v3571 = vsel %vm859, %v3536, 0
    %3573 = vmatprep.subr.mxu0 0.0
    %3574 = vmatpush1.msra.mxu0 0.0
    %3575 = vmatprep.subr.mxu0 0.0
    %3576 = vmatpush1.msra.mxu0 0.0
    %3577 = vmatprep.subr.mxu0 0.0
    %3578 = vmatpush1.msra.mxu0 0.0
    %3579 = vmatprep.subr.mxu0 0.0
    %3580 = vmatpush1.msra.mxu0 0.0
    %3581 = vmatprep.subr.mxu0 0.0
    %3582 = vmatpush1.msra.mxu0 0.0
    %3583 = vmatprep.subr.mxu0 0.0
    %3584 = vmatpush1.msra.mxu0 0.0
    %3585 = vmatprep.subr.mxu0 0.0
    %3586 = vmatpush1.msra.mxu0 0.0
    %3587 = vmatprep.subr.mxu0 0.0
    %3588 = vmatpush1.msra.mxu0 0.0
    %3589 = vmatprep.subr.mxu0 0.0
    %3590 = vmatpush1.msra.mxu0 0.0
    %3591 = vmatprep.subr.mxu0 0.0
    %3592 = vmatpush1.msra.mxu0 0.0
    %3593 = vmatprep.subr.mxu0 0.0
    %3594 = vmatpush1.msra.mxu0 0.0
    %3595 = vmatprep.subr.mxu0 0.0
    %3596 = vmatpush1.msra.mxu0 0.0
    %3597 = vmatprep.subr.mxu0 0.0
    %3598 = vmatpush1.msra.mxu0 0.0
    %3599 = vmatprep.subr.mxu0 0.0
    %3600 = vmatpush1.msra.mxu0 0.0
    %3601 = vmatprep.subr.mxu0 %v3496
    %3602 = vmatpush1.msra.mxu0 %v3494
    %3603 = vmatprep.subr.mxu0 %v3492
    %3604 = vmatpush1.msra.mxu0 %v3490
    %3605 = vmatprep.subr.mxu0 0.0
    %3606 = vmatpush2.msra.mxu0 0.0
    %3607 = vmatprep.subr.mxu0 0.0
    %3608 = vmatpush2.msra.mxu0 0.0
    %3609 = vmatprep.subr.mxu0 0.0
    %3610 = vmatpush2.msra.mxu0 0.0
    %3611 = vmatprep.subr.mxu0 0.0
    %3612 = vmatpush2.msra.mxu0 0.0
    %3613 = vmatprep.subr.mxu0 0.0
    %3614 = vmatpush2.msra.mxu0 0.0
    %3615 = vmatprep.subr.mxu0 0.0
    %3616 = vmatpush2.msra.mxu0 0.0
    %3617 = vmatprep.subr.mxu0 0.0
    %3618 = vmatpush2.msra.mxu0 0.0
    %3619 = vmatprep.subr.mxu0 0.0
    %3620 = vmatpush2.msra.mxu0 0.0
    %3621 = vmatprep.subr.mxu0 0.0
    %3622 = vmatpush2.msra.mxu0 0.0
    %3623 = vmatprep.subr.mxu0 0.0
    %3624 = vmatpush2.msra.mxu0 0.0
    %3625 = vmatprep.subr.mxu0 0.0
    %3626 = vmatpush2.msra.mxu0 0.0
    %3627 = vmatprep.subr.mxu0 0.0
    %3628 = vmatpush2.msra.mxu0 0.0
    %3629 = vmatprep.subr.mxu0 0.0
    %3630 = vmatpush2.msra.mxu0 0.0
    %3631 = vmatprep.subr.mxu0 0.0
    %3632 = vmatpush2.msra.mxu0 0.0
    %3633 = vmatprep.subr.mxu0 0.0
    %3634 = vmatpush2.msra.mxu0 0.0
    %3635 = vmatprep.subr.mxu0 0.0
    %3636 = vmatpush2.msra.mxu0 0.0
    %3637 = vmatprep.mubr.f32.mxu0 0.0
    %3638 = vmatmul.mubr.f32.gmra.mxu0 %v3562
    %v3639 = vpop.f32.mrf.mxu0
    %v3640 = vadd.f32 %v3544, %v3639
    %v3641 = vpop.f32.mrf.mxu0
    %v3642 = vadd.f32 %v3544, %v3641
    %3643 = vmatprep.mubr.f32.mxu0 0.0
    %3644 = vmatmul.mubr.f32.gmra.mxu0 %v3565
    %v3645 = vpop.f32.mrf.mxu0
    %v3646 = vadd.f32 %v3549, %v3645
    %v3647 = vpop.f32.mrf.mxu0
    %v3648 = vadd.f32 %v3549, %v3647
    %3649 = vmatprep.mubr.f32.mxu0 0.0
    %3650 = vmatmul.mubr.f32.gmra.mxu0 %v3568
    %v3651 = vpop.f32.mrf.mxu0
    %v3652 = vadd.f32 %v3554, %v3651
    %v3653 = vpop.f32.mrf.mxu0
    %v3654 = vadd.f32 %v3554, %v3653
    %3655 = vmatprep.mubr.f32.mxu0 0.0
    %3656 = vmatmul.mubr.f32.gmra.mxu0 %v3571
    %v3657 = vpop.f32.mrf.mxu0
    %v3658 = vadd.f32 %v3559, %v3657
    %v3659 = vpop.f32.mrf.mxu0
    %v3660 = vadd.f32 %v3559, %v3659
    %3661 = vdwg.mxu0
    %vm3662 = vcmp.ge.f32.partialorder %v3640, 0.0
    %vm3663 = vcmp.ge.f32.partialorder %v3642, 0.0
    %vm3664 = vcmp.ge.f32.partialorder %v3646, 0.0
    %vm3665 = vcmp.ge.f32.partialorder %v3648, 0.0
    %vm3666 = vcmp.ge.f32.partialorder %v3652, 0.0
    %vm3667 = vcmp.ge.f32.partialorder %v3654, 0.0
    %vm3668 = vcmp.ge.f32.partialorder %v3658, 0.0
    %vm3669 = vcmp.ge.f32.partialorder %v3660, 0.0
    %v3670 = vmul.f32 %v3640, 0.2
    %v3671 = vmul.f32 %v3642, 0.2
    %v3672 = vmul.f32 %v3646, 0.2
    %v3673 = vmul.f32 %v3648, 0.2
    %v3674 = vmul.f32 %v3652, 0.2
    %v3675 = vmul.f32 %v3654, 0.2
    %v3676 = vmul.f32 %v3658, 0.2
    %v3677 = vmul.f32 %v3660, 0.2
    %v3678 = vsel %vm3662, %v3640, %v3670
    %v3679 = vsel %vm3663, %v3642, %v3671
    %v3680 = vsel %vm3664, %v3646, %v3672
    %v3681 = vsel %vm3665, %v3648, %v3673
    %v3682 = vsel %vm3666, %v3652, %v3674
    %v3683 = vsel %vm3667, %v3654, %v3675
    %v3684 = vsel %vm3668, %v3658, %v3676
    %v3685 = vsel %vm3669, %v3660, %v3677
    %v3686 = vmul.f32 %v3678, 1.4142135
    %v3687 = vmul.f32 %v3679, 1.4142135
    %v3688 = vmul.f32 %v3680, 1.4142135
    %v3689 = vmul.f32 %v3681, 1.4142135
    %v3690 = vmul.f32 %v3682, 1.4142135
    %v3691 = vmul.f32 %v3683, 1.4142135
    %v3692 = vmul.f32 %v3684, 1.4142135
    %v3693 = vmul.f32 %v3685, 1.4142135
    %v3694 = vld [vmem:[%s37] sm:$0xff]
    %v3695 = vld [vmem:[%s37 + $0x8] sm:$0xff]
    %v3696 = vld [vmem:[%s37 + $0x10] sm:$0xff]
    %v3697 = vld [vmem:[%s37 + $0x18] sm:$0xff]
    %v3698 = vlaneseq
    %v3699 = vshrl.u32 %v3698, 7
    %v3700 = vsub.s32 1, %v3699
    %v3701 = vrot.slane %v1194, %v3700
    %v3702 = vmul.f32 %v3694, %v3701
    %v3703 = vmul.f32 %v3695, %v3701
    %v3704 = vmul.f32 %v3696, %v3701
    %v3705 = vmul.f32 %v3697, %v3701
    %v3706 = vmul.f32 %v3702, %v3702
    %v3707 = vmul.f32 %v3703, %v3703
    %v3708 = vmul.f32 %v3704, %v3704
    %v3709 = vmul.f32 %v3705, %v3705
    %v3710 = vsel %vm590, %v3706, 0.0
    %3711 = vadd.xlane.f32.xlu0 %v3710
    %v3712 = vpop.xlane.xlu0 %3711
    %v3713 = vsel %vm590, %v3707, 0.0
    %3714 = vadd.xlane.f32.xlu0 %v3713
    %v3715 = vpop.xlane.xlu0 %3714
    %v3716 = vsel %vm590, %v3708, 0.0
    %3717 = vadd.xlane.f32.xlu0 %v3716
    %v3718 = vpop.xlane.xlu0 %3717
    %v3719 = vsel %vm590, %v3709, 0.0
    %3720 = vadd.xlane.f32.xlu0 %v3719
    %v3721 = vpop.xlane.xlu0 %3720
    %v3722 = vadd.f32 %v3712, 1e-08
    %v3723 = vadd.f32 %v3715, 1e-08
    %v3724 = vadd.f32 %v3718, 1e-08
    %v3725 = vadd.f32 %v3721, 1e-08
    %v3726 = vrsqrt.pop %v3722
    %v3727 = vrsqrt.pop %v3723
    %v3728 = vrsqrt.pop %v3724
    %v3729 = vrsqrt.pop %v3725
    %v3730 = vmul.f32 %v3702, %v3726
    %v3731 = vmul.f32 %v3703, %v3727
    %v3732 = vmul.f32 %v3704, %v3728
    %v3733 = vmul.f32 %v3705, %v3729
    %v3734 = vld [vmem:[%s39] sm:$0xff]
    %v3735 = vld [vmem:[%s39 + $0x8] sm:$0xff]
    %v3736 = vld [vmem:[%s39 + $0x10] sm:$0xff]
    %v3737 = vld [vmem:[%s39 + $0x18] sm:$0xff]
    %3739 = vset.pattern.permute.xlu0 0
    %3740 = vperm.xlu0 %3739, %v3734
    %v3741 = vpop.permute.xlu0 %3740
    %3744 = vset.pattern.permute.xlu0 0
    %3745 = vperm.xlu0 %3744, %v3735
    %v3746 = vpop.permute.xlu0 %3745
    %3749 = vset.pattern.permute.xlu0 0
    %3750 = vperm.xlu0 %3749, %v3736
    %v3751 = vpop.permute.xlu0 %3750
    %3754 = vset.pattern.permute.xlu0 0
    %3755 = vperm.xlu0 %3754, %v3737
    %v3756 = vpop.permute.xlu0 %3755
    %v3759 = vsel %vm590, %v3730, 0
    %v3762 = vsel %vm590, %v3731, 0
    %v3765 = vsel %vm590, %v3732, 0
    %v3768 = vsel %vm590, %v3733, 0
    %3770 = vmatprep.subr.mxu0 0.0
    %3771 = vmatpush1.msra.mxu0 0.0
    %3772 = vmatprep.subr.mxu0 0.0
    %3773 = vmatpush1.msra.mxu0 0.0
    %3774 = vmatprep.subr.mxu0 0.0
    %3775 = vmatpush1.msra.mxu0 0.0
    %3776 = vmatprep.subr.mxu0 0.0
    %3777 = vmatpush1.msra.mxu0 0.0
    %3778 = vmatprep.subr.mxu0 0.0
    %3779 = vmatpush1.msra.mxu0 0.0
    %3780 = vmatprep.subr.mxu0 0.0
    %3781 = vmatpush1.msra.mxu0 0.0
    %3782 = vmatprep.subr.mxu0 0.0
    %3783 = vmatpush1.msra.mxu0 0.0
    %3784 = vmatprep.subr.mxu0 0.0
    %3785 = vmatpush1.msra.mxu0 0.0
    %3786 = vmatprep.subr.mxu0 0.0
    %3787 = vmatpush1.msra.mxu0 0.0
    %3788 = vmatprep.subr.mxu0 0.0
    %3789 = vmatpush1.msra.mxu0 0.0
    %3790 = vmatprep.subr.mxu0 0.0
    %3791 = vmatpush1.msra.mxu0 0.0
    %3792 = vmatprep.subr.mxu0 0.0
    %3793 = vmatpush1.msra.mxu0 0.0
    %3794 = vmatprep.subr.mxu0 %v3693
    %3795 = vmatpush1.msra.mxu0 %v3692
    %3796 = vmatprep.subr.mxu0 %v3691
    %3797 = vmatpush1.msra.mxu0 %v3690
    %3798 = vmatprep.subr.mxu0 %v3689
    %3799 = vmatpush1.msra.mxu0 %v3688
    %3800 = vmatprep.subr.mxu0 %v3687
    %3801 = vmatpush1.msra.mxu0 %v3686
    %3802 = vmatprep.subr.mxu0 0.0
    %3803 = vmatpush2.msra.mxu0 0.0
    %3804 = vmatprep.subr.mxu0 0.0
    %3805 = vmatpush2.msra.mxu0 0.0
    %3806 = vmatprep.subr.mxu0 0.0
    %3807 = vmatpush2.msra.mxu0 0.0
    %3808 = vmatprep.subr.mxu0 0.0
    %3809 = vmatpush2.msra.mxu0 0.0
    %3810 = vmatprep.subr.mxu0 0.0
    %3811 = vmatpush2.msra.mxu0 0.0
    %3812 = vmatprep.subr.mxu0 0.0
    %3813 = vmatpush2.msra.mxu0 0.0
    %3814 = vmatprep.subr.mxu0 0.0
    %3815 = vmatpush2.msra.mxu0 0.0
    %3816 = vmatprep.subr.mxu0 0.0
    %3817 = vmatpush2.msra.mxu0 0.0
    %3818 = vmatprep.subr.mxu0 0.0
    %3819 = vmatpush2.msra.mxu0 0.0
    %3820 = vmatprep.subr.mxu0 0.0
    %3821 = vmatpush2.msra.mxu0 0.0
    %3822 = vmatprep.subr.mxu0 0.0
    %3823 = vmatpush2.msra.mxu0 0.0
    %3824 = vmatprep.subr.mxu0 0.0
    %3825 = vmatpush2.msra.mxu0 0.0
    %3826 = vmatprep.subr.mxu0 0.0
    %3827 = vmatpush2.msra.mxu0 0.0
    %3828 = vmatprep.subr.mxu0 0.0
    %3829 = vmatpush2.msra.mxu0 0.0
    %3830 = vmatprep.subr.mxu0 0.0
    %3831 = vmatpush2.msra.mxu0 0.0
    %3832 = vmatprep.subr.mxu0 0.0
    %3833 = vmatpush2.msra.mxu0 0.0
    %3834 = vmatprep.mubr.f32.mxu0 0.0
    %3835 = vmatmul.mubr.f32.gmra.mxu0 %v3759
    %v3836 = vpop.f32.mrf.mxu0
    %v3837 = vadd.f32 %v3741, %v3836
    %v3838 = vpop.f32.mrf.mxu0
    %v3839 = vadd.f32 %v3741, %v3838
    %3840 = vmatprep.mubr.f32.mxu0 0.0
    %3841 = vmatmul.mubr.f32.gmra.mxu0 %v3762
    %v3842 = vpop.f32.mrf.mxu0
    %v3843 = vadd.f32 %v3746, %v3842
    %v3844 = vpop.f32.mrf.mxu0
    %v3845 = vadd.f32 %v3746, %v3844
    %3846 = vmatprep.mubr.f32.mxu0 0.0
    %3847 = vmatmul.mubr.f32.gmra.mxu0 %v3765
    %v3848 = vpop.f32.mrf.mxu0
    %v3849 = vadd.f32 %v3751, %v3848
    %v3850 = vpop.f32.mrf.mxu0
    %v3851 = vadd.f32 %v3751, %v3850
    %3852 = vmatprep.mubr.f32.mxu0 0.0
    %3853 = vmatmul.mubr.f32.gmra.mxu0 %v3768
    %v3854 = vpop.f32.mrf.mxu0
    %v3855 = vadd.f32 %v3756, %v3854
    %v3856 = vpop.f32.mrf.mxu0
    %v3857 = vadd.f32 %v3756, %v3856
    %3858 = vdwg.mxu0
    %vm3859 = vcmp.ge.f32.partialorder %v3837, 0.0
    %vm3860 = vcmp.ge.f32.partialorder %v3839, 0.0
    %vm3861 = vcmp.ge.f32.partialorder %v3843, 0.0
    %vm3862 = vcmp.ge.f32.partialorder %v3845, 0.0
    %vm3863 = vcmp.ge.f32.partialorder %v3849, 0.0
    %vm3864 = vcmp.ge.f32.partialorder %v3851, 0.0
    %vm3865 = vcmp.ge.f32.partialorder %v3855, 0.0
    %vm3866 = vcmp.ge.f32.partialorder %v3857, 0.0
    %v3867 = vmul.f32 %v3837, 0.2
    %v3868 = vmul.f32 %v3839, 0.2
    %v3869 = vmul.f32 %v3843, 0.2
    %v3870 = vmul.f32 %v3845, 0.2
    %v3871 = vmul.f32 %v3849, 0.2
    %v3872 = vmul.f32 %v3851, 0.2
    %v3873 = vmul.f32 %v3855, 0.2
    %v3874 = vmul.f32 %v3857, 0.2
    %v3875 = vsel %vm3859, %v3837, %v3867
    %v3876 = vsel %vm3860, %v3839, %v3868
    %v3877 = vsel %vm3861, %v3843, %v3869
    %v3878 = vsel %vm3862, %v3845, %v3870
    %v3879 = vsel %vm3863, %v3849, %v3871
    %v3880 = vsel %vm3864, %v3851, %v3872
    %v3881 = vsel %vm3865, %v3855, %v3873
    %v3882 = vsel %vm3866, %v3857, %v3874
    %v3883 = vmul.f32 %v3875, 1.4142135
    %v3884 = vmul.f32 %v3876, 1.4142135
    %v3885 = vmul.f32 %v3877, 1.4142135
    %v3886 = vmul.f32 %v3878, 1.4142135
    %v3887 = vmul.f32 %v3879, 1.4142135
    %v3888 = vmul.f32 %v3880, 1.4142135
    %v3889 = vmul.f32 %v3881, 1.4142135
    %v3890 = vmul.f32 %v3882, 1.4142135
    %v3891 = vld [vmem:[%s45] sm:$0xff]
    %v3892 = vld [vmem:[%s45 + $0x8] sm:$0xff]
    %v3893 = vld [vmem:[%s45 + $0x10] sm:$0xff]
    %v3894 = vld [vmem:[%s45 + $0x18] sm:$0xff]
    %v3895 = vlaneseq
    %v3896 = vshrl.u32 %v3895, 7
    %v3897 = vsub.s32 1, %v3896
    %v3898 = vrot.slane %v1274, %v3897
    %v3899 = vmul.f32 %v3891, %v3898
    %v3900 = vmul.f32 %v3892, %v3898
    %v3901 = vmul.f32 %v3893, %v3898
    %v3902 = vmul.f32 %v3894, %v3898
    %v3903 = vmul.f32 %v3899, %v3899
    %v3904 = vmul.f32 %v3900, %v3900
    %v3905 = vmul.f32 %v3901, %v3901
    %v3906 = vmul.f32 %v3902, %v3902
    %v3907 = vsel %vm590, %v3903, 0.0
    %3908 = vadd.xlane.f32.xlu0 %v3907
    %v3909 = vpop.xlane.xlu0 %3908
    %v3910 = vsel %vm590, %v3904, 0.0
    %3911 = vadd.xlane.f32.xlu0 %v3910
    %v3912 = vpop.xlane.xlu0 %3911
    %v3913 = vsel %vm590, %v3905, 0.0
    %3914 = vadd.xlane.f32.xlu0 %v3913
    %v3915 = vpop.xlane.xlu0 %3914
    %v3916 = vsel %vm590, %v3906, 0.0
    %3917 = vadd.xlane.f32.xlu0 %v3916
    %v3918 = vpop.xlane.xlu0 %3917
    %v3919 = vadd.f32 %v3909, 1e-08
    %v3920 = vadd.f32 %v3912, 1e-08
    %v3921 = vadd.f32 %v3915, 1e-08
    %v3922 = vadd.f32 %v3918, 1e-08
    %v3923 = vrsqrt.pop %v3919
    %v3924 = vrsqrt.pop %v3920
    %v3925 = vrsqrt.pop %v3921
    %v3926 = vrsqrt.pop %v3922
    %v3927 = vmul.f32 %v3899, %v3923
    %v3928 = vmul.f32 %v3900, %v3924
    %v3929 = vmul.f32 %v3901, %v3925
    %v3930 = vmul.f32 %v3902, %v3926
    %v3931 = vld [vmem:[%s47] sm:$0xff]
    %v3932 = vld [vmem:[%s47 + $0x8] sm:$0xff]
    %v3933 = vld [vmem:[%s47 + $0x10] sm:$0xff]
    %v3934 = vld [vmem:[%s47 + $0x18] sm:$0xff]
    %3936 = vset.pattern.permute.xlu0 0
    %3937 = vperm.xlu0 %3936, %v3931
    %v3938 = vpop.permute.xlu0 %3937
    %3941 = vset.pattern.permute.xlu0 0
    %3942 = vperm.xlu0 %3941, %v3932
    %v3943 = vpop.permute.xlu0 %3942
    %3946 = vset.pattern.permute.xlu0 0
    %3947 = vperm.xlu0 %3946, %v3933
    %v3948 = vpop.permute.xlu0 %3947
    %3951 = vset.pattern.permute.xlu0 0
    %3952 = vperm.xlu0 %3951, %v3934
    %v3953 = vpop.permute.xlu0 %3952
    %v3956 = vsel %vm590, %v3927, 0
    %v3959 = vsel %vm590, %v3928, 0
    %v3962 = vsel %vm590, %v3929, 0
    %v3965 = vsel %vm590, %v3930, 0
    %3967 = vmatprep.subr.mxu0 0.0
    %3968 = vmatpush1.msra.mxu0 0.0
    %3969 = vmatprep.subr.mxu0 0.0
    %3970 = vmatpush1.msra.mxu0 0.0
    %3971 = vmatprep.subr.mxu0 0.0
    %3972 = vmatpush1.msra.mxu0 0.0
    %3973 = vmatprep.subr.mxu0 0.0
    %3974 = vmatpush1.msra.mxu0 0.0
    %3975 = vmatprep.subr.mxu0 0.0
    %3976 = vmatpush1.msra.mxu0 0.0
    %3977 = vmatprep.subr.mxu0 0.0
    %3978 = vmatpush1.msra.mxu0 0.0
    %3979 = vmatprep.subr.mxu0 0.0
    %3980 = vmatpush1.msra.mxu0 0.0
    %3981 = vmatprep.subr.mxu0 0.0
    %3982 = vmatpush1.msra.mxu0 0.0
    %3983 = vmatprep.subr.mxu0 0.0
    %3984 = vmatpush1.msra.mxu0 0.0
    %3985 = vmatprep.subr.mxu0 0.0
    %3986 = vmatpush1.msra.mxu0 0.0
    %3987 = vmatprep.subr.mxu0 0.0
    %3988 = vmatpush1.msra.mxu0 0.0
    %3989 = vmatprep.subr.mxu0 0.0
    %3990 = vmatpush1.msra.mxu0 0.0
    %3991 = vmatprep.subr.mxu0 %v3890
    %3992 = vmatpush1.msra.mxu0 %v3889
    %3993 = vmatprep.subr.mxu0 %v3888
    %3994 = vmatpush1.msra.mxu0 %v3887
    %3995 = vmatprep.subr.mxu0 %v3886
    %3996 = vmatpush1.msra.mxu0 %v3885
    %3997 = vmatprep.subr.mxu0 %v3884
    %3998 = vmatpush1.msra.mxu0 %v3883
    %3999 = vmatprep.subr.mxu0 0.0
    %4000 = vmatpush2.msra.mxu0 0.0
    %4001 = vmatprep.subr.mxu0 0.0
    %4002 = vmatpush2.msra.mxu0 0.0
    %4003 = vmatprep.subr.mxu0 0.0
    %4004 = vmatpush2.msra.mxu0 0.0
    %4005 = vmatprep.subr.mxu0 0.0
    %4006 = vmatpush2.msra.mxu0 0.0
    %4007 = vmatprep.subr.mxu0 0.0
    %4008 = vmatpush2.msra.mxu0 0.0
    %4009 = vmatprep.subr.mxu0 0.0
    %4010 = vmatpush2.msra.mxu0 0.0
    %4011 = vmatprep.subr.mxu0 0.0
    %4012 = vmatpush2.msra.mxu0 0.0
    %4013 = vmatprep.subr.mxu0 0.0
    %4014 = vmatpush2.msra.mxu0 0.0
    %4015 = vmatprep.subr.mxu0 0.0
    %4016 = vmatpush2.msra.mxu0 0.0
    %4017 = vmatprep.subr.mxu0 0.0
    %4018 = vmatpush2.msra.mxu0 0.0
    %4019 = vmatprep.subr.mxu0 0.0
    %4020 = vmatpush2.msra.mxu0 0.0
    %4021 = vmatprep.subr.mxu0 0.0
    %4022 = vmatpush2.msra.mxu0 0.0
    %4023 = vmatprep.subr.mxu0 0.0
    %4024 = vmatpush2.msra.mxu0 0.0
    %4025 = vmatprep.subr.mxu0 0.0
    %4026 = vmatpush2.msra.mxu0 0.0
    %4027 = vmatprep.subr.mxu0 0.0
    %4028 = vmatpush2.msra.mxu0 0.0
    %4029 = vmatprep.subr.mxu0 0.0
    %4030 = vmatpush2.msra.mxu0 0.0
    %4031 = vmatprep.mubr.f32.mxu0 0.0
    %4032 = vmatmul.mubr.f32.gmra.mxu0 %v3956
    %v4033 = vpop.f32.mrf.mxu0
    %v4034 = vadd.f32 %v3938, %v4033
    %v4035 = vpop.f32.mrf.mxu0
    %v4036 = vadd.f32 %v3938, %v4035
    %4037 = vmatprep.mubr.f32.mxu0 0.0
    %4038 = vmatmul.mubr.f32.gmra.mxu0 %v3959
    %v4039 = vpop.f32.mrf.mxu0
    %v4040 = vadd.f32 %v3943, %v4039
    %v4041 = vpop.f32.mrf.mxu0
    %v4042 = vadd.f32 %v3943, %v4041
    %4043 = vmatprep.mubr.f32.mxu0 0.0
    %4044 = vmatmul.mubr.f32.gmra.mxu0 %v3962
    %v4045 = vpop.f32.mrf.mxu0
    %v4046 = vadd.f32 %v3948, %v4045
    %v4047 = vpop.f32.mrf.mxu0
    %v4048 = vadd.f32 %v3948, %v4047
    %4049 = vmatprep.mubr.f32.mxu0 0.0
    %4050 = vmatmul.mubr.f32.gmra.mxu0 %v3965
    %v4051 = vpop.f32.mrf.mxu0
    %v4052 = vadd.f32 %v3953, %v4051
    %v4053 = vpop.f32.mrf.mxu0
    %v4054 = vadd.f32 %v3953, %v4053
    %4055 = vdwg.mxu0
    %vm4056 = vcmp.ge.f32.partialorder %v4034, 0.0
    %vm4057 = vcmp.ge.f32.partialorder %v4036, 0.0
    %vm4058 = vcmp.ge.f32.partialorder %v4040, 0.0
    %vm4059 = vcmp.ge.f32.partialorder %v4042, 0.0
    %vm4060 = vcmp.ge.f32.partialorder %v4046, 0.0
    %vm4061 = vcmp.ge.f32.partialorder %v4048, 0.0
    %vm4062 = vcmp.ge.f32.partialorder %v4052, 0.0
    %vm4063 = vcmp.ge.f32.partialorder %v4054, 0.0
    %v4064 = vmul.f32 %v4034, 0.2
    %v4065 = vmul.f32 %v4036, 0.2
    %v4066 = vmul.f32 %v4040, 0.2
    %v4067 = vmul.f32 %v4042, 0.2
    %v4068 = vmul.f32 %v4046, 0.2
    %v4069 = vmul.f32 %v4048, 0.2
    %v4070 = vmul.f32 %v4052, 0.2
    %v4071 = vmul.f32 %v4054, 0.2
    %v4072 = vsel %vm4056, %v4034, %v4064
    %v4073 = vsel %vm4057, %v4036, %v4065
    %v4074 = vsel %vm4058, %v4040, %v4066
    %v4075 = vsel %vm4059, %v4042, %v4067
    %v4076 = vsel %vm4060, %v4046, %v4068
    %v4077 = vsel %vm4061, %v4048, %v4069
    %v4078 = vsel %vm4062, %v4052, %v4070
    %v4079 = vsel %vm4063, %v4054, %v4071
    %v4080 = vmul.f32 %v4072, 1.4142135
    %v4081 = vmul.f32 %v4073, 1.4142135
    %v4082 = vmul.f32 %v4074, 1.4142135
    %v4083 = vmul.f32 %v4075, 1.4142135
    %v4084 = vmul.f32 %v4076, 1.4142135
    %v4085 = vmul.f32 %v4077, 1.4142135
    %v4086 = vmul.f32 %v4078, 1.4142135
    %v4087 = vmul.f32 %v4079, 1.4142135
    %v4088 = vld [vmem:[#allocation26] sm:$0x7]
    %v4089 = vlaneseq
    %v4090 = vshrl.u32 %v4089, 7
    %v4091 = vsub.s32 1, %v4090
    %v4092 = vrot.slane %v1354, %v4091
    %v4093 = vmul.f32 %v4088, %v4092
    %v4094 = vld [vmem:[%s55] sm:$0x7]
    %4096 = vset.pattern.permute.xlu0 0
    %4097 = vperm.xlu0 %4096, %v4094
    %v4098 = vpop.permute.xlu0 %4097
    %v4101 = vsel %vm590, %v4093, 0
    %4103 = vmatprep.subr.mxu0 0.0
    %4104 = vmatpush1.msra.mxu0 0.0
    %4105 = vmatprep.subr.mxu0 0.0
    %4106 = vmatpush1.msra.mxu0 0.0
    %4107 = vmatprep.subr.mxu0 0.0
    %4108 = vmatpush1.msra.mxu0 0.0
    %4109 = vmatprep.subr.mxu0 0.0
    %4110 = vmatpush1.msra.mxu0 0.0
    %4111 = vmatprep.subr.mxu0 0.0
    %4112 = vmatpush1.msra.mxu0 0.0
    %4113 = vmatprep.subr.mxu0 0.0
    %4114 = vmatpush1.msra.mxu0 0.0
    %4115 = vmatprep.subr.mxu0 0.0
    %4116 = vmatpush1.msra.mxu0 0.0
    %4117 = vmatprep.subr.mxu0 0.0
    %4118 = vmatpush1.msra.mxu0 0.0
    %4119 = vmatprep.subr.mxu0 0.0
    %4120 = vmatpush1.msra.mxu0 0.0
    %4121 = vmatprep.subr.mxu0 0.0
    %4122 = vmatpush1.msra.mxu0 0.0
    %4123 = vmatprep.subr.mxu0 0.0
    %4124 = vmatpush1.msra.mxu0 0.0
    %4125 = vmatprep.subr.mxu0 0.0
    %4126 = vmatpush1.msra.mxu0 0.0
    %4127 = vmatprep.subr.mxu0 %v4087
    %4128 = vmatpush1.msra.mxu0 %v4086
    %4129 = vmatprep.subr.mxu0 %v4085
    %4130 = vmatpush1.msra.mxu0 %v4084
    %4131 = vmatprep.subr.mxu0 %v4083
    %4132 = vmatpush1.msra.mxu0 %v4082
    %4133 = vmatprep.subr.mxu0 %v4081
    %4134 = vmatpush1.msra.mxu0 %v4080
    %4135 = vmatprep.subr.mxu0 0.0
    %4136 = vmatpush2.msra.mxu0 0.0
    %4137 = vmatprep.subr.mxu0 0.0
    %4138 = vmatpush2.msra.mxu0 0.0
    %4139 = vmatprep.subr.mxu0 0.0
    %4140 = vmatpush2.msra.mxu0 0.0
    %4141 = vmatprep.subr.mxu0 0.0
    %4142 = vmatpush2.msra.mxu0 0.0
    %4143 = vmatprep.subr.mxu0 0.0
    %4144 = vmatpush2.msra.mxu0 0.0
    %4145 = vmatprep.subr.mxu0 0.0
    %4146 = vmatpush2.msra.mxu0 0.0
    %4147 = vmatprep.subr.mxu0 0.0
    %4148 = vmatpush2.msra.mxu0 0.0
    %4149 = vmatprep.subr.mxu0 0.0
    %4150 = vmatpush2.msra.mxu0 0.0
    %4151 = vmatprep.subr.mxu0 0.0
    %4152 = vmatpush2.msra.mxu0 0.0
    %4153 = vmatprep.subr.mxu0 0.0
    %4154 = vmatpush2.msra.mxu0 0.0
    %4155 = vmatprep.subr.mxu0 0.0
    %4156 = vmatpush2.msra.mxu0 0.0
    %4157 = vmatprep.subr.mxu0 0.0
    %4158 = vmatpush2.msra.mxu0 0.0
    %4159 = vmatprep.subr.mxu0 0.0
    %4160 = vmatpush2.msra.mxu0 0.0
    %4161 = vmatprep.subr.mxu0 0.0
    %4162 = vmatpush2.msra.mxu0 0.0
    %4163 = vmatprep.subr.mxu0 0.0
    %4164 = vmatpush2.msra.mxu0 0.0
    %4165 = vmatprep.subr.mxu0 0.0
    %4166 = vmatpush2.msra.mxu0 0.0
    %4167 = vmatprep.mubr.f32.mxu0 0.0
    %4168 = vmatmul.mubr.f32.gmra.mxu0 %v4101
    %v4169 = vpop.f32.mrf.mxu0
    %v4170 = vadd.f32 %v4098, %v4169
    %v4171 = vpop.f32.mrf.mxu0
    %v4172 = vadd.f32 %v4098, %v4171
    %4173 = vdwg.mxu0
    %v4174 = vadd.f32 %v4170, 0.0
    %v4175 = vadd.f32 %v4172, 0.0
    %v4176 = vld [vmem:[%s61] sm:$0xff]
    %v4177 = vld [vmem:[%s61 + $0x8] sm:$0xff]
    %v4178 = vld [vmem:[%s61 + $0x10] sm:$0xff]
    %v4179 = vld [vmem:[%s61 + $0x18] sm:$0xff]
    %v4180 = vlaneseq
    %v4181 = vshrl.u32 %v4180, 7
    %v4182 = vsub.s32 1, %v4181
    %v4183 = vrot.slane %v1434, %v4182
    %v4184 = vmul.f32 %v4176, %v4183
    %v4185 = vmul.f32 %v4177, %v4183
    %v4186 = vmul.f32 %v4178, %v4183
    %v4187 = vmul.f32 %v4179, %v4183
    %v4188 = vmul.f32 %v4184, %v4184
    %v4189 = vmul.f32 %v4185, %v4185
    %v4190 = vmul.f32 %v4186, %v4186
    %v4191 = vmul.f32 %v4187, %v4187
    %v4192 = vsel %vm590, %v4188, 0.0
    %4193 = vadd.xlane.f32.xlu0 %v4192
    %v4194 = vpop.xlane.xlu0 %4193
    %v4195 = vsel %vm590, %v4189, 0.0
    %4196 = vadd.xlane.f32.xlu0 %v4195
    %v4197 = vpop.xlane.xlu0 %4196
    %v4198 = vsel %vm590, %v4190, 0.0
    %4199 = vadd.xlane.f32.xlu0 %v4198
    %v4200 = vpop.xlane.xlu0 %4199
    %v4201 = vsel %vm590, %v4191, 0.0
    %4202 = vadd.xlane.f32.xlu0 %v4201
    %v4203 = vpop.xlane.xlu0 %4202
    %v4204 = vadd.f32 %v4194, 1e-08
    %v4205 = vadd.f32 %v4197, 1e-08
    %v4206 = vadd.f32 %v4200, 1e-08
    %v4207 = vadd.f32 %v4203, 1e-08
    %v4208 = vrsqrt.pop %v4204
    %v4209 = vrsqrt.pop %v4205
    %v4210 = vrsqrt.pop %v4206
    %v4211 = vrsqrt.pop %v4207
    %v4212 = vmul.f32 %v4184, %v4208
    %v4213 = vmul.f32 %v4185, %v4209
    %v4214 = vmul.f32 %v4186, %v4210
    %v4215 = vmul.f32 %v4187, %v4211
    %v4216 = vld [vmem:[%s63] sm:$0xff]
    %v4217 = vld [vmem:[%s63 + $0x8] sm:$0xff]
    %v4218 = vld [vmem:[%s63 + $0x10] sm:$0xff]
    %v4219 = vld [vmem:[%s63 + $0x18] sm:$0xff]
    %4221 = vset.pattern.permute.xlu0 0
    %4222 = vperm.xlu0 %4221, %v4216
    %v4223 = vpop.permute.xlu0 %4222
    %4226 = vset.pattern.permute.xlu0 0
    %4227 = vperm.xlu0 %4226, %v4217
    %v4228 = vpop.permute.xlu0 %4227
    %4231 = vset.pattern.permute.xlu0 0
    %4232 = vperm.xlu0 %4231, %v4218
    %v4233 = vpop.permute.xlu0 %4232
    %4236 = vset.pattern.permute.xlu0 0
    %4237 = vperm.xlu0 %4236, %v4219
    %v4238 = vpop.permute.xlu0 %4237
    %v4241 = vsel %vm590, %v4212, 0
    %v4244 = vsel %vm590, %v4213, 0
    %v4247 = vsel %vm590, %v4214, 0
    %v4250 = vsel %vm590, %v4215, 0
    %4252 = vmatprep.subr.mxu0 0.0
    %4253 = vmatpush1.msra.mxu0 0.0
    %4254 = vmatprep.subr.mxu0 0.0
    %4255 = vmatpush1.msra.mxu0 0.0
    %4256 = vmatprep.subr.mxu0 0.0
    %4257 = vmatpush1.msra.mxu0 0.0
    %4258 = vmatprep.subr.mxu0 0.0
    %4259 = vmatpush1.msra.mxu0 0.0
    %4260 = vmatprep.subr.mxu0 0.0
    %4261 = vmatpush1.msra.mxu0 0.0
    %4262 = vmatprep.subr.mxu0 0.0
    %4263 = vmatpush1.msra.mxu0 0.0
    %4264 = vmatprep.subr.mxu0 0.0
    %4265 = vmatpush1.msra.mxu0 0.0
    %4266 = vmatprep.subr.mxu0 0.0
    %4267 = vmatpush1.msra.mxu0 0.0
    %4268 = vmatprep.subr.mxu0 0.0
    %4269 = vmatpush1.msra.mxu0 0.0
    %4270 = vmatprep.subr.mxu0 0.0
    %4271 = vmatpush1.msra.mxu0 0.0
    %4272 = vmatprep.subr.mxu0 0.0
    %4273 = vmatpush1.msra.mxu0 0.0
    %4274 = vmatprep.subr.mxu0 0.0
    %4275 = vmatpush1.msra.mxu0 0.0
    %4276 = vmatprep.subr.mxu0 %v4087
    %4277 = vmatpush1.msra.mxu0 %v4086
    %4278 = vmatprep.subr.mxu0 %v4085
    %4279 = vmatpush1.msra.mxu0 %v4084
    %4280 = vmatprep.subr.mxu0 %v4083
    %4281 = vmatpush1.msra.mxu0 %v4082
    %4282 = vmatprep.subr.mxu0 %v4081
    %4283 = vmatpush1.msra.mxu0 %v4080
    %4284 = vmatprep.subr.mxu0 0.0
    %4285 = vmatpush2.msra.mxu0 0.0
    %4286 = vmatprep.subr.mxu0 0.0
    %4287 = vmatpush2.msra.mxu0 0.0
    %4288 = vmatprep.subr.mxu0 0.0
    %4289 = vmatpush2.msra.mxu0 0.0
    %4290 = vmatprep.subr.mxu0 0.0
    %4291 = vmatpush2.msra.mxu0 0.0
    %4292 = vmatprep.subr.mxu0 0.0
    %4293 = vmatpush2.msra.mxu0 0.0
    %4294 = vmatprep.subr.mxu0 0.0
    %4295 = vmatpush2.msra.mxu0 0.0
    %4296 = vmatprep.subr.mxu0 0.0
    %4297 = vmatpush2.msra.mxu0 0.0
    %4298 = vmatprep.subr.mxu0 0.0
    %4299 = vmatpush2.msra.mxu0 0.0
    %4300 = vmatprep.subr.mxu0 0.0
    %4301 = vmatpush2.msra.mxu0 0.0
    %4302 = vmatprep.subr.mxu0 0.0
    %4303 = vmatpush2.msra.mxu0 0.0
    %4304 = vmatprep.subr.mxu0 0.0
    %4305 = vmatpush2.msra.mxu0 0.0
    %4306 = vmatprep.subr.mxu0 0.0
    %4307 = vmatpush2.msra.mxu0 0.0
    %4308 = vmatprep.subr.mxu0 0.0
    %4309 = vmatpush2.msra.mxu0 0.0
    %4310 = vmatprep.subr.mxu0 0.0
    %4311 = vmatpush2.msra.mxu0 0.0
    %4312 = vmatprep.subr.mxu0 0.0
    %4313 = vmatpush2.msra.mxu0 0.0
    %4314 = vmatprep.subr.mxu0 0.0
    %4315 = vmatpush2.msra.mxu0 0.0
    %4316 = vmatprep.mubr.f32.mxu0 0.0
    %4317 = vmatmul.mubr.f32.gmra.mxu0 %v4241
    %v4318 = vpop.f32.mrf.mxu0
    %v4319 = vadd.f32 %v4223, %v4318
    %v4320 = vpop.f32.mrf.mxu0
    %v4321 = vadd.f32 %v4223, %v4320
    %4322 = vmatprep.mubr.f32.mxu0 0.0
    %4323 = vmatmul.mubr.f32.gmra.mxu0 %v4244
    %v4324 = vpop.f32.mrf.mxu0
    %v4325 = vadd.f32 %v4228, %v4324
    %v4326 = vpop.f32.mrf.mxu0
    %v4327 = vadd.f32 %v4228, %v4326
    %4328 = vmatprep.mubr.f32.mxu0 0.0
    %4329 = vmatmul.mubr.f32.gmra.mxu0 %v4247
    %v4330 = vpop.f32.mrf.mxu0
    %v4331 = vadd.f32 %v4233, %v4330
    %v4332 = vpop.f32.mrf.mxu0
    %v4333 = vadd.f32 %v4233, %v4332
    %4334 = vmatprep.mubr.f32.mxu0 0.0
    %4335 = vmatmul.mubr.f32.gmra.mxu0 %v4250
    %v4336 = vpop.f32.mrf.mxu0
    %v4337 = vadd.f32 %v4238, %v4336
    %v4338 = vpop.f32.mrf.mxu0
    %v4339 = vadd.f32 %v4238, %v4338
    %4340 = vdwg.mxu0
    %vm4341 = vcmp.ge.f32.partialorder %v4319, 0.0
    %vm4342 = vcmp.ge.f32.partialorder %v4321, 0.0
    %vm4343 = vcmp.ge.f32.partialorder %v4325, 0.0
    %vm4344 = vcmp.ge.f32.partialorder %v4327, 0.0
    %vm4345 = vcmp.ge.f32.partialorder %v4331, 0.0
    %vm4346 = vcmp.ge.f32.partialorder %v4333, 0.0
    %vm4347 = vcmp.ge.f32.partialorder %v4337, 0.0
    %vm4348 = vcmp.ge.f32.partialorder %v4339, 0.0
    %v4349 = vmul.f32 %v4319, 0.2
    %v4350 = vmul.f32 %v4321, 0.2
    %v4351 = vmul.f32 %v4325, 0.2
    %v4352 = vmul.f32 %v4327, 0.2
    %v4353 = vmul.f32 %v4331, 0.2
    %v4354 = vmul.f32 %v4333, 0.2
    %v4355 = vmul.f32 %v4337, 0.2
    %v4356 = vmul.f32 %v4339, 0.2
    %v4357 = vsel %vm4341, %v4319, %v4349
    %v4358 = vsel %vm4342, %v4321, %v4350
    %v4359 = vsel %vm4343, %v4325, %v4351
    %v4360 = vsel %vm4344, %v4327, %v4352
    %v4361 = vsel %vm4345, %v4331, %v4353
    %v4362 = vsel %vm4346, %v4333, %v4354
    %v4363 = vsel %vm4347, %v4337, %v4355
    %v4364 = vsel %vm4348, %v4339, %v4356
    %v4365 = vmul.f32 %v4357, 1.4142135
    %v4366 = vmul.f32 %v4358, 1.4142135
    %v4367 = vmul.f32 %v4359, 1.4142135
    %v4368 = vmul.f32 %v4360, 1.4142135
    %v4369 = vmul.f32 %v4361, 1.4142135
    %v4370 = vmul.f32 %v4362, 1.4142135
    %v4371 = vmul.f32 %v4363, 1.4142135
    %v4372 = vmul.f32 %v4364, 1.4142135
    %v4373 = vld [vmem:[%s69] sm:$0xff]
    %v4374 = vld [vmem:[%s69 + $0x8] sm:$0xff]
    %v4375 = vld [vmem:[%s69 + $0x10] sm:$0xff]
    %v4376 = vld [vmem:[%s69 + $0x18] sm:$0xff]
    %v4377 = vlaneseq
    %v4378 = vshrl.u32 %v4377, 7
    %v4379 = vsub.s32 1, %v4378
    %v4380 = vrot.slane %v1514, %v4379
    %v4381 = vmul.f32 %v4373, %v4380
    %v4382 = vmul.f32 %v4374, %v4380
    %v4383 = vmul.f32 %v4375, %v4380
    %v4384 = vmul.f32 %v4376, %v4380
    %v4385 = vmul.f32 %v4381, %v4381
    %v4386 = vmul.f32 %v4382, %v4382
    %v4387 = vmul.f32 %v4383, %v4383
    %v4388 = vmul.f32 %v4384, %v4384
    %v4389 = vsel %vm590, %v4385, 0.0
    %4390 = vadd.xlane.f32.xlu0 %v4389
    %v4391 = vpop.xlane.xlu0 %4390
    %v4392 = vsel %vm590, %v4386, 0.0
    %4393 = vadd.xlane.f32.xlu0 %v4392
    %v4394 = vpop.xlane.xlu0 %4393
    %v4395 = vsel %vm590, %v4387, 0.0
    %4396 = vadd.xlane.f32.xlu0 %v4395
    %v4397 = vpop.xlane.xlu0 %4396
    %v4398 = vsel %vm590, %v4388, 0.0
    %4399 = vadd.xlane.f32.xlu0 %v4398
    %v4400 = vpop.xlane.xlu0 %4399
    %v4401 = vadd.f32 %v4391, 1e-08
    %v4402 = vadd.f32 %v4394, 1e-08
    %v4403 = vadd.f32 %v4397, 1e-08
    %v4404 = vadd.f32 %v4400, 1e-08
    %v4405 = vrsqrt.pop %v4401
    %v4406 = vrsqrt.pop %v4402
    %v4407 = vrsqrt.pop %v4403
    %v4408 = vrsqrt.pop %v4404
    %v4409 = vmul.f32 %v4381, %v4405
    %v4410 = vmul.f32 %v4382, %v4406
    %v4411 = vmul.f32 %v4383, %v4407
    %v4412 = vmul.f32 %v4384, %v4408
    %v4413 = vld [vmem:[%s71] sm:$0xff]
    %v4414 = vld [vmem:[%s71 + $0x8] sm:$0xff]
    %v4415 = vld [vmem:[%s71 + $0x10] sm:$0xff]
    %v4416 = vld [vmem:[%s71 + $0x18] sm:$0xff]
    %4418 = vset.pattern.permute.xlu0 0
    %4419 = vperm.xlu0 %4418, %v4413
    %v4420 = vpop.permute.xlu0 %4419
    %4423 = vset.pattern.permute.xlu0 0
    %4424 = vperm.xlu0 %4423, %v4414
    %v4425 = vpop.permute.xlu0 %4424
    %4428 = vset.pattern.permute.xlu0 0
    %4429 = vperm.xlu0 %4428, %v4415
    %v4430 = vpop.permute.xlu0 %4429
    %4433 = vset.pattern.permute.xlu0 0
    %4434 = vperm.xlu0 %4433, %v4416
    %v4435 = vpop.permute.xlu0 %4434
    %v4438 = vsel %vm590, %v4409, 0
    %v4441 = vsel %vm590, %v4410, 0
    %v4444 = vsel %vm590, %v4411, 0
    %v4447 = vsel %vm590, %v4412, 0
    %4449 = vmatprep.subr.mxu0 0.0
    %4450 = vmatpush1.msra.mxu0 0.0
    %4451 = vmatprep.subr.mxu0 0.0
    %4452 = vmatpush1.msra.mxu0 0.0
    %4453 = vmatprep.subr.mxu0 0.0
    %4454 = vmatpush1.msra.mxu0 0.0
    %4455 = vmatprep.subr.mxu0 0.0
    %4456 = vmatpush1.msra.mxu0 0.0
    %4457 = vmatprep.subr.mxu0 0.0
    %4458 = vmatpush1.msra.mxu0 0.0
    %4459 = vmatprep.subr.mxu0 0.0
    %4460 = vmatpush1.msra.mxu0 0.0
    %4461 = vmatprep.subr.mxu0 0.0
    %4462 = vmatpush1.msra.mxu0 0.0
    %4463 = vmatprep.subr.mxu0 0.0
    %4464 = vmatpush1.msra.mxu0 0.0
    %4465 = vmatprep.subr.mxu0 0.0
    %4466 = vmatpush1.msra.mxu0 0.0
    %4467 = vmatprep.subr.mxu0 0.0
    %4468 = vmatpush1.msra.mxu0 0.0
    %4469 = vmatprep.subr.mxu0 0.0
    %4470 = vmatpush1.msra.mxu0 0.0
    %4471 = vmatprep.subr.mxu0 0.0
    %4472 = vmatpush1.msra.mxu0 0.0
    %4473 = vmatprep.subr.mxu0 %v4372
    %4474 = vmatpush1.msra.mxu0 %v4371
    %4475 = vmatprep.subr.mxu0 %v4370
    %4476 = vmatpush1.msra.mxu0 %v4369
    %4477 = vmatprep.subr.mxu0 %v4368
    %4478 = vmatpush1.msra.mxu0 %v4367
    %4479 = vmatprep.subr.mxu0 %v4366
    %4480 = vmatpush1.msra.mxu0 %v4365
    %4481 = vmatprep.subr.mxu0 0.0
    %4482 = vmatpush2.msra.mxu0 0.0
    %4483 = vmatprep.subr.mxu0 0.0
    %4484 = vmatpush2.msra.mxu0 0.0
    %4485 = vmatprep.subr.mxu0 0.0
    %4486 = vmatpush2.msra.mxu0 0.0
    %4487 = vmatprep.subr.mxu0 0.0
    %4488 = vmatpush2.msra.mxu0 0.0
    %4489 = vmatprep.subr.mxu0 0.0
    %4490 = vmatpush2.msra.mxu0 0.0
    %4491 = vmatprep.subr.mxu0 0.0
    %4492 = vmatpush2.msra.mxu0 0.0
    %4493 = vmatprep.subr.mxu0 0.0
    %4494 = vmatpush2.msra.mxu0 0.0
    %4495 = vmatprep.subr.mxu0 0.0
    %4496 = vmatpush2.msra.mxu0 0.0
    %4497 = vmatprep.subr.mxu0 0.0
    %4498 = vmatpush2.msra.mxu0 0.0
    %4499 = vmatprep.subr.mxu0 0.0
    %4500 = vmatpush2.msra.mxu0 0.0
    %4501 = vmatprep.subr.mxu0 0.0
    %4502 = vmatpush2.msra.mxu0 0.0
    %4503 = vmatprep.subr.mxu0 0.0
    %4504 = vmatpush2.msra.mxu0 0.0
    %4505 = vmatprep.subr.mxu0 0.0
    %4506 = vmatpush2.msra.mxu0 0.0
    %4507 = vmatprep.subr.mxu0 0.0
    %4508 = vmatpush2.msra.mxu0 0.0
    %4509 = vmatprep.subr.mxu0 0.0
    %4510 = vmatpush2.msra.mxu0 0.0
    %4511 = vmatprep.subr.mxu0 0.0
    %4512 = vmatpush2.msra.mxu0 0.0
    %4513 = vmatprep.mubr.f32.mxu0 0.0
    %4514 = vmatmul.mubr.f32.gmra.mxu0 %v4438
    %v4515 = vpop.f32.mrf.mxu0
    %v4516 = vadd.f32 %v4420, %v4515
    %v4517 = vpop.f32.mrf.mxu0
    %v4518 = vadd.f32 %v4420, %v4517
    %4519 = vmatprep.mubr.f32.mxu0 0.0
    %4520 = vmatmul.mubr.f32.gmra.mxu0 %v4441
    %v4521 = vpop.f32.mrf.mxu0
    %v4522 = vadd.f32 %v4425, %v4521
    %v4523 = vpop.f32.mrf.mxu0
    %v4524 = vadd.f32 %v4425, %v4523
    %4525 = vmatprep.mubr.f32.mxu0 0.0
    %4526 = vmatmul.mubr.f32.gmra.mxu0 %v4444
    %v4527 = vpop.f32.mrf.mxu0
    %v4528 = vadd.f32 %v4430, %v4527
    %v4529 = vpop.f32.mrf.mxu0
    %v4530 = vadd.f32 %v4430, %v4529
    %4531 = vmatprep.mubr.f32.mxu0 0.0
    %4532 = vmatmul.mubr.f32.gmra.mxu0 %v4447
    %v4533 = vpop.f32.mrf.mxu0
    %v4534 = vadd.f32 %v4435, %v4533
    %v4535 = vpop.f32.mrf.mxu0
    %v4536 = vadd.f32 %v4435, %v4535
    %4537 = vdwg.mxu0
    %vm4538 = vcmp.ge.f32.partialorder %v4516, 0.0
    %vm4539 = vcmp.ge.f32.partialorder %v4518, 0.0
    %vm4540 = vcmp.ge.f32.partialorder %v4522, 0.0
    %vm4541 = vcmp.ge.f32.partialorder %v4524, 0.0
    %vm4542 = vcmp.ge.f32.partialorder %v4528, 0.0
    %vm4543 = vcmp.ge.f32.partialorder %v4530, 0.0
    %vm4544 = vcmp.ge.f32.partialorder %v4534, 0.0
    %vm4545 = vcmp.ge.f32.partialorder %v4536, 0.0
    %v4546 = vmul.f32 %v4516, 0.2
    %v4547 = vmul.f32 %v4518, 0.2
    %v4548 = vmul.f32 %v4522, 0.2
    %v4549 = vmul.f32 %v4524, 0.2
    %v4550 = vmul.f32 %v4528, 0.2
    %v4551 = vmul.f32 %v4530, 0.2
    %v4552 = vmul.f32 %v4534, 0.2
    %v4553 = vmul.f32 %v4536, 0.2
    %v4554 = vsel %vm4538, %v4516, %v4546
    %v4555 = vsel %vm4539, %v4518, %v4547
    %v4556 = vsel %vm4540, %v4522, %v4548
    %v4557 = vsel %vm4541, %v4524, %v4549
    %v4558 = vsel %vm4542, %v4528, %v4550
    %v4559 = vsel %vm4543, %v4530, %v4551
    %v4560 = vsel %vm4544, %v4534, %v4552
    %v4561 = vsel %vm4545, %v4536, %v4553
    %v4562 = vmul.f32 %v4554, 1.4142135
    %v4563 = vmul.f32 %v4555, 1.4142135
    %v4564 = vmul.f32 %v4556, 1.4142135
    %v4565 = vmul.f32 %v4557, 1.4142135
    %v4566 = vmul.f32 %v4558, 1.4142135
    %v4567 = vmul.f32 %v4559, 1.4142135
    %v4568 = vmul.f32 %v4560, 1.4142135
    %v4569 = vmul.f32 %v4561, 1.4142135
    %v4570 = vld [vmem:[#allocation35] sm:$0x7]
    %v4571 = vlaneseq
    %v4572 = vshrl.u32 %v4571, 7
    %v4573 = vsub.s32 1, %v4572
    %v4574 = vrot.slane %v1594, %v4573
    %v4575 = vmul.f32 %v4570, %v4574
    %v4576 = vld [vmem:[%s79] sm:$0x7]
    %4578 = vset.pattern.permute.xlu0 0
    %4579 = vperm.xlu0 %4578, %v4576
    %v4580 = vpop.permute.xlu0 %4579
    %v4583 = vsel %vm590, %v4575, 0
    %4585 = vmatprep.subr.mxu0 0.0
    %4586 = vmatpush1.msra.mxu0 0.0
    %4587 = vmatprep.subr.mxu0 0.0
    %4588 = vmatpush1.msra.mxu0 0.0
    %4589 = vmatprep.subr.mxu0 0.0
    %4590 = vmatpush1.msra.mxu0 0.0
    %4591 = vmatprep.subr.mxu0 0.0
    %4592 = vmatpush1.msra.mxu0 0.0
    %4593 = vmatprep.subr.mxu0 0.0
    %4594 = vmatpush1.msra.mxu0 0.0
    %4595 = vmatprep.subr.mxu0 0.0
    %4596 = vmatpush1.msra.mxu0 0.0
    %4597 = vmatprep.subr.mxu0 0.0
    %4598 = vmatpush1.msra.mxu0 0.0
    %4599 = vmatprep.subr.mxu0 0.0
    %4600 = vmatpush1.msra.mxu0 0.0
    %4601 = vmatprep.subr.mxu0 0.0
    %4602 = vmatpush1.msra.mxu0 0.0
    %4603 = vmatprep.subr.mxu0 0.0
    %4604 = vmatpush1.msra.mxu0 0.0
    %4605 = vmatprep.subr.mxu0 0.0
    %4606 = vmatpush1.msra.mxu0 0.0
    %4607 = vmatprep.subr.mxu0 0.0
    %4608 = vmatpush1.msra.mxu0 0.0
    %4609 = vmatprep.subr.mxu0 %v4569
    %4610 = vmatpush1.msra.mxu0 %v4568
    %4611 = vmatprep.subr.mxu0 %v4567
    %4612 = vmatpush1.msra.mxu0 %v4566
    %4613 = vmatprep.subr.mxu0 %v4565
    %4614 = vmatpush1.msra.mxu0 %v4564
    %4615 = vmatprep.subr.mxu0 %v4563
    %4616 = vmatpush1.msra.mxu0 %v4562
    %4617 = vmatprep.subr.mxu0 0.0
    %4618 = vmatpush2.msra.mxu0 0.0
    %4619 = vmatprep.subr.mxu0 0.0
    %4620 = vmatpush2.msra.mxu0 0.0
    %4621 = vmatprep.subr.mxu0 0.0
    %4622 = vmatpush2.msra.mxu0 0.0
    %4623 = vmatprep.subr.mxu0 0.0
    %4624 = vmatpush2.msra.mxu0 0.0
    %4625 = vmatprep.subr.mxu0 0.0
    %4626 = vmatpush2.msra.mxu0 0.0
    %4627 = vmatprep.subr.mxu0 0.0
    %4628 = vmatpush2.msra.mxu0 0.0
    %4629 = vmatprep.subr.mxu0 0.0
    %4630 = vmatpush2.msra.mxu0 0.0
    %4631 = vmatprep.subr.mxu0 0.0
    %4632 = vmatpush2.msra.mxu0 0.0
    %4633 = vmatprep.subr.mxu0 0.0
    %4634 = vmatpush2.msra.mxu0 0.0
    %4635 = vmatprep.subr.mxu0 0.0
    %4636 = vmatpush2.msra.mxu0 0.0
    %4637 = vmatprep.subr.mxu0 0.0
    %4638 = vmatpush2.msra.mxu0 0.0
    %4639 = vmatprep.subr.mxu0 0.0
    %4640 = vmatpush2.msra.mxu0 0.0
    %4641 = vmatprep.subr.mxu0 0.0
    %4642 = vmatpush2.msra.mxu0 0.0
    %4643 = vmatprep.subr.mxu0 0.0
    %4644 = vmatpush2.msra.mxu0 0.0
    %4645 = vmatprep.subr.mxu0 0.0
    %4646 = vmatpush2.msra.mxu0 0.0
    %4647 = vmatprep.subr.mxu0 0.0
    %4648 = vmatpush2.msra.mxu0 0.0
    %4649 = vmatprep.mubr.f32.mxu0 0.0
    %4650 = vmatmul.mubr.f32.gmra.mxu0 %v4583
    %v4651 = vpop.f32.mrf.mxu0
    %v4652 = vadd.f32 %v4580, %v4651
    %v4653 = vpop.f32.mrf.mxu0
    %v4654 = vadd.f32 %v4580, %v4653
    %4655 = vdwg.mxu0
    %v4656 = vadd.f32 %v4174, %v4652
    %v4657 = vadd.f32 %v4175, %v4654
    %v4658 = vld [vmem:[%s85] sm:$0xff]
    %v4659 = vld [vmem:[%s85 + $0x8] sm:$0xff]
    %v4660 = vlaneseq
    %v4661 = vshrl.u32 %v4660, 7
    %v4662 = vsub.s32 1, %v4661
    %v4663 = vrot.slane %v1674, %v4662
    %v4664 = vmul.f32 %v4658, %v4663
    %v4665 = vmul.f32 %v4659, %v4663
    %v4666 = vmul.f32 %v4664, %v4664
    %v4667 = vmul.f32 %v4665, %v4665
    %v4668 = vsel %vm590, %v4666, 0.0
    %4669 = vadd.xlane.f32.xlu0 %v4668
    %v4670 = vpop.xlane.xlu0 %4669
    %v4671 = vsel %vm590, %v4667, 0.0
    %4672 = vadd.xlane.f32.xlu0 %v4671
    %v4673 = vpop.xlane.xlu0 %4672
    %v4674 = vadd.f32 %v4670, 1e-08
    %v4675 = vadd.f32 %v4673, 1e-08
    %v4676 = vrsqrt.pop %v4674
    %v4677 = vrsqrt.pop %v4675
    %v4678 = vmul.f32 %v4664, %v4676
    %v4679 = vmul.f32 %v4665, %v4677
    %v4680 = vld [vmem:[%s87] sm:$0xff]
    %v4681 = vld [vmem:[%s87 + $0x8] sm:$0xff]
    %4683 = vset.pattern.permute.xlu0 0
    %4684 = vperm.xlu0 %4683, %v4680
    %v4685 = vpop.permute.xlu0 %4684
    %4688 = vset.pattern.permute.xlu0 0
    %4689 = vperm.xlu0 %4688, %v4681
    %v4690 = vpop.permute.xlu0 %4689
    %v4693 = vsel %vm590, %v4678, 0
    %v4696 = vsel %vm590, %v4679, 0
    %4698 = vmatprep.subr.mxu0 0.0
    %4699 = vmatpush1.msra.mxu0 0.0
    %4700 = vmatprep.subr.mxu0 0.0
    %4701 = vmatpush1.msra.mxu0 0.0
    %4702 = vmatprep.subr.mxu0 0.0
    %4703 = vmatpush1.msra.mxu0 0.0
    %4704 = vmatprep.subr.mxu0 0.0
    %4705 = vmatpush1.msra.mxu0 0.0
    %4706 = vmatprep.subr.mxu0 0.0
    %4707 = vmatpush1.msra.mxu0 0.0
    %4708 = vmatprep.subr.mxu0 0.0
    %4709 = vmatpush1.msra.mxu0 0.0
    %4710 = vmatprep.subr.mxu0 0.0
    %4711 = vmatpush1.msra.mxu0 0.0
    %4712 = vmatprep.subr.mxu0 0.0
    %4713 = vmatpush1.msra.mxu0 0.0
    %4714 = vmatprep.subr.mxu0 0.0
    %4715 = vmatpush1.msra.mxu0 0.0
    %4716 = vmatprep.subr.mxu0 0.0
    %4717 = vmatpush1.msra.mxu0 0.0
    %4718 = vmatprep.subr.mxu0 0.0
    %4719 = vmatpush1.msra.mxu0 0.0
    %4720 = vmatprep.subr.mxu0 0.0
    %4721 = vmatpush1.msra.mxu0 0.0
    %4722 = vmatprep.subr.mxu0 %v4569
    %4723 = vmatpush1.msra.mxu0 %v4568
    %4724 = vmatprep.subr.mxu0 %v4567
    %4725 = vmatpush1.msra.mxu0 %v4566
    %4726 = vmatprep.subr.mxu0 %v4565
    %4727 = vmatpush1.msra.mxu0 %v4564
    %4728 = vmatprep.subr.mxu0 %v4563
    %4729 = vmatpush1.msra.mxu0 %v4562
    %4730 = vmatprep.subr.mxu0 0.0
    %4731 = vmatpush2.msra.mxu0 0.0
    %4732 = vmatprep.subr.mxu0 0.0
    %4733 = vmatpush2.msra.mxu0 0.0
    %4734 = vmatprep.subr.mxu0 0.0
    %4735 = vmatpush2.msra.mxu0 0.0
    %4736 = vmatprep.subr.mxu0 0.0
    %4737 = vmatpush2.msra.mxu0 0.0
    %4738 = vmatprep.subr.mxu0 0.0
    %4739 = vmatpush2.msra.mxu0 0.0
    %4740 = vmatprep.subr.mxu0 0.0
    %4741 = vmatpush2.msra.mxu0 0.0
    %4742 = vmatprep.subr.mxu0 0.0
    %4743 = vmatpush2.msra.mxu0 0.0
    %4744 = vmatprep.subr.mxu0 0.0
    %4745 = vmatpush2.msra.mxu0 0.0
    %4746 = vmatprep.subr.mxu0 0.0
    %4747 = vmatpush2.msra.mxu0 0.0
    %4748 = vmatprep.subr.mxu0 0.0
    %4749 = vmatpush2.msra.mxu0 0.0
    %4750 = vmatprep.subr.mxu0 0.0
    %4751 = vmatpush2.msra.mxu0 0.0
    %4752 = vmatprep.subr.mxu0 0.0
    %4753 = vmatpush2.msra.mxu0 0.0
    %4754 = vmatprep.subr.mxu0 0.0
    %4755 = vmatpush2.msra.mxu0 0.0
    %4756 = vmatprep.subr.mxu0 0.0
    %4757 = vmatpush2.msra.mxu0 0.0
    %4758 = vmatprep.subr.mxu0 0.0
    %4759 = vmatpush2.msra.mxu0 0.0
    %4760 = vmatprep.subr.mxu0 0.0
    %4761 = vmatpush2.msra.mxu0 0.0
    %4762 = vmatprep.mubr.f32.mxu0 0.0
    %4763 = vmatmul.mubr.f32.gmra.mxu0 %v4693
    %v4764 = vpop.f32.mrf.mxu0
    %v4765 = vadd.f32 %v4685, %v4764
    %v4766 = vpop.f32.mrf.mxu0
    %v4767 = vadd.f32 %v4685, %v4766
    %4768 = vmatprep.mubr.f32.mxu0 0.0
    %4769 = vmatmul.mubr.f32.gmra.mxu0 %v4696
    %v4770 = vpop.f32.mrf.mxu0
    %v4771 = vadd.f32 %v4690, %v4770
    %v4772 = vpop.f32.mrf.mxu0
    %v4773 = vadd.f32 %v4690, %v4772
    %4774 = vdwg.mxu0
    %vm4775 = vcmp.ge.f32.partialorder %v4765, 0.0
    %vm4776 = vcmp.ge.f32.partialorder %v4767, 0.0
    %vm4777 = vcmp.ge.f32.partialorder %v4771, 0.0
    %vm4778 = vcmp.ge.f32.partialorder %v4773, 0.0
    %v4779 = vmul.f32 %v4765, 0.2
    %v4780 = vmul.f32 %v4767, 0.2
    %v4781 = vmul.f32 %v4771, 0.2
    %v4782 = vmul.f32 %v4773, 0.2
    %v4783 = vsel %vm4775, %v4765, %v4779
    %v4784 = vsel %vm4776, %v4767, %v4780
    %v4785 = vsel %vm4777, %v4771, %v4781
    %v4786 = vsel %vm4778, %v4773, %v4782
    %v4787 = vmul.f32 %v4783, 1.4142135
    %v4788 = vmul.f32 %v4784, 1.4142135
    %v4789 = vmul.f32 %v4785, 1.4142135
    %v4790 = vmul.f32 %v4786, 1.4142135
    %v4791 = vld [vmem:[#allocation43] sm:$0xff]
    %v4792 = vld [vmem:[#allocation43 + $0x8] sm:$0xff]
    %v4793 = vlaneseq
    %v4794 = vshrl.u32 %v4793, 7
    %v4795 = vsub.s32 1, %v4794
    %v4796 = vrot.slane %v1754, %v4795
    %v4797 = vmul.f32 %v4791, %v4796
    %v4798 = vmul.f32 %v4792, %v4796
    %v4799 = vmul.f32 %v4797, %v4797
    %v4800 = vmul.f32 %v4798, %v4798
    %v4801 = vsel %vm859, %v4799, 0.0
    %4802 = vadd.xlane.f32.xlu0 %v4801
    %v4803 = vpop.xlane.xlu0 %4802
    %v4804 = vsel %vm859, %v4800, 0.0
    %4805 = vadd.xlane.f32.xlu0 %v4804
    %v4806 = vpop.xlane.xlu0 %4805
    %v4807 = vadd.f32 %v4803, 1e-08
    %v4808 = vadd.f32 %v4806, 1e-08
    %v4809 = vrsqrt.pop %v4807
    %v4810 = vrsqrt.pop %v4808
    %v4811 = vmul.f32 %v4797, %v4809
    %v4812 = vmul.f32 %v4798, %v4810
    %v4813 = vld [vmem:[%s95] sm:$0xff]
    %v4814 = vld [vmem:[%s95 + $0x8] sm:$0xff]
    %4816 = vset.pattern.permute.xlu0 0
    %4817 = vperm.xlu0 %4816, %v4813
    %v4818 = vpop.permute.xlu0 %4817
    %4821 = vset.pattern.permute.xlu0 0
    %4822 = vperm.xlu0 %4821, %v4814
    %v4823 = vpop.permute.xlu0 %4822
    %v4826 = vsel %vm859, %v4811, 0
    %v4829 = vsel %vm859, %v4812, 0
    %4831 = vmatprep.subr.mxu0 0.0
    %4832 = vmatpush1.msra.mxu0 0.0
    %4833 = vmatprep.subr.mxu0 0.0
    %4834 = vmatpush1.msra.mxu0 0.0
    %4835 = vmatprep.subr.mxu0 0.0
    %4836 = vmatpush1.msra.mxu0 0.0
    %4837 = vmatprep.subr.mxu0 0.0
    %4838 = vmatpush1.msra.mxu0 0.0
    %4839 = vmatprep.subr.mxu0 0.0
    %4840 = vmatpush1.msra.mxu0 0.0
    %4841 = vmatprep.subr.mxu0 0.0
    %4842 = vmatpush1.msra.mxu0 0.0
    %4843 = vmatprep.subr.mxu0 0.0
    %4844 = vmatpush1.msra.mxu0 0.0
    %4845 = vmatprep.subr.mxu0 0.0
    %4846 = vmatpush1.msra.mxu0 0.0
    %4847 = vmatprep.subr.mxu0 0.0
    %4848 = vmatpush1.msra.mxu0 0.0
    %4849 = vmatprep.subr.mxu0 0.0
    %4850 = vmatpush1.msra.mxu0 0.0
    %4851 = vmatprep.subr.mxu0 0.0
    %4852 = vmatpush1.msra.mxu0 0.0
    %4853 = vmatprep.subr.mxu0 0.0
    %4854 = vmatpush1.msra.mxu0 0.0
    %4855 = vmatprep.subr.mxu0 0.0
    %4856 = vmatpush1.msra.mxu0 0.0
    %4857 = vmatprep.subr.mxu0 0.0
    %4858 = vmatpush1.msra.mxu0 0.0
    %4859 = vmatprep.subr.mxu0 %v4790
    %4860 = vmatpush1.msra.mxu0 %v4789
    %4861 = vmatprep.subr.mxu0 %v4788
    %4862 = vmatpush1.msra.mxu0 %v4787
    %4863 = vmatprep.subr.mxu0 0.0
    %4864 = vmatpush2.msra.mxu0 0.0
    %4865 = vmatprep.subr.mxu0 0.0
    %4866 = vmatpush2.msra.mxu0 0.0
    %4867 = vmatprep.subr.mxu0 0.0
    %4868 = vmatpush2.msra.mxu0 0.0
    %4869 = vmatprep.subr.mxu0 0.0
    %4870 = vmatpush2.msra.mxu0 0.0
    %4871 = vmatprep.subr.mxu0 0.0
    %4872 = vmatpush2.msra.mxu0 0.0
    %4873 = vmatprep.subr.mxu0 0.0
    %4874 = vmatpush2.msra.mxu0 0.0
    %4875 = vmatprep.subr.mxu0 0.0
    %4876 = vmatpush2.msra.mxu0 0.0
    %4877 = vmatprep.subr.mxu0 0.0
    %4878 = vmatpush2.msra.mxu0 0.0
    %4879 = vmatprep.subr.mxu0 0.0
    %4880 = vmatpush2.msra.mxu0 0.0
    %4881 = vmatprep.subr.mxu0 0.0
    %4882 = vmatpush2.msra.mxu0 0.0
    %4883 = vmatprep.subr.mxu0 0.0
    %4884 = vmatpush2.msra.mxu0 0.0
    %4885 = vmatprep.subr.mxu0 0.0
    %4886 = vmatpush2.msra.mxu0 0.0
    %4887 = vmatprep.subr.mxu0 0.0
    %4888 = vmatpush2.msra.mxu0 0.0
    %4889 = vmatprep.subr.mxu0 0.0
    %4890 = vmatpush2.msra.mxu0 0.0
    %4891 = vmatprep.subr.mxu0 0.0
    %4892 = vmatpush2.msra.mxu0 0.0
    %4893 = vmatprep.subr.mxu0 0.0
    %4894 = vmatpush2.msra.mxu0 0.0
    %4895 = vmatprep.mubr.f32.mxu0 0.0
    %4896 = vmatmul.mubr.f32.gmra.mxu0 %v4826
    %v4897 = vpop.f32.mrf.mxu0
    %v4898 = vadd.f32 %v4818, %v4897
    %v4899 = vpop.f32.mrf.mxu0
    %v4900 = vadd.f32 %v4818, %v4899
    %4901 = vmatprep.mubr.f32.mxu0 0.0
    %4902 = vmatmul.mubr.f32.gmra.mxu0 %v4829
    %v4903 = vpop.f32.mrf.mxu0
    %v4904 = vadd.f32 %v4823, %v4903
    %v4905 = vpop.f32.mrf.mxu0
    %v4906 = vadd.f32 %v4823, %v4905
    %4907 = vdwg.mxu0
    %vm4908 = vcmp.ge.f32.partialorder %v4898, 0.0
    %vm4909 = vcmp.ge.f32.partialorder %v4900, 0.0
    %vm4910 = vcmp.ge.f32.partialorder %v4904, 0.0
    %vm4911 = vcmp.ge.f32.partialorder %v4906, 0.0
    %v4912 = vmul.f32 %v4898, 0.2
    %v4913 = vmul.f32 %v4900, 0.2
    %v4914 = vmul.f32 %v4904, 0.2
    %v4915 = vmul.f32 %v4906, 0.2
    %v4916 = vsel %vm4908, %v4898, %v4912
    %v4917 = vsel %vm4909, %v4900, %v4913
    %v4918 = vsel %vm4910, %v4904, %v4914
    %v4919 = vsel %vm4911, %v4906, %v4915
    %v4920 = vmul.f32 %v4916, 1.4142135
    %v4921 = vmul.f32 %v4917, 1.4142135
    %v4922 = vmul.f32 %v4918, 1.4142135
    %v4923 = vmul.f32 %v4919, 1.4142135
    %v4924 = vld [vmem:[%s101] sm:$0x7]
    %v4925 = vlaneseq
    %v4926 = vshrl.u32 %v4925, 7
    %v4927 = vsub.s32 1, %v4926
    %v4928 = vrot.slane %v1834, %v4927
    %v4929 = vmul.f32 %v4924, %v4928
    %v4930 = vld [vmem:[%s103] sm:$0x7]
    %4932 = vset.pattern.permute.xlu0 0
    %4933 = vperm.xlu0 %4932, %v4930
    %v4934 = vpop.permute.xlu0 %4933
    %v4937 = vsel %vm859, %v4929, 0
    %4939 = vmatprep.subr.mxu0 0.0
    %4940 = vmatpush1.msra.mxu0 0.0
    %4941 = vmatprep.subr.mxu0 0.0
    %4942 = vmatpush1.msra.mxu0 0.0
    %4943 = vmatprep.subr.mxu0 0.0
    %4944 = vmatpush1.msra.mxu0 0.0
    %4945 = vmatprep.subr.mxu0 0.0
    %4946 = vmatpush1.msra.mxu0 0.0
    %4947 = vmatprep.subr.mxu0 0.0
    %4948 = vmatpush1.msra.mxu0 0.0
    %4949 = vmatprep.subr.mxu0 0.0
    %4950 = vmatpush1.msra.mxu0 0.0
    %4951 = vmatprep.subr.mxu0 0.0
    %4952 = vmatpush1.msra.mxu0 0.0
    %4953 = vmatprep.subr.mxu0 0.0
    %4954 = vmatpush1.msra.mxu0 0.0
    %4955 = vmatprep.subr.mxu0 0.0
    %4956 = vmatpush1.msra.mxu0 0.0
    %4957 = vmatprep.subr.mxu0 0.0
    %4958 = vmatpush1.msra.mxu0 0.0
    %4959 = vmatprep.subr.mxu0 0.0
    %4960 = vmatpush1.msra.mxu0 0.0
    %4961 = vmatprep.subr.mxu0 0.0
    %4962 = vmatpush1.msra.mxu0 0.0
    %4963 = vmatprep.subr.mxu0 0.0
    %4964 = vmatpush1.msra.mxu0 0.0
    %4965 = vmatprep.subr.mxu0 0.0
    %4966 = vmatpush1.msra.mxu0 0.0
    %4967 = vmatprep.subr.mxu0 %v4923
    %4968 = vmatpush1.msra.mxu0 %v4922
    %4969 = vmatprep.subr.mxu0 %v4921
    %4970 = vmatpush1.msra.mxu0 %v4920
    %4971 = vmatprep.subr.mxu0 0.0
    %4972 = vmatpush2.msra.mxu0 0.0
    %4973 = vmatprep.subr.mxu0 0.0
    %4974 = vmatpush2.msra.mxu0 0.0
    %4975 = vmatprep.subr.mxu0 0.0
    %4976 = vmatpush2.msra.mxu0 0.0
    %4977 = vmatprep.subr.mxu0 0.0
    %4978 = vmatpush2.msra.mxu0 0.0
    %4979 = vmatprep.subr.mxu0 0.0
    %4980 = vmatpush2.msra.mxu0 0.0
    %4981 = vmatprep.subr.mxu0 0.0
    %4982 = vmatpush2.msra.mxu0 0.0
    %4983 = vmatprep.subr.mxu0 0.0
    %4984 = vmatpush2.msra.mxu0 0.0
    %4985 = vmatprep.subr.mxu0 0.0
    %4986 = vmatpush2.msra.mxu0 0.0
    %4987 = vmatprep.subr.mxu0 0.0
    %4988 = vmatpush2.msra.mxu0 0.0
    %4989 = vmatprep.subr.mxu0 0.0
    %4990 = vmatpush2.msra.mxu0 0.0
    %4991 = vmatprep.subr.mxu0 0.0
    %4992 = vmatpush2.msra.mxu0 0.0
    %4993 = vmatprep.subr.mxu0 0.0
    %4994 = vmatpush2.msra.mxu0 0.0
    %4995 = vmatprep.subr.mxu0 0.0
    %4996 = vmatpush2.msra.mxu0 0.0
    %4997 = vmatprep.subr.mxu0 0.0
    %4998 = vmatpush2.msra.mxu0 0.0
    %4999 = vmatprep.subr.mxu0 0.0
    %5000 = vmatpush2.msra.mxu0 0.0
    %5001 = vmatprep.subr.mxu0 0.0
    %5002 = vmatpush2.msra.mxu0 0.0
    %5003 = vmatprep.mubr.f32.mxu0 0.0
    %5004 = vmatmul.mubr.f32.gmra.mxu0 %v4937
    %v5005 = vpop.f32.mrf.mxu0
    %v5006 = vadd.f32 %v4934, %v5005
    %v5007 = vpop.f32.mrf.mxu0
    %v5008 = vadd.f32 %v4934, %v5007
    %5009 = vdwg.mxu0
    %v5010 = vadd.f32 %v4656, %v5006
    %v5011 = vadd.f32 %v4657, %v5008
    %s5012 = scalar_lea.vmem [#allocation46], 32
    %5013 = vst [vmem:[%s5012] sm:$0xff] %v4920
    %5014 = vst [vmem:[%s5012 + $0x8] sm:$0xff] %v4921
    %5015 = vst [vmem:[%s5012 + $0x10] sm:$0xff] %v4922
    %5016 = vst [vmem:[%s5012 + $0x18] sm:$0xff] %v4923
    %v5019 = vcombine.low %v5010, %v5011
    %s5021 = scalar_lea.vmem %s107, 8
    %5022 = vst [vmem:[%s5021] sm:$0x77] %v5019
    // Predicated region
    $region322: #{tpu_custom_call.1} parent=1 // pred_check
      _
    $region323: #{tpu_custom_call.1} parent=1 // pred_check_branch
      %5024 = sbr.rel (0) target = $region325
    $region324: #{tpu_custom_call.1} parent=1 // pred_region
      %s5026 = ssub.s32 1024, 1024
      %5027 = vsyncadd [#allocation4], %s5026
      %s5028 = sshll.u32 [#allocation46], 4
      %s5029 = int_to_ptr.vmem [resolvable:$true] %s5028
      %5034 = dma.vmem_to_hbm [thread:$0]  %s5029, 1024, %s105, [#allocation4], 256, 256, 16
    $region325: #{tpu_custom_call.1} parent=1 // pred_fallthru
      _
    // Predicated region
    $region326: #{tpu_custom_call.1} parent=1 // pred_check
      _
    $region327: #{tpu_custom_call.1} parent=1 // pred_check_branch
      %5036 = sbr.rel (0) target = $region329
    $region328: #{tpu_custom_call.1} parent=1 // pred_region
      _
    $region329: #{tpu_custom_call.1} parent=1 // pred_fallthru
      _
    // Predicated region
    $region330: #{tpu_custom_call.1} parent=1 // pred_check
      _
    $region331: #{tpu_custom_call.1} parent=1 // pred_check_branch
      %5038 = sbr.rel (0) target = $region333
    $region332: #{tpu_custom_call.1} parent=1 // pred_region
      %s5040 = ssub.s32 32, 32
      %5041 = vsyncadd [#allocation48], %s5040
      %s5043 = sshll.u32 [#allocation47], 4
      %s5044 = int_to_ptr.vmem [resolvable:$true] %s5043
      %5046 = dma.vmem_to_hbm [thread:$0]  %s5044, 32, %s109, [#allocation48]
    $region333: #{tpu_custom_call.1} parent=1 // pred_fallthru
      _
    // Predicated region
    $region334: #{tpu_custom_call.1} parent=1 // pred_check
      _
    $region335: #{tpu_custom_call.1} parent=1 // pred_check_branch
      %5048 = sbr.rel (0) target = $region337
    $region336: #{tpu_custom_call.1} parent=1 // pred_region
      %5049 = dma.done [#allocation4], 1024
    $region337: #{tpu_custom_call.1} parent=1 // pred_fallthru
      _
    // Predicated region
    $region338: #{tpu_custom_call.1} parent=1 // pred_check
      _
    $region339: #{tpu_custom_call.1} parent=1 // pred_check_branch
      %5051 = sbr.rel (0) target = $region341
    $region340: #{tpu_custom_call.1} parent=1 // pred_region
      _
    $region341: #{tpu_custom_call.1} parent=1 // pred_fallthru
      _
    // Predicated region
    $region342: #{tpu_custom_call.1} parent=1 // pred_check
      _
    $region343: #{tpu_custom_call.1} parent=1 // pred_check_branch
      %5053 = sbr.rel (0) target = $region345
    $region344: #{tpu_custom_call.1} parent=1 // pred_region
      %5054 = dma.done [#allocation48], 32
    $region345: #{tpu_custom_call.1} parent=1 // pred_fallthru
      _
    %5055 = vsyncpa [#allocation3], 1
    %5056 = vsyncpa [#allocation6], 1
    %5057 = vsyncpa [#allocation9], 1
    %5058 = vsyncpa [#allocation12], 1
    %5059 = vsyncpa [#allocation15], 1
    %5060 = vsyncpa [#allocation18], 1
    %5061 = vsyncpa [#allocation21], 1
    %5062 = vsyncpa [#allocation24], 1
    %5063 = vsyncpa [#allocation27], 1
    %5064 = vsyncpa [#allocation30], 1
    %5065 = vsyncpa [#allocation33], 1
    %5066 = vsyncpa [#allocation36], 1
    %5067 = vsyncpa [#allocation39], 1
    %5068 = vsyncpa [#allocation42], 1
    %5069 = vsyncpa [#allocation45], 1
    %5070 = vsyncpa [#allocation4], 1
    %5071 = vsyncpa [#allocation48], 1

</llo_original>
